<compile_context>
chip_gen: v7x
topology: tpu7x:2x2x1
jax: 0.10.0
libtpu: 0.0.40
codegen_flags: <defaults>
</compile_context>

<pallas_src>
import math
import functools

import jax
import jax.numpy as jnp
from jax import lax
from jax.experimental import pallas as pl
from jax.experimental.pallas import tpu as pltpu


# ---------------------------------------------------------------------------
# In-kernel helpers
# ---------------------------------------------------------------------------
def _erf(x):
    # Abramowitz & Stegun 7.1.26 (max abs err ~1.5e-7): one exp (EUP) + a short
    # VPU polynomial. Matches PyTorch's exact (erf-based) nn.GELU at f32.
    a1, a2, a3, a4, a5 = 0.254829592, -0.284496736, 1.421413741, -1.453152027, 1.061405429
    p = 0.3275911
    ax = jnp.abs(x)
    t = 1.0 / (1.0 + p * ax)
    poly = ((((a5 * t + a4) * t + a3) * t + a2) * t + a1) * t
    e = 1.0 - poly * jnp.exp(-ax * ax)
    return jnp.where(x < 0.0, -e, e)


def _gelu_exact(x):
    return 0.5 * x * (1.0 + _erf(x * (1.0 / math.sqrt(2.0))))


# ---------------------------------------------------------------------------
# Fused kernel
# ---------------------------------------------------------------------------
def ce_denoiser_kernel(x_t_ref, t_ref, x_ht_ref, x_r_ref, *rest,
                       emb_dim, phase_scale, mode_tail, fuse_splits, matmul_dtype):
    f32 = jnp.float32
    mm = matmul_dtype                      # dot-operand dtype (bf16 default)
    half = emb_dim // 2
    inv_3e = 1.0 / (3.0 * emb_dim)

    *w_refs, out_ref = rest
    if fuse_splits:
        (freqs_ref, tw1_ref, tb1_ref, tw2_ref, tb2_ref,
         w1_xt_ref, w1_te_ref, w1_c_ref, b1_ref, w2o_ref, bo_ref) = w_refs
    else:
        (freqs_ref, tw1s_ref, tw1c_ref, tb1_ref, tw2_ref, tb2_ref,
         w1_xt_ref, w1_te_ref, w1_rc_ref, w1_ic_ref, b1_ref, w2o_ref, bo_ref) = w_refs

    # --- ScoringModule: RotatE rotation (all f32 on the VPU/EUP)
    ht = x_ht_ref[...]                                   # [tb, E]
    re_ht = ht[:, :half]
    im_ht = ht[:, half:]
    phase = x_r_ref[...] * phase_scale                   # r * pi / rel_range
    cosr = jnp.cos(phase)
    sinr = jnp.sin(phase)
    if mode_tail:
        re_c = re_ht * cosr - im_ht * sinr
        im_c = re_ht * sinr + im_ht * cosr
    else:
        re_c = cosr * re_ht + sinr * im_ht
        im_c = cosr * im_ht - sinr * re_ht

    # --- time MLP: precomputed freq table (no in-kernel iota/exp)
    ang = t_ref[...] * freqs_ref[...]                    # [tb,1]*[1,half] -> [tb,half]
    sin_a = jnp.sin(ang)
    cos_a = jnp.cos(ang)
    if fuse_splits:
        # half % 128 == 0: lane concat at an aligned boundary is layout-free.
        pos = jnp.concatenate([sin_a, cos_a], axis=-1)
        h = jnp.dot(pos.astype(mm), tw1_ref[...], preferred_element_type=f32) + tb1_ref[...]
    else:
        h = (jnp.dot(sin_a.astype(mm), tw1s_ref[...], preferred_element_type=f32)
             + jnp.dot(cos_a.astype(mm), tw1c_ref[...], preferred_element_type=f32)
             + tb1_ref[...])
    h = _gelu_exact(h)
    t_emb = jnp.dot(h.astype(mm), tw2_ref[...], preferred_element_type=f32) + tb2_ref[...]

    # --- LayerNorm1 over the *virtual* concat [x_t, t_emb, c]:
    #     stats from per-piece partial sums; affine folded into the w1 pieces.
    xt = x_t_ref[...]
    if fuse_splits:
        c = jnp.concatenate([re_c, im_c], axis=-1)       # aligned lane concat
        pieces = (xt, t_emb, c)
        w1_refs = (w1_xt_ref, w1_te_ref, w1_c_ref)
    else:
        pieces = (xt, t_emb, re_c, im_c)
        w1_refs = (w1_xt_ref, w1_te_ref, w1_rc_ref, w1_ic_ref)

    total = sum(jnp.sum(p, axis=-1, keepdims=True) for p in pieces)
    mean1 = total * inv_3e
    devs = [p - mean1 for p in pieces]
    sq = sum(jnp.sum(d * d, axis=-1, keepdims=True) for d in devs)
    inv1 = lax.rsqrt(sq * inv_3e + 1e-5)

    # --- mlp1 (+ReLU): x @ w1 as a sum of piece-matmuls (no unaligned concat)
    x1 = b1_ref[...]
    for d, wref in zip(devs, w1_refs):
        x1 = x1 + jnp.dot((d * inv1).astype(mm), wref[...], preferred_element_type=f32)
    x1 = jnp.maximum(x1, 0.0)

    # --- LayerNorm2 + fused (mlp2 @ output_layer) projection
    mean2 = jnp.mean(x1, axis=-1, keepdims=True)
    d2 = x1 - mean2
    inv2 = lax.rsqrt(jnp.mean(d2 * d2, axis=-1, keepdims=True) + 1e-5)
    out_ref[...] = (jnp.dot((d2 * inv2).astype(mm), w2o_ref[...], preferred_element_type=f32)
                    + bo_ref[...])


# ---------------------------------------------------------------------------
# One-time parameter preprocessing (NOT on the per-call path)
# ---------------------------------------------------------------------------
def prepare_params(params, embedding_dim, matmul_dtype=jnp.bfloat16):
    """Fold LayerNorm affines into the following linears, fuse mlp2 @ output_layer,
    precompute the sinusoidal frequency table, pre-split weights when the lane
    boundary is unaligned, and cast matmul weights to `matmul_dtype` (bf16)."""
    E = embedding_dim
    half = E // 2
    f32 = jnp.float32
    fuse = (half % 128 == 0)               # aligned -> single-dot (concat) path

    tw1 = params["tw1"].astype(f32)                      # [E, E]
    tw2 = params["tw2"].astype(f32)                      # [E, E]
    tb1 = params["tb1"].reshape(1, E).astype(f32)
    tb2 = params["tb2"].reshape(1, E).astype(f32)

    g1 = params["ln1g"].reshape(3 * E).astype(f32)
    be1 = params["ln1b"].reshape(3 * E).astype(f32)
    w1 = params["w1"].astype(f32)                        # [3E, 4E]
    b1 = params["b1"].reshape(1, 4 * E).astype(f32)
    w1g = w1 * g1[:, None]
    b1_eff = b1 + (be1 @ w1).reshape(1, 4 * E)

    g2 = params["ln2g"].reshape(4 * E).astype(f32)
    be2 = params["ln2b"].reshape(4 * E).astype(f32)
    w2 = params["w2"].astype(f32)                        # [4E, E]
    b2 = params["b2"].reshape(1, E).astype(f32)
    wo = params["wo"].astype(f32)                        # [E, E]
    bo = params["bo"].reshape(1, E).astype(f32)

    w2o = w2 @ wo                                        # fused mlp2 -> output_layer
    w2o_g = w2o * g2[:, None]
    b_out = bo + b2 @ wo + (be2 @ w2o).reshape(1, E)

    # Precomputed sinusoidal frequency table (guard E == 2 -> half-1 == 0).
    freq_scale = math.log(10000.0) / max(half - 1, 1)
    freqs = jnp.exp(jnp.arange(half, dtype=f32) * (-freq_scale)).reshape(1, half)

    out = dict(
        fused=fuse,
        freqs=freqs,                                     # [1, half] f32
        tb1=tb1, tb2=tb2, b1=b1_eff, b_out=b_out,        # biases stay f32
        tw2=tw2.astype(matmul_dtype),
        w1_xt=w1g[:E].astype(matmul_dtype),              # [E, 4E]
        w1_te=w1g[E:2 * E].astype(matmul_dtype),         # [E, 4E]
        w2o=w2o_g.astype(matmul_dtype),                  # [4E, E]
    )
    if fuse:
        out["tw1"] = tw1.astype(matmul_dtype)            # [E, E]
        out["w1_c"] = w1g[2 * E:].astype(matmul_dtype)   # [E, 4E]
    else:
        out["tw1_sin"] = tw1[:half].astype(matmul_dtype)            # [half, E]
        out["tw1_cos"] = tw1[half:].astype(matmul_dtype)            # [half, E]
        out["w1_rc"] = w1g[2 * E:2 * E + half].astype(matmul_dtype)  # [half, 4E]
        out["w1_ic"] = w1g[2 * E + half:].astype(matmul_dtype)       # [half, 4E]
    return out


# ---------------------------------------------------------------------------
# Wrapper
# ---------------------------------------------------------------------------
def _round_up(x, m):
    return ((x + m - 1) // m) * m


def _vmem_limit_bytes():
    # Raise the scoped-VMEM limit (defaults are 16/32 MiB) but stay below the
    # physical capacity of whatever generation we are on (64 MiB on v7x).
    try:
        cap = int(pltpu.get_tpu_info().vmem_capacity_bytes)
    except Exception:
        cap = 64 * 1024 * 1024
    return max(32 * 1024 * 1024, int(cap * 0.8))


def _weight_specs(weights, single_buffer):
    def zero_map(i):
        return (0, 0)
    if single_buffer:
        try:
            # Constant-index weights never change block -> double-buffering them
            # only doubles VMEM footprint (matters on v7x's 64 MiB).
            mode = pl.Buffered(1)
            return [pl.BlockSpec(w.shape, zero_map, pipeline_mode=mode) for w in weights]
        except Exception:
            pass
    return [pl.BlockSpec(w.shape, zero_map) for w in weights]


def ce_denoiser_forward(x_t, t, x_ht, x_r, prepped, *, margin, eps, dim_r, mode,
                        max_block_b=1024):
    B, E = x_t.shape
    dim_rel = x_r.shape[1]
    rel_range = (margin + eps) / dim_r
    phase_scale = float(math.pi / rel_range)
    fused = bool(prepped["fused"])

    t2 = jnp.reshape(t, (B, 1)).astype(jnp.float32)

    # Batch tile: aim for >= 2 grid steps so "parallel" can shard across the two
    # TensorCores on v7x (no effect on v5e/v6e); capped to bound per-step VMEM.
    tb = min(max_block_b, max(8, _round_up(pl.cdiv(B, 2), 8)))
    grid = (pl.cdiv(B, tb),)
    # Note: when B % tb != 0, padded tail rows feed garbage into rsqrt/exp; the
    # results are discarded on writeback, so this is benign by construction.

    if fused:
        weight_names = ["freqs", "tw1", "tb1", "tw2", "tb2",
                        "w1_xt", "w1_te", "w1_c", "b1", "w2o", "b_out"]
    else:
        weight_names = ["freqs", "tw1_sin", "tw1_cos", "tb1", "tw2", "tb2",
                        "w1_xt", "w1_te", "w1_rc", "w1_ic", "b1", "w2o", "b_out"]
    weights = [prepped[n] for n in weight_names]

    act_inputs = [x_t, t2, x_ht, x_r]
    act_specs = [pl.BlockSpec((tb, a.shape[1]), lambda i: (i, 0)) for a in act_inputs]

    kernel = functools.partial(
        ce_denoiser_kernel,
        emb_dim=E,
        phase_scale=phase_scale,
        mode_tail=(mode == "tail"),
        fuse_splits=fused,
        matmul_dtype=prepped["tw2"].dtype,
    )

    # Advisory cost estimate so XLA can schedule around the custom call.
    flops = 36 * B * E * E
    transcendentals = B * (2 * E + 2 * dim_rel) + 4 * B
    bytes_accessed = (sum(int(w.size) * w.dtype.itemsize for w in weights)
                      + sum(int(a.size) * a.dtype.itemsize for a in act_inputs)
                      + B * E * 4)
    cost = pl.CostEstimate(flops=int(flops),
                           transcendentals=int(transcendentals),
                           bytes_accessed=int(bytes_accessed))

    cparams = pltpu.CompilerParams(
        dimension_semantics=("parallel",),
        vmem_limit_bytes=_vmem_limit_bytes(),
    )

    def _run(single_buffer_weights):
        w_specs = _weight_specs(weights, single_buffer_weights)
        return pl.pallas_call(
            kernel,
            grid=grid,
            in_specs=act_specs + w_specs,
            out_specs=pl.BlockSpec((tb, E), lambda i: (i, 0)),
            out_shape=jax.ShapeDtypeStruct((B, E), jnp.float32),
            compiler_params=cparams,
            cost_estimate=cost,
        )(*act_inputs, *weights)

    try:
        return _run(True)
    except Exception:
        # Fall back to default double-buffered weight specs if single-buffered
        # (pl.Buffered(1)) constant blocks are unsupported on this jax version.
        return _run(False)


# ---------------------------------------------------------------------------
# Pure-JAX reference (mirrors the PyTorch module exactly, unfused f32 weights)
# ---------------------------------------------------------------------------
def ce_denoiser_reference(x_t, t, x_ht, x_r, params, *, margin, eps, dim_r, mode):
    B, E = x_t.shape
    half = E // 2
    rel_range = (margin + eps) / dim_r
    phase_scale = math.pi / rel_range

    re_ht, im_ht = x_ht[:, :half], x_ht[:, half:]
    phase = x_r * phase_scale
    re_rel, im_rel = jnp.cos(phase), jnp.sin(phase)
    if mode == "tail":
        re_cond = re_ht * re_rel - im_ht * im_rel
        im_cond = re_ht * im_rel + im_ht * re_rel
    else:
        re_cond = re_rel * re_ht + im_rel * im_ht
        im_cond = re_rel * im_ht - im_rel * re_ht
    c = jnp.concatenate([re_cond, im_cond], axis=-1)

    scale = math.log(10000.0) / max(half - 1, 1)
    freqs = jnp.exp(jnp.arange(half, dtype=jnp.float32) * -scale)
    ang = t[:, None] * freqs[None, :]
    pos = jnp.concatenate([jnp.sin(ang), jnp.cos(ang)], axis=-1)
    h = pos @ params["tw1"] + params["tb1"]
    h = jax.nn.gelu(h, approximate=False)
    t_emb = h @ params["tw2"] + params["tb2"]

    def ln(x, g, b, e=1e-5):
        m = jnp.mean(x, axis=-1, keepdims=True)
        v = jnp.mean((x - m) ** 2, axis=-1, keepdims=True)
        return (x - m) / jnp.sqrt(v + e) * g + b

    x = jnp.concatenate([x_t, t_emb, c], axis=-1)
    x = ln(x, params["ln1g"], params["ln1b"])
    x = jax.nn.relu(x @ params["w1"] + params["b1"])
    x = ln(x, params["ln2g"], params["ln2b"])
    e_out = x @ params["w2"] + params["b2"]
    return e_out @ params["wo"] + params["bo"]


# ---------------------------------------------------------------------------
if __name__ == "__main__":
    MARGIN, EPS = 9.0, 2.0

    def make_params(key, E):
        ks = jax.random.split(key, 14)

        def w(k, shape, s=0.1):
            return s * jax.random.normal(k, shape, jnp.float32)

        return {
            "tw1": w(ks[0], (E, E)), "tb1": w(ks[1], (1, E)),
            "tw2": w(ks[2], (E, E)), "tb2": w(ks[3], (1, E)),
            "ln1g": 1.0 + w(ks[4], (1, 3 * E)), "ln1b": w(ks[5], (1, 3 * E)),
            "ln2g": 1.0 + w(ks[6], (1, 4 * E)), "ln2b": w(ks[7], (1, 4 * E)),
            "w1": w(ks[8], (3 * E, 4 * E)), "b1": w(ks[9], (1, 4 * E)),
            "w2": w(ks[10], (4 * E, E)), "b2": w(ks[11], (1, E)),
            "wo": w(ks[12], (E, E)), "bo": w(ks[13], (1, E)),
        }

    def run_case(E, B, matmul_dtype, modes, tol):
        DIM_R = E // 2          # RotatE: relation dim = half the entity dim
        key = jax.random.PRNGKey(0)
        kp, kx = jax.random.split(key)
        params = make_params(kp, E)
        ks = jax.random.split(kx, 4)
        x_t = jax.random.normal(ks[0], (B, E), jnp.float32)
        t = jax.random.uniform(ks[1], (B,), jnp.float32, 0.0, 100.0)
        x_ht = jax.random.normal(ks[2], (B, E), jnp.float32)
        x_r = jax.random.normal(ks[3], (B, DIM_R), jnp.float32)

        prepped = prepare_params(params, E, matmul_dtype=matmul_dtype)
        for mode in modes:
            out = ce_denoiser_forward(x_t, t, x_ht, x_r, prepped,
                                      margin=MARGIN, eps=EPS, dim_r=DIM_R, mode=mode)
            out = jax.block_until_ready(out)
            ref = ce_denoiser_reference(x_t, t, x_ht, x_r, params,
                                        margin=MARGIN, eps=EPS, dim_r=DIM_R, mode=mode)
            assert out.shape == (B, E)
            max_abs_ref = float(jnp.max(jnp.abs(ref)))
            max_err = float(jnp.max(jnp.abs(out - ref)))
            assert max_err <= tol * max(1.0, max_abs_ref), (E, mode, str(matmul_dtype), max_err)

    # Small E (split-matmul path), bf16 MXU operands (default production config).
    run_case(E=32, B=8, matmul_dtype=jnp.bfloat16, modes=("tail", "head"), tol=5e-2)
    # Same shapes with f32 weights: tight check that the fused math is exact.
    run_case(E=32, B=8, matmul_dtype=jnp.float32, modes=("tail",), tol=1e-4)
    # 128-aligned half -> fused single-dot (concat) path, multi-step batch grid.
    run_case(E=256, B=16, matmul_dtype=jnp.bfloat16, modes=("tail",), tol=5e-2)

    print("KERNEL_OK")
</pallas_src>

<mosaic_0001>
module attributes {stable_mosaic.version = 11 : i64} {
  func.func @ce_denoiser_kernel(%arg0: i32, %arg1: memref<8x32xf32, #tpu.memory_space<vmem>>, %arg2: memref<8x1xf32, #tpu.memory_space<vmem>>, %arg3: memref<8x32xf32, #tpu.memory_space<vmem>>, %arg4: memref<8x16xf32, #tpu.memory_space<vmem>>, %arg5: memref<1x16xf32, #tpu.memory_space<vmem>>, %arg6: memref<16x32xbf16, #tpu.memory_space<vmem>>, %arg7: memref<16x32xbf16, #tpu.memory_space<vmem>>, %arg8: memref<1x32xf32, #tpu.memory_space<vmem>>, %arg9: memref<32x32xbf16, #tpu.memory_space<vmem>>, %arg10: memref<1x32xf32, #tpu.memory_space<vmem>>, %arg11: memref<32x128xbf16, #tpu.memory_space<vmem>>, %arg12: memref<32x128xbf16, #tpu.memory_space<vmem>>, %arg13: memref<16x128xbf16, #tpu.memory_space<vmem>>, %arg14: memref<16x128xbf16, #tpu.memory_space<vmem>>, %arg15: memref<1x128xf32, #tpu.memory_space<vmem>>, %arg16: memref<128x32xbf16, #tpu.memory_space<vmem>>, %arg17: memref<1x32xf32, #tpu.memory_space<vmem>>, %arg18: memref<8x32xf32, #tpu.memory_space<vmem>>) attributes {dimension_semantics = [#tpu.dimension_semantics<parallel>], iteration_bounds = array<i64: 1>, scalar_prefetch = 0 : i64, scratch_operands = 0 : i64, tpu.core_type = #tpu.core_type<tc>, window_params = [{transform_indices = @transform_0, window_bounds = array<i64: 8, 32>}, {transform_indices = @transform_1, window_bounds = array<i64: 8, 1>}, {transform_indices = @transform_2, window_bounds = array<i64: 8, 32>}, {transform_indices = @transform_3, window_bounds = array<i64: 8, 16>}, {pipeline_mode = #tpu.pipeline_mode<synchronous>, transform_indices = @transform_4, window_bounds = array<i64: 1, 16>}, {pipeline_mode = #tpu.pipeline_mode<synchronous>, transform_indices = @transform_5, window_bounds = array<i64: 16, 32>}, {pipeline_mode = #tpu.pipeline_mode<synchronous>, transform_indices = @transform_6, window_bounds = array<i64: 16, 32>}, {pipeline_mode = #tpu.pipeline_mode<synchronous>, transform_indices = @transform_7, window_bounds = array<i64: 1, 32>}, {pipeline_mode = #tpu.pipeline_mode<synchronous>, transform_indices = @transform_8, window_bounds = array<i64: 32, 32>}, {pipeline_mode = #tpu.pipeline_mode<synchronous>, transform_indices = @transform_9, window_bounds = array<i64: 1, 32>}, {pipeline_mode = #tpu.pipeline_mode<synchronous>, transform_indices = @transform_10, window_bounds = array<i64: 32, 128>}, {pipeline_mode = #tpu.pipeline_mode<synchronous>, transform_indices = @transform_11, window_bounds = array<i64: 32, 128>}, {pipeline_mode = #tpu.pipeline_mode<synchronous>, transform_indices = @transform_12, window_bounds = array<i64: 16, 128>}, {pipeline_mode = #tpu.pipeline_mode<synchronous>, transform_indices = @transform_13, window_bounds = array<i64: 16, 128>}, {pipeline_mode = #tpu.pipeline_mode<synchronous>, transform_indices = @transform_14, window_bounds = array<i64: 1, 128>}, {pipeline_mode = #tpu.pipeline_mode<synchronous>, transform_indices = @transform_15, window_bounds = array<i64: 128, 32>}, {pipeline_mode = #tpu.pipeline_mode<synchronous>, transform_indices = @transform_16, window_bounds = array<i64: 1, 32>}, {transform_indices = @transform_17, window_bounds = array<i64: 8, 32>}]} {
    %c0 = arith.constant 0 : index
    %c0_0 = arith.constant 0 : index
    %0 = vector.load %arg3[%c0, %c0_0] : memref<8x32xf32, #tpu.memory_space<vmem>>, vector<8x32xf32>
    %1 = vector.extract_strided_slice %0 {offsets = [0, 0], sizes = [8, 16], strides = [1, 1]} : vector<8x32xf32> to vector<8x16xf32>
    %2 = vector.extract_strided_slice %0 {offsets = [0, 16], sizes = [8, 16], strides = [1, 1]} : vector<8x32xf32> to vector<8x16xf32>
    %c0_1 = arith.constant 0 : index
    %c0_2 = arith.constant 0 : index
    %3 = vector.load %arg4[%c0_1, %c0_2] : memref<8x16xf32, #tpu.memory_space<vmem>>, vector<8x16xf32>
    %cst = arith.constant 4.56958914 : f32
    %4 = vector.broadcast %cst : f32 to vector<8x16xf32>
    %5 = arith.mulf %3, %4 : vector<8x16xf32>
    %6 = math.cos %5 : vector<8x16xf32>
    %7 = math.sin %5 : vector<8x16xf32>
    %8 = arith.mulf %1, %6 : vector<8x16xf32>
    %9 = arith.mulf %2, %7 : vector<8x16xf32>
    %10 = arith.subf %8, %9 : vector<8x16xf32>
    %11 = arith.mulf %1, %7 : vector<8x16xf32>
    %12 = arith.mulf %2, %6 : vector<8x16xf32>
    %13 = arith.addf %11, %12 : vector<8x16xf32>
    %c0_3 = arith.constant 0 : index
    %c0_4 = arith.constant 0 : index
    %14 = vector.load %arg2[%c0_3, %c0_4] : memref<8x1xf32, #tpu.memory_space<vmem>>, vector<8x1xf32>
    %c0_5 = arith.constant 0 : index
    %c0_6 = arith.constant 0 : index
    %15 = vector.load %arg5[%c0_5, %c0_6] : memref<1x16xf32, #tpu.memory_space<vmem>>, vector<1x16xf32>
    %16 = vector.broadcast %14 : vector<8x1xf32> to vector<8x16xf32>
    %17 = vector.broadcast %15 : vector<1x16xf32> to vector<8x16xf32>
    %18 = arith.mulf %16, %17 : vector<8x16xf32>
    %19 = math.sin %18 : vector<8x16xf32>
    %20 = math.cos %18 : vector<8x16xf32>
    %21 = arith.truncf %19 : vector<8x16xf32> to vector<8x16xbf16>
    %c0_7 = arith.constant 0 : index
    %c0_8 = arith.constant 0 : index
    %22 = vector.load %arg6[%c0_7, %c0_8] : memref<16x32xbf16, #tpu.memory_space<vmem>>, vector<16x32xbf16>
    %cst_9 = arith.constant dense<0.000000e+00> : vector<8x32xf32>
    %23 = tpu.matmul %21, %22, %cst_9 {dimension_numbers = #tpu.dot_dimension_numbers<[1], [0], [0], [1], [0, 0, 1, 1], [], []>} : vector<8x16xbf16>, vector<16x32xbf16>, vector<8x32xf32> -> vector<8x32xf32>
    %24 = arith.truncf %20 : vector<8x16xf32> to vector<8x16xbf16>
    %c0_10 = arith.constant 0 : index
    %c0_11 = arith.constant 0 : index
    %25 = vector.load %arg7[%c0_10, %c0_11] : memref<16x32xbf16, #tpu.memory_space<vmem>>, vector<16x32xbf16>
    %cst_12 = arith.constant dense<0.000000e+00> : vector<8x32xf32>
    %26 = tpu.matmul %24, %25, %cst_12 {dimension_numbers = #tpu.dot_dimension_numbers<[1], [0], [0], [1], [0, 0, 1, 1], [], []>} : vector<8x16xbf16>, vector<16x32xbf16>, vector<8x32xf32> -> vector<8x32xf32>
    %27 = arith.addf %23, %26 : vector<8x32xf32>
    %c0_13 = arith.constant 0 : index
    %c0_14 = arith.constant 0 : index
    %28 = vector.load %arg8[%c0_13, %c0_14] : memref<1x32xf32, #tpu.memory_space<vmem>>, vector<1x32xf32>
    %29 = vector.broadcast %28 : vector<1x32xf32> to vector<8x32xf32>
    %30 = arith.addf %27, %29 : vector<8x32xf32>
    %cst_15 = arith.constant 5.000000e-01 : f32
    %31 = vector.broadcast %cst_15 : f32 to vector<8x32xf32>
    %32 = arith.mulf %31, %30 : vector<8x32xf32>
    %cst_16 = arith.constant 0.707106769 : f32
    %33 = vector.broadcast %cst_16 : f32 to vector<8x32xf32>
    %34 = arith.mulf %30, %33 : vector<8x32xf32>
    %35 = math.absf %34 : vector<8x32xf32>
    %cst_17 = arith.constant 0.327591091 : f32
    %36 = vector.broadcast %cst_17 : f32 to vector<8x32xf32>
    %37 = arith.mulf %36, %35 : vector<8x32xf32>
    %cst_18 = arith.constant 1.000000e+00 : f32
    %38 = vector.broadcast %cst_18 : f32 to vector<8x32xf32>
    %39 = arith.addf %38, %37 : vector<8x32xf32>
    %cst_19 = arith.constant 1.000000e+00 : f32
    %40 = vector.broadcast %cst_19 : f32 to vector<8x32xf32>
    %41 = arith.divf %40, %39 : vector<8x32xf32>
    %cst_20 = arith.constant 1.06140542 : f32
    %42 = vector.broadcast %cst_20 : f32 to vector<8x32xf32>
    %43 = arith.mulf %42, %41 : vector<8x32xf32>
    %cst_21 = arith.constant -1.45315206 : f32
    %44 = vector.broadcast %cst_21 : f32 to vector<8x32xf32>
    %45 = arith.addf %43, %44 : vector<8x32xf32>
    %46 = arith.mulf %45, %41 : vector<8x32xf32>
    %cst_22 = arith.constant 1.42141378 : f32
    %47 = vector.broadcast %cst_22 : f32 to vector<8x32xf32>
    %48 = arith.addf %46, %47 : vector<8x32xf32>
    %49 = arith.mulf %48, %41 : vector<8x32xf32>
    %cst_23 = arith.constant -0.284496725 : f32
    %50 = vector.broadcast %cst_23 : f32 to vector<8x32xf32>
    %51 = arith.addf %49, %50 : vector<8x32xf32>
    %52 = arith.mulf %51, %41 : vector<8x32xf32>
    %cst_24 = arith.constant 0.254829586 : f32
    %53 = vector.broadcast %cst_24 : f32 to vector<8x32xf32>
    %54 = arith.addf %52, %53 : vector<8x32xf32>
    %55 = arith.mulf %54, %41 : vector<8x32xf32>
    %cst_25 = arith.constant 0.000000e+00 : f32
    %56 = vector.broadcast %cst_25 : f32 to vector<8x32xf32>
    %57 = arith.subf %56, %35 : vector<8x32xf32>
    %58 = arith.mulf %57, %35 : vector<8x32xf32>
    %59 = math.exp %58 : vector<8x32xf32>
    %60 = arith.mulf %55, %59 : vector<8x32xf32>
    %cst_26 = arith.constant 1.000000e+00 : f32
    %61 = vector.broadcast %cst_26 : f32 to vector<8x32xf32>
    %62 = arith.subf %61, %60 : vector<8x32xf32>
    %cst_27 = arith.constant 0.000000e+00 : f32
    %63 = vector.broadcast %cst_27 : f32 to vector<8x32xf32>
    %64 = arith.cmpf olt, %34, %63 : vector<8x32xf32>
    %cst_28 = arith.constant 0.000000e+00 : f32
    %65 = vector.broadcast %cst_28 : f32 to vector<8x32xf32>
    %66 = arith.subf %65, %62 : vector<8x32xf32>
    %67 = arith.select %64, %66, %62 : vector<8x32xi1>, vector<8x32xf32>
    %cst_29 = arith.constant 1.000000e+00 : f32
    %68 = vector.broadcast %cst_29 : f32 to vector<8x32xf32>
    %69 = arith.addf %68, %67 : vector<8x32xf32>
    %70 = arith.mulf %32, %69 : vector<8x32xf32>
    %71 = arith.truncf %70 : vector<8x32xf32> to vector<8x32xbf16>
    %c0_30 = arith.constant 0 : index
    %c0_31 = arith.constant 0 : index
    %72 = vector.load %arg9[%c0_30, %c0_31] : memref<32x32xbf16, #tpu.memory_space<vmem>>, vector<32x32xbf16>
    %cst_32 = arith.constant dense<0.000000e+00> : vector<8x32xf32>
    %73 = tpu.matmul %71, %72, %cst_32 {dimension_numbers = #tpu.dot_dimension_numbers<[1], [0], [0], [1], [0, 0, 1, 1], [], []>} : vector<8x32xbf16>, vector<32x32xbf16>, vector<8x32xf32> -> vector<8x32xf32>
    %c0_33 = arith.constant 0 : index
    %c0_34 = arith.constant 0 : index
    %74 = vector.load %arg10[%c0_33, %c0_34] : memref<1x32xf32, #tpu.memory_space<vmem>>, vector<1x32xf32>
    %75 = vector.broadcast %74 : vector<1x32xf32> to vector<8x32xf32>
    %76 = arith.addf %73, %75 : vector<8x32xf32>
    %c0_35 = arith.constant 0 : index
    %c0_36 = arith.constant 0 : index
    %77 = vector.load %arg1[%c0_35, %c0_36] : memref<8x32xf32, #tpu.memory_space<vmem>>, vector<8x32xf32>
    %cst_37 = arith.constant dense<0.000000e+00> : vector<8xf32>
    %78 = vector.multi_reduction <add>, %77, %cst_37 [1] : vector<8x32xf32> to vector<8xf32>
    %79 = vector.shape_cast %78 : vector<8xf32> to vector<8x1xf32>
    %cst_38 = arith.constant 0.000000e+00 : f32
    %80 = vector.broadcast %cst_38 : f32 to vector<8x1xf32>
    %81 = arith.addf %80, %79 : vector<8x1xf32>
    %cst_39 = arith.constant dense<0.000000e+00> : vector<8xf32>
    %82 = vector.multi_reduction <add>, %76, %cst_39 [1] : vector<8x32xf32> to vector<8xf32>
    %83 = vector.shape_cast %82 : vector<8xf32> to vector<8x1xf32>
    %84 = arith.addf %81, %83 : vector<8x1xf32>
    %cst_40 = arith.constant dense<0.000000e+00> : vector<8xf32>
    %85 = vector.multi_reduction <add>, %10, %cst_40 [1] : vector<8x16xf32> to vector<8xf32>
    %86 = vector.shape_cast %85 : vector<8xf32> to vector<8x1xf32>
    %87 = arith.addf %84, %86 : vector<8x1xf32>
    %cst_41 = arith.constant dense<0.000000e+00> : vector<8xf32>
    %88 = vector.multi_reduction <add>, %13, %cst_41 [1] : vector<8x16xf32> to vector<8xf32>
    %89 = vector.shape_cast %88 : vector<8xf32> to vector<8x1xf32>
    %90 = arith.addf %87, %89 : vector<8x1xf32>
    %cst_42 = arith.constant 0.010416667 : f32
    %91 = vector.broadcast %cst_42 : f32 to vector<8x1xf32>
    %92 = arith.mulf %90, %91 : vector<8x1xf32>
    %93 = vector.broadcast %92 : vector<8x1xf32> to vector<8x32xf32>
    %94 = arith.subf %77, %93 : vector<8x32xf32>
    %95 = vector.broadcast %92 : vector<8x1xf32> to vector<8x32xf32>
    %96 = arith.subf %76, %95 : vector<8x32xf32>
    %97 = vector.broadcast %92 : vector<8x1xf32> to vector<8x16xf32>
    %98 = arith.subf %10, %97 : vector<8x16xf32>
    %99 = vector.broadcast %92 : vector<8x1xf32> to vector<8x16xf32>
    %100 = arith.subf %13, %99 : vector<8x16xf32>
    %101 = arith.mulf %94, %94 : vector<8x32xf32>
    %cst_43 = arith.constant dense<0.000000e+00> : vector<8xf32>
    %102 = vector.multi_reduction <add>, %101, %cst_43 [1] : vector<8x32xf32> to vector<8xf32>
    %103 = vector.shape_cast %102 : vector<8xf32> to vector<8x1xf32>
    %cst_44 = arith.constant 0.000000e+00 : f32
    %104 = vector.broadcast %cst_44 : f32 to vector<8x1xf32>
    %105 = arith.addf %104, %103 : vector<8x1xf32>
    %106 = arith.mulf %96, %96 : vector<8x32xf32>
    %cst_45 = arith.constant dense<0.000000e+00> : vector<8xf32>
    %107 = vector.multi_reduction <add>, %106, %cst_45 [1] : vector<8x32xf32> to vector<8xf32>
    %108 = vector.shape_cast %107 : vector<8xf32> to vector<8x1xf32>
    %109 = arith.addf %105, %108 : vector<8x1xf32>
    %110 = arith.mulf %98, %98 : vector<8x16xf32>
    %cst_46 = arith.constant dense<0.000000e+00> : vector<8xf32>
    %111 = vector.multi_reduction <add>, %110, %cst_46 [1] : vector<8x16xf32> to vector<8xf32>
    %112 = vector.shape_cast %111 : vector<8xf32> to vector<8x1xf32>
    %113 = arith.addf %109, %112 : vector<8x1xf32>
    %114 = arith.mulf %100, %100 : vector<8x16xf32>
    %cst_47 = arith.constant dense<0.000000e+00> : vector<8xf32>
    %115 = vector.multi_reduction <add>, %114, %cst_47 [1] : vector<8x16xf32> to vector<8xf32>
    %116 = vector.shape_cast %115 : vector<8xf32> to vector<8x1xf32>
    %117 = arith.addf %113, %116 : vector<8x1xf32>
    %cst_48 = arith.constant 0.010416667 : f32
    %118 = vector.broadcast %cst_48 : f32 to vector<8x1xf32>
    %119 = arith.mulf %117, %118 : vector<8x1xf32>
    %cst_49 = arith.constant 9.99999974E-6 : f32
    %120 = vector.broadcast %cst_49 : f32 to vector<8x1xf32>
    %121 = arith.addf %119, %120 : vector<8x1xf32>
    %122 = math.rsqrt %121 : vector<8x1xf32>
    %c0_50 = arith.constant 0 : index
    %c0_51 = arith.constant 0 : index
    %123 = vector.load %arg15[%c0_50, %c0_51] : memref<1x128xf32, #tpu.memory_space<vmem>>, vector<1x128xf32>
    %124 = vector.broadcast %122 : vector<8x1xf32> to vector<8x32xf32>
    %125 = arith.mulf %94, %124 : vector<8x32xf32>
    %126 = arith.truncf %125 : vector<8x32xf32> to vector<8x32xbf16>
    %c0_52 = arith.constant 0 : index
    %c0_53 = arith.constant 0 : index
    %127 = vector.load %arg11[%c0_52, %c0_53] : memref<32x128xbf16, #tpu.memory_space<vmem>>, vector<32x128xbf16>
    %cst_54 = arith.constant dense<0.000000e+00> : vector<8x128xf32>
    %128 = tpu.matmul %126, %127, %cst_54 {dimension_numbers = #tpu.dot_dimension_numbers<[1], [0], [0], [1], [0, 0, 1, 1], [], []>} : vector<8x32xbf16>, vector<32x128xbf16>, vector<8x128xf32> -> vector<8x128xf32>
    %129 = vector.broadcast %123 : vector<1x128xf32> to vector<8x128xf32>
    %130 = arith.addf %129, %128 : vector<8x128xf32>
    %131 = vector.broadcast %122 : vector<8x1xf32> to vector<8x32xf32>
    %132 = arith.mulf %96, %131 : vector<8x32xf32>
    %133 = arith.truncf %132 : vector<8x32xf32> to vector<8x32xbf16>
    %c0_55 = arith.constant 0 : index
    %c0_56 = arith.constant 0 : index
    %134 = vector.load %arg12[%c0_55, %c0_56] : memref<32x128xbf16, #tpu.memory_space<vmem>>, vector<32x128xbf16>
    %cst_57 = arith.constant dense<0.000000e+00> : vector<8x128xf32>
    %135 = tpu.matmul %133, %134, %cst_57 {dimension_numbers = #tpu.dot_dimension_numbers<[1], [0], [0], [1], [0, 0, 1, 1], [], []>} : vector<8x32xbf16>, vector<32x128xbf16>, vector<8x128xf32> -> vector<8x128xf32>
    %136 = arith.addf %130, %135 : vector<8x128xf32>
    %137 = vector.broadcast %122 : vector<8x1xf32> to vector<8x16xf32>
    %138 = arith.mulf %98, %137 : vector<8x16xf32>
    %139 = arith.truncf %138 : vector<8x16xf32> to vector<8x16xbf16>
    %c0_58 = arith.constant 0 : index
    %c0_59 = arith.constant 0 : index
    %140 = vector.load %arg13[%c0_58, %c0_59] : memref<16x128xbf16, #tpu.memory_space<vmem>>, vector<16x128xbf16>
    %cst_60 = arith.constant dense<0.000000e+00> : vector<8x128xf32>
    %141 = tpu.matmul %139, %140, %cst_60 {dimension_numbers = #tpu.dot_dimension_numbers<[1], [0], [0], [1], [0, 0, 1, 1], [], []>} : vector<8x16xbf16>, vector<16x128xbf16>, vector<8x128xf32> -> vector<8x128xf32>
    %142 = arith.addf %136, %141 : vector<8x128xf32>
    %143 = vector.broadcast %122 : vector<8x1xf32> to vector<8x16xf32>
    %144 = arith.mulf %100, %143 : vector<8x16xf32>
    %145 = arith.truncf %144 : vector<8x16xf32> to vector<8x16xbf16>
    %c0_61 = arith.constant 0 : index
    %c0_62 = arith.constant 0 : index
    %146 = vector.load %arg14[%c0_61, %c0_62] : memref<16x128xbf16, #tpu.memory_space<vmem>>, vector<16x128xbf16>
    %cst_63 = arith.constant dense<0.000000e+00> : vector<8x128xf32>
    %147 = tpu.matmul %145, %146, %cst_63 {dimension_numbers = #tpu.dot_dimension_numbers<[1], [0], [0], [1], [0, 0, 1, 1], [], []>} : vector<8x16xbf16>, vector<16x128xbf16>, vector<8x128xf32> -> vector<8x128xf32>
    %148 = arith.addf %142, %147 : vector<8x128xf32>
    %cst_64 = arith.constant 0.000000e+00 : f32
    %149 = vector.broadcast %cst_64 : f32 to vector<8x128xf32>
    %150 = arith.maximumf %148, %149 : vector<8x128xf32>
    %cst_65 = arith.constant dense<0.000000e+00> : vector<8xf32>
    %151 = vector.multi_reduction <add>, %150, %cst_65 [1] : vector<8x128xf32> to vector<8xf32>
    %152 = vector.shape_cast %151 : vector<8xf32> to vector<8x1xf32>
    %cst_66 = arith.constant 1.280000e+02 : f32
    %153 = vector.broadcast %cst_66 : f32 to vector<8x1xf32>
    %154 = arith.divf %152, %153 : vector<8x1xf32>
    %155 = vector.broadcast %154 : vector<8x1xf32> to vector<8x128xf32>
    %156 = arith.subf %150, %155 : vector<8x128xf32>
    %157 = arith.mulf %156, %156 : vector<8x128xf32>
    %cst_67 = arith.constant dense<0.000000e+00> : vector<8xf32>
    %158 = vector.multi_reduction <add>, %157, %cst_67 [1] : vector<8x128xf32> to vector<8xf32>
    %159 = vector.shape_cast %158 : vector<8xf32> to vector<8x1xf32>
    %cst_68 = arith.constant 1.280000e+02 : f32
    %160 = vector.broadcast %cst_68 : f32 to vector<8x1xf32>
    %161 = arith.divf %159, %160 : vector<8x1xf32>
    %cst_69 = arith.constant 9.99999974E-6 : f32
    %162 = vector.broadcast %cst_69 : f32 to vector<8x1xf32>
    %163 = arith.addf %161, %162 : vector<8x1xf32>
    %164 = math.rsqrt %163 : vector<8x1xf32>
    %165 = vector.broadcast %164 : vector<8x1xf32> to vector<8x128xf32>
    %166 = arith.mulf %156, %165 : vector<8x128xf32>
    %167 = arith.truncf %166 : vector<8x128xf32> to vector<8x128xbf16>
    %c0_70 = arith.constant 0 : index
    %c0_71 = arith.constant 0 : index
    %168 = vector.load %arg16[%c0_70, %c0_71] : memref<128x32xbf16, #tpu.memory_space<vmem>>, vector<128x32xbf16>
    %cst_72 = arith.constant dense<0.000000e+00> : vector<8x32xf32>
    %169 = tpu.matmul %167, %168, %cst_72 {dimension_numbers = #tpu.dot_dimension_numbers<[1], [0], [0], [1], [0, 0, 1, 1], [], []>} : vector<8x128xbf16>, vector<128x32xbf16>, vector<8x32xf32> -> vector<8x32xf32>
    %c0_73 = arith.constant 0 : index
    %c0_74 = arith.constant 0 : index
    %170 = vector.load %arg17[%c0_73, %c0_74] : memref<1x32xf32, #tpu.memory_space<vmem>>, vector<1x32xf32>
    %171 = vector.broadcast %170 : vector<1x32xf32> to vector<8x32xf32>
    %172 = arith.addf %169, %171 : vector<8x32xf32>
    %c0_75 = arith.constant 0 : index
    %c0_76 = arith.constant 0 : index
    %173 = vector.load %arg18[%c0_75, %c0_76] : memref<8x32xf32, #tpu.memory_space<vmem>>, vector<8x32xf32>
    tpu.vector_store %arg18[%c0_75, %c0_76], %172 {strides = array<i32>} : memref<8x32xf32, #tpu.memory_space<vmem>>, vector<8x32xf32>,
    return
  }
  func.func @transform_0(%arg0: i32) -> (i32, i32) {
    %c0_i32 = arith.constant 0 : i32
    %c0_i32_0 = arith.constant 0 : i32
    return %arg0, %c0_i32 : i32, i32
  }
  func.func @transform_1(%arg0: i32) -> (i32, i32) {
    %c0_i32 = arith.constant 0 : i32
    %c0_i32_0 = arith.constant 0 : i32
    return %arg0, %c0_i32 : i32, i32
  }
  func.func @transform_2(%arg0: i32) -> (i32, i32) {
    %c0_i32 = arith.constant 0 : i32
    %c0_i32_0 = arith.constant 0 : i32
    return %arg0, %c0_i32 : i32, i32
  }
  func.func @transform_3(%arg0: i32) -> (i32, i32) {
    %c0_i32 = arith.constant 0 : i32
    %c0_i32_0 = arith.constant 0 : i32
    return %arg0, %c0_i32 : i32, i32
  }
  func.func @transform_4(%arg0: i32) -> (i32, i32) {
    %c0_i32 = arith.constant 0 : i32
    %c0_i32_0 = arith.constant 0 : i32
    %c0_i32_1 = arith.constant 0 : i32
    return %c0_i32, %c0_i32_0 : i32, i32
  }
  func.func @transform_5(%arg0: i32) -> (i32, i32) {
    %c0_i32 = arith.constant 0 : i32
    %c0_i32_0 = arith.constant 0 : i32
    %c0_i32_1 = arith.constant 0 : i32
    return %c0_i32, %c0_i32_0 : i32, i32
  }
  func.func @transform_6(%arg0: i32) -> (i32, i32) {
    %c0_i32 = arith.constant 0 : i32
    %c0_i32_0 = arith.constant 0 : i32
    %c0_i32_1 = arith.constant 0 : i32
    return %c0_i32, %c0_i32_0 : i32, i32
  }
  func.func @transform_7(%arg0: i32) -> (i32, i32) {
    %c0_i32 = arith.constant 0 : i32
    %c0_i32_0 = arith.constant 0 : i32
    %c0_i32_1 = arith.constant 0 : i32
    return %c0_i32, %c0_i32_0 : i32, i32
  }
  func.func @transform_8(%arg0: i32) -> (i32, i32) {
    %c0_i32 = arith.constant 0 : i32
    %c0_i32_0 = arith.constant 0 : i32
    %c0_i32_1 = arith.constant 0 : i32
    return %c0_i32, %c0_i32_0 : i32, i32
  }
  func.func @transform_9(%arg0: i32) -> (i32, i32) {
    %c0_i32 = arith.constant 0 : i32
    %c0_i32_0 = arith.constant 0 : i32
    %c0_i32_1 = arith.constant 0 : i32
    return %c0_i32, %c0_i32_0 : i32, i32
  }
  func.func @transform_10(%arg0: i32) -> (i32, i32) {
    %c0_i32 = arith.constant 0 : i32
    %c0_i32_0 = arith.constant 0 : i32
    %c0_i32_1 = arith.constant 0 : i32
    return %c0_i32, %c0_i32_0 : i32, i32
  }
  func.func @transform_11(%arg0: i32) -> (i32, i32) {
    %c0_i32 = arith.constant 0 : i32
    %c0_i32_0 = arith.constant 0 : i32
    %c0_i32_1 = arith.constant 0 : i32
    return %c0_i32, %c0_i32_0 : i32, i32
  }
  func.func @transform_12(%arg0: i32) -> (i32, i32) {
    %c0_i32 = arith.constant 0 : i32
    %c0_i32_0 = arith.constant 0 : i32
    %c0_i32_1 = arith.constant 0 : i32
    return %c0_i32, %c0_i32_0 : i32, i32
  }
  func.func @transform_13(%arg0: i32) -> (i32, i32) {
    %c0_i32 = arith.constant 0 : i32
    %c0_i32_0 = arith.constant 0 : i32
    %c0_i32_1 = arith.constant 0 : i32
    return %c0_i32, %c0_i32_0 : i32, i32
  }
  func.func @transform_14(%arg0: i32) -> (i32, i32) {
    %c0_i32 = arith.constant 0 : i32
    %c0_i32_0 = arith.constant 0 : i32
    %c0_i32_1 = arith.constant 0 : i32
    return %c0_i32, %c0_i32_0 : i32, i32
  }
  func.func @transform_15(%arg0: i32) -> (i32, i32) {
    %c0_i32 = arith.constant 0 : i32
    %c0_i32_0 = arith.constant 0 : i32
    %c0_i32_1 = arith.constant 0 : i32
    return %c0_i32, %c0_i32_0 : i32, i32
  }
  func.func @transform_16(%arg0: i32) -> (i32, i32) {
    %c0_i32 = arith.constant 0 : i32
    %c0_i32_0 = arith.constant 0 : i32
    %c0_i32_1 = arith.constant 0 : i32
    return %c0_i32, %c0_i32_0 : i32, i32
  }
  func.func @transform_17(%arg0: i32) -> (i32, i32) {
    %c0_i32 = arith.constant 0 : i32
    %c0_i32_0 = arith.constant 0 : i32
    return %arg0, %c0_i32 : i32, i32
  }
}

module attributes {stable_mosaic.version = 11 : i64} {
  func.func @ce_denoiser_kernel(%arg0: i32, %arg1: memref<8x32xf32, #tpu.memory_space<vmem>>, %arg2: memref<8x1xf32, #tpu.memory_space<vmem>>, %arg3: memref<8x32xf32, #tpu.memory_space<vmem>>, %arg4: memref<8x16xf32, #tpu.memory_space<vmem>>, %arg5: memref<1x16xf32, #tpu.memory_space<vmem>>, %arg6: memref<16x32xbf16, #tpu.memory_space<vmem>>, %arg7: memref<16x32xbf16, #tpu.memory_space<vmem>>, %arg8: memref<1x32xf32, #tpu.memory_space<vmem>>, %arg9: memref<32x32xbf16, #tpu.memory_space<vmem>>, %arg10: memref<1x32xf32, #tpu.memory_space<vmem>>, %arg11: memref<32x128xbf16, #tpu.memory_space<vmem>>, %arg12: memref<32x128xbf16, #tpu.memory_space<vmem>>, %arg13: memref<16x128xbf16, #tpu.memory_space<vmem>>, %arg14: memref<16x128xbf16, #tpu.memory_space<vmem>>, %arg15: memref<1x128xf32, #tpu.memory_space<vmem>>, %arg16: memref<128x32xbf16, #tpu.memory_space<vmem>>, %arg17: memref<1x32xf32, #tpu.memory_space<vmem>>, %arg18: memref<8x32xf32, #tpu.memory_space<vmem>>) attributes {dimension_semantics = [#tpu.dimension_semantics<parallel>], iteration_bounds = array<i64: 1>, scalar_prefetch = 0 : i64, scratch_operands = 0 : i64, tpu.core_type = #tpu.core_type<tc>, window_params = [{transform_indices = @transform_0, window_bounds = array<i64: 8, 32>}, {transform_indices = @transform_1, window_bounds = array<i64: 8, 1>}, {transform_indices = @transform_2, window_bounds = array<i64: 8, 32>}, {transform_indices = @transform_3, window_bounds = array<i64: 8, 16>}, {pipeline_mode = #tpu.pipeline_mode<synchronous>, transform_indices = @transform_4, window_bounds = array<i64: 1, 16>}, {pipeline_mode = #tpu.pipeline_mode<synchronous>, transform_indices = @transform_5, window_bounds = array<i64: 16, 32>}, {pipeline_mode = #tpu.pipeline_mode<synchronous>, transform_indices = @transform_6, window_bounds = array<i64: 16, 32>}, {pipeline_mode = #tpu.pipeline_mode<synchronous>, transform_indices = @transform_7, window_bounds = array<i64: 1, 32>}, {pipeline_mode = #tpu.pipeline_mode<synchronous>, transform_indices = @transform_8, window_bounds = array<i64: 32, 32>}, {pipeline_mode = #tpu.pipeline_mode<synchronous>, transform_indices = @transform_9, window_bounds = array<i64: 1, 32>}, {pipeline_mode = #tpu.pipeline_mode<synchronous>, transform_indices = @transform_10, window_bounds = array<i64: 32, 128>}, {pipeline_mode = #tpu.pipeline_mode<synchronous>, transform_indices = @transform_11, window_bounds = array<i64: 32, 128>}, {pipeline_mode = #tpu.pipeline_mode<synchronous>, transform_indices = @transform_12, window_bounds = array<i64: 16, 128>}, {pipeline_mode = #tpu.pipeline_mode<synchronous>, transform_indices = @transform_13, window_bounds = array<i64: 16, 128>}, {pipeline_mode = #tpu.pipeline_mode<synchronous>, transform_indices = @transform_14, window_bounds = array<i64: 1, 128>}, {pipeline_mode = #tpu.pipeline_mode<synchronous>, transform_indices = @transform_15, window_bounds = array<i64: 128, 32>}, {pipeline_mode = #tpu.pipeline_mode<synchronous>, transform_indices = @transform_16, window_bounds = array<i64: 1, 32>}, {transform_indices = @transform_17, window_bounds = array<i64: 8, 32>}]} {
    %c0 = arith.constant 0 : index
    %c0_0 = arith.constant 0 : index
    %0 = vector.load %arg3[%c0, %c0_0] : memref<8x32xf32, #tpu.memory_space<vmem>>, vector<8x32xf32>
    %1 = vector.extract_strided_slice %0 {offsets = [0, 0], sizes = [8, 16], strides = [1, 1]} : vector<8x32xf32> to vector<8x16xf32>
    %2 = vector.extract_strided_slice %0 {offsets = [0, 16], sizes = [8, 16], strides = [1, 1]} : vector<8x32xf32> to vector<8x16xf32>
    %c0_1 = arith.constant 0 : index
    %c0_2 = arith.constant 0 : index
    %3 = vector.load %arg4[%c0_1, %c0_2] : memref<8x16xf32, #tpu.memory_space<vmem>>, vector<8x16xf32>
    %cst = arith.constant 4.56958914 : f32
    %4 = vector.broadcast %cst : f32 to vector<8x16xf32>
    %5 = arith.mulf %3, %4 : vector<8x16xf32>
    %6 = math.cos %5 : vector<8x16xf32>
    %7 = math.sin %5 : vector<8x16xf32>
    %8 = arith.mulf %1, %6 : vector<8x16xf32>
    %9 = arith.mulf %2, %7 : vector<8x16xf32>
    %10 = arith.subf %8, %9 : vector<8x16xf32>
    %11 = arith.mulf %1, %7 : vector<8x16xf32>
    %12 = arith.mulf %2, %6 : vector<8x16xf32>
    %13 = arith.addf %11, %12 : vector<8x16xf32>
    %c0_3 = arith.constant 0 : index
    %c0_4 = arith.constant 0 : index
    %14 = vector.load %arg2[%c0_3, %c0_4] : memref<8x1xf32, #tpu.memory_space<vmem>>, vector<8x1xf32>
    %c0_5 = arith.constant 0 : index
    %c0_6 = arith.constant 0 : index
    %15 = vector.load %arg5[%c0_5, %c0_6] : memref<1x16xf32, #tpu.memory_space<vmem>>, vector<1x16xf32>
    %16 = vector.broadcast %14 : vector<8x1xf32> to vector<8x16xf32>
    %17 = vector.broadcast %15 : vector<1x16xf32> to vector<8x16xf32>
    %18 = arith.mulf %16, %17 : vector<8x16xf32>
    %19 = math.sin %18 : vector<8x16xf32>
    %20 = math.cos %18 : vector<8x16xf32>
    %21 = arith.truncf %19 : vector<8x16xf32> to vector<8x16xbf16>
    %c0_7 = arith.constant 0 : index
    %c0_8 = arith.constant 0 : index
    %22 = vector.load %arg6[%c0_7, %c0_8] : memref<16x32xbf16, #tpu.memory_space<vmem>>, vector<16x32xbf16>
    %cst_9 = arith.constant dense<0.000000e+00> : vector<8x32xf32>
    %23 = tpu.matmul %21, %22, %cst_9 {dimension_numbers = #tpu.dot_dimension_numbers<[1], [0], [0], [1], [0, 0, 1, 1], [], []>} : vector<8x16xbf16>, vector<16x32xbf16>, vector<8x32xf32> -> vector<8x32xf32>
    %24 = arith.truncf %20 : vector<8x16xf32> to vector<8x16xbf16>
    %c0_10 = arith.constant 0 : index
    %c0_11 = arith.constant 0 : index
    %25 = vector.load %arg7[%c0_10, %c0_11] : memref<16x32xbf16, #tpu.memory_space<vmem>>, vector<16x32xbf16>
    %cst_12 = arith.constant dense<0.000000e+00> : vector<8x32xf32>
    %26 = tpu.matmul %24, %25, %cst_12 {dimension_numbers = #tpu.dot_dimension_numbers<[1], [0], [0], [1], [0, 0, 1, 1], [], []>} : vector<8x16xbf16>, vector<16x32xbf16>, vector<8x32xf32> -> vector<8x32xf32>
    %27 = arith.addf %23, %26 : vector<8x32xf32>
    %c0_13 = arith.constant 0 : index
    %c0_14 = arith.constant 0 : index
    %28 = vector.load %arg8[%c0_13, %c0_14] : memref<1x32xf32, #tpu.memory_space<vmem>>, vector<1x32xf32>
    %29 = vector.broadcast %28 : vector<1x32xf32> to vector<8x32xf32>
    %30 = arith.addf %27, %29 : vector<8x32xf32>
    %cst_15 = arith.constant 5.000000e-01 : f32
    %31 = vector.broadcast %cst_15 : f32 to vector<8x32xf32>
    %32 = arith.mulf %31, %30 : vector<8x32xf32>
    %cst_16 = arith.constant 0.707106769 : f32
    %33 = vector.broadcast %cst_16 : f32 to vector<8x32xf32>
    %34 = arith.mulf %30, %33 : vector<8x32xf32>
    %35 = math.absf %34 : vector<8x32xf32>
    %cst_17 = arith.constant 0.327591091 : f32
    %36 = vector.broadcast %cst_17 : f32 to vector<8x32xf32>
    %37 = arith.mulf %36, %35 : vector<8x32xf32>
    %cst_18 = arith.constant 1.000000e+00 : f32
    %38 = vector.broadcast %cst_18 : f32 to vector<8x32xf32>
    %39 = arith.addf %38, %37 : vector<8x32xf32>
    %cst_19 = arith.constant 1.000000e+00 : f32
    %40 = vector.broadcast %cst_19 : f32 to vector<8x32xf32>
    %41 = arith.divf %40, %39 : vector<8x32xf32>
    %cst_20 = arith.constant 1.06140542 : f32
    %42 = vector.broadcast %cst_20 : f32 to vector<8x32xf32>
    %43 = arith.mulf %42, %41 : vector<8x32xf32>
    %cst_21 = arith.constant -1.45315206 : f32
    %44 = vector.broadcast %cst_21 : f32 to vector<8x32xf32>
    %45 = arith.addf %43, %44 : vector<8x32xf32>
    %46 = arith.mulf %45, %41 : vector<8x32xf32>
    %cst_22 = arith.constant 1.42141378 : f32
    %47 = vector.broadcast %cst_22 : f32 to vector<8x32xf32>
    %48 = arith.addf %46, %47 : vector<8x32xf32>
    %49 = arith.mulf %48, %41 : vector<8x32xf32>
    %cst_23 = arith.constant -0.284496725 : f32
    %50 = vector.broadcast %cst_23 : f32 to vector<8x32xf32>
    %51 = arith.addf %49, %50 : vector<8x32xf32>
    %52 = arith.mulf %51, %41 : vector<8x32xf32>
    %cst_24 = arith.constant 0.254829586 : f32
    %53 = vector.broadcast %cst_24 : f32 to vector<8x32xf32>
    %54 = arith.addf %52, %53 : vector<8x32xf32>
    %55 = arith.mulf %54, %41 : vector<8x32xf32>
    %cst_25 = arith.constant 0.000000e+00 : f32
    %56 = vector.broadcast %cst_25 : f32 to vector<8x32xf32>
    %57 = arith.subf %56, %35 : vector<8x32xf32>
    %58 = arith.mulf %57, %35 : vector<8x32xf32>
    %59 = math.exp %58 : vector<8x32xf32>
    %60 = arith.mulf %55, %59 : vector<8x32xf32>
    %cst_26 = arith.constant 1.000000e+00 : f32
    %61 = vector.broadcast %cst_26 : f32 to vector<8x32xf32>
    %62 = arith.subf %61, %60 : vector<8x32xf32>
    %cst_27 = arith.constant 0.000000e+00 : f32
    %63 = vector.broadcast %cst_27 : f32 to vector<8x32xf32>
    %64 = arith.cmpf olt, %34, %63 : vector<8x32xf32>
    %cst_28 = arith.constant 0.000000e+00 : f32
    %65 = vector.broadcast %cst_28 : f32 to vector<8x32xf32>
    %66 = arith.subf %65, %62 : vector<8x32xf32>
    %67 = arith.select %64, %66, %62 : vector<8x32xi1>, vector<8x32xf32>
    %cst_29 = arith.constant 1.000000e+00 : f32
    %68 = vector.broadcast %cst_29 : f32 to vector<8x32xf32>
    %69 = arith.addf %68, %67 : vector<8x32xf32>
    %70 = arith.mulf %32, %69 : vector<8x32xf32>
    %71 = arith.truncf %70 : vector<8x32xf32> to vector<8x32xbf16>
    %c0_30 = arith.constant 0 : index
    %c0_31 = arith.constant 0 : index
    %72 = vector.load %arg9[%c0_30, %c0_31] : memref<32x32xbf16, #tpu.memory_space<vmem>>, vector<32x32xbf16>
    %cst_32 = arith.constant dense<0.000000e+00> : vector<8x32xf32>
    %73 = tpu.matmul %71, %72, %cst_32 {dimension_numbers = #tpu.dot_dimension_numbers<[1], [0], [0], [1], [0, 0, 1, 1], [], []>} : vector<8x32xbf16>, vector<32x32xbf16>, vector<8x32xf32> -> vector<8x32xf32>
    %c0_33 = arith.constant 0 : index
    %c0_34 = arith.constant 0 : index
    %74 = vector.load %arg10[%c0_33, %c0_34] : memref<1x32xf32, #tpu.memory_space<vmem>>, vector<1x32xf32>
    %75 = vector.broadcast %74 : vector<1x32xf32> to vector<8x32xf32>
    %76 = arith.addf %73, %75 : vector<8x32xf32>
    %c0_35 = arith.constant 0 : index
    %c0_36 = arith.constant 0 : index
    %77 = vector.load %arg1[%c0_35, %c0_36] : memref<8x32xf32, #tpu.memory_space<vmem>>, vector<8x32xf32>
    %cst_37 = arith.constant dense<0.000000e+00> : vector<8xf32>
    %78 = vector.multi_reduction <add>, %77, %cst_37 [1] : vector<8x32xf32> to vector<8xf32>
    %79 = vector.shape_cast %78 : vector<8xf32> to vector<8x1xf32>
    %cst_38 = arith.constant 0.000000e+00 : f32
    %80 = vector.broadcast %cst_38 : f32 to vector<8x1xf32>
    %81 = arith.addf %80, %79 : vector<8x1xf32>
    %cst_39 = arith.constant dense<0.000000e+00> : vector<8xf32>
    %82 = vector.multi_reduction <add>, %76, %cst_39 [1] : vector<8x32xf32> to vector<8xf32>
    %83 = vector.shape_cast %82 : vector<8xf32> to vector<8x1xf32>
    %84 = arith.addf %81, %83 : vector<8x1xf32>
    %cst_40 = arith.constant dense<0.000000e+00> : vector<8xf32>
    %85 = vector.multi_reduction <add>, %10, %cst_40 [1] : vector<8x16xf32> to vector<8xf32>
    %86 = vector.shape_cast %85 : vector<8xf32> to vector<8x1xf32>
    %87 = arith.addf %84, %86 : vector<8x1xf32>
    %cst_41 = arith.constant dense<0.000000e+00> : vector<8xf32>
    %88 = vector.multi_reduction <add>, %13, %cst_41 [1] : vector<8x16xf32> to vector<8xf32>
    %89 = vector.shape_cast %88 : vector<8xf32> to vector<8x1xf32>
    %90 = arith.addf %87, %89 : vector<8x1xf32>
    %cst_42 = arith.constant 0.010416667 : f32
    %91 = vector.broadcast %cst_42 : f32 to vector<8x1xf32>
    %92 = arith.mulf %90, %91 : vector<8x1xf32>
    %93 = vector.broadcast %92 : vector<8x1xf32> to vector<8x32xf32>
    %94 = arith.subf %77, %93 : vector<8x32xf32>
    %95 = vector.broadcast %92 : vector<8x1xf32> to vector<8x32xf32>
    %96 = arith.subf %76, %95 : vector<8x32xf32>
    %97 = vector.broadcast %92 : vector<8x1xf32> to vector<8x16xf32>
    %98 = arith.subf %10, %97 : vector<8x16xf32>
    %99 = vector.broadcast %92 : vector<8x1xf32> to vector<8x16xf32>
    %100 = arith.subf %13, %99 : vector<8x16xf32>
    %101 = arith.mulf %94, %94 : vector<8x32xf32>
    %cst_43 = arith.constant dense<0.000000e+00> : vector<8xf32>
    %102 = vector.multi_reduction <add>, %101, %cst_43 [1] : vector<8x32xf32> to vector<8xf32>
    %103 = vector.shape_cast %102 : vector<8xf32> to vector<8x1xf32>
    %cst_44 = arith.constant 0.000000e+00 : f32
    %104 = vector.broadcast %cst_44 : f32 to vector<8x1xf32>
    %105 = arith.addf %104, %103 : vector<8x1xf32>
    %106 = arith.mulf %96, %96 : vector<8x32xf32>
    %cst_45 = arith.constant dense<0.000000e+00> : vector<8xf32>
    %107 = vector.multi_reduction <add>, %106, %cst_45 [1] : vector<8x32xf32> to vector<8xf32>
    %108 = vector.shape_cast %107 : vector<8xf32> to vector<8x1xf32>
    %109 = arith.addf %105, %108 : vector<8x1xf32>
    %110 = arith.mulf %98, %98 : vector<8x16xf32>
    %cst_46 = arith.constant dense<0.000000e+00> : vector<8xf32>
    %111 = vector.multi_reduction <add>, %110, %cst_46 [1] : vector<8x16xf32> to vector<8xf32>
    %112 = vector.shape_cast %111 : vector<8xf32> to vector<8x1xf32>
    %113 = arith.addf %109, %112 : vector<8x1xf32>
    %114 = arith.mulf %100, %100 : vector<8x16xf32>
    %cst_47 = arith.constant dense<0.000000e+00> : vector<8xf32>
    %115 = vector.multi_reduction <add>, %114, %cst_47 [1] : vector<8x16xf32> to vector<8xf32>
    %116 = vector.shape_cast %115 : vector<8xf32> to vector<8x1xf32>
    %117 = arith.addf %113, %116 : vector<8x1xf32>
    %cst_48 = arith.constant 0.010416667 : f32
    %118 = vector.broadcast %cst_48 : f32 to vector<8x1xf32>
    %119 = arith.mulf %117, %118 : vector<8x1xf32>
    %cst_49 = arith.constant 9.99999974E-6 : f32
    %120 = vector.broadcast %cst_49 : f32 to vector<8x1xf32>
    %121 = arith.addf %119, %120 : vector<8x1xf32>
    %122 = math.rsqrt %121 : vector<8x1xf32>
    %c0_50 = arith.constant 0 : index
    %c0_51 = arith.constant 0 : index
    %123 = vector.load %arg15[%c0_50, %c0_51] : memref<1x128xf32, #tpu.memory_space<vmem>>, vector<1x128xf32>
    %124 = vector.broadcast %122 : vector<8x1xf32> to vector<8x32xf32>
    %125 = arith.mulf %94, %124 : vector<8x32xf32>
    %126 = arith.truncf %125 : vector<8x32xf32> to vector<8x32xbf16>
    %c0_52 = arith.constant 0 : index
    %c0_53 = arith.constant 0 : index
    %127 = vector.load %arg11[%c0_52, %c0_53] : memref<32x128xbf16, #tpu.memory_space<vmem>>, vector<32x128xbf16>
    %cst_54 = arith.constant dense<0.000000e+00> : vector<8x128xf32>
    %128 = tpu.matmul %126, %127, %cst_54 {dimension_numbers = #tpu.dot_dimension_numbers<[1], [0], [0], [1], [0, 0, 1, 1], [], []>} : vector<8x32xbf16>, vector<32x128xbf16>, vector<8x128xf32> -> vector<8x128xf32>
    %129 = vector.broadcast %123 : vector<1x128xf32> to vector<8x128xf32>
    %130 = arith.addf %129, %128 : vector<8x128xf32>
    %131 = vector.broadcast %122 : vector<8x1xf32> to vector<8x32xf32>
    %132 = arith.mulf %96, %131 : vector<8x32xf32>
    %133 = arith.truncf %132 : vector<8x32xf32> to vector<8x32xbf16>
    %c0_55 = arith.constant 0 : index
    %c0_56 = arith.constant 0 : index
    %134 = vector.load %arg12[%c0_55, %c0_56] : memref<32x128xbf16, #tpu.memory_space<vmem>>, vector<32x128xbf16>
    %cst_57 = arith.constant dense<0.000000e+00> : vector<8x128xf32>
    %135 = tpu.matmul %133, %134, %cst_57 {dimension_numbers = #tpu.dot_dimension_numbers<[1], [0], [0], [1], [0, 0, 1, 1], [], []>} : vector<8x32xbf16>, vector<32x128xbf16>, vector<8x128xf32> -> vector<8x128xf32>
    %136 = arith.addf %130, %135 : vector<8x128xf32>
    %137 = vector.broadcast %122 : vector<8x1xf32> to vector<8x16xf32>
    %138 = arith.mulf %98, %137 : vector<8x16xf32>
    %139 = arith.truncf %138 : vector<8x16xf32> to vector<8x16xbf16>
    %c0_58 = arith.constant 0 : index
    %c0_59 = arith.constant 0 : index
    %140 = vector.load %arg13[%c0_58, %c0_59] : memref<16x128xbf16, #tpu.memory_space<vmem>>, vector<16x128xbf16>
    %cst_60 = arith.constant dense<0.000000e+00> : vector<8x128xf32>
    %141 = tpu.matmul %139, %140, %cst_60 {dimension_numbers = #tpu.dot_dimension_numbers<[1], [0], [0], [1], [0, 0, 1, 1], [], []>} : vector<8x16xbf16>, vector<16x128xbf16>, vector<8x128xf32> -> vector<8x128xf32>
    %142 = arith.addf %136, %141 : vector<8x128xf32>
    %143 = vector.broadcast %122 : vector<8x1xf32> to vector<8x16xf32>
    %144 = arith.mulf %100, %143 : vector<8x16xf32>
    %145 = arith.truncf %144 : vector<8x16xf32> to vector<8x16xbf16>
    %c0_61 = arith.constant 0 : index
    %c0_62 = arith.constant 0 : index
    %146 = vector.load %arg14[%c0_61, %c0_62] : memref<16x128xbf16, #tpu.memory_space<vmem>>, vector<16x128xbf16>
    %cst_63 = arith.constant dense<0.000000e+00> : vector<8x128xf32>
    %147 = tpu.matmul %145, %146, %cst_63 {dimension_numbers = #tpu.dot_dimension_numbers<[1], [0], [0], [1], [0, 0, 1, 1], [], []>} : vector<8x16xbf16>, vector<16x128xbf16>, vector<8x128xf32> -> vector<8x128xf32>
    %148 = arith.addf %142, %147 : vector<8x128xf32>
    %cst_64 = arith.constant 0.000000e+00 : f32
    %149 = vector.broadcast %cst_64 : f32 to vector<8x128xf32>
    %150 = arith.maximumf %148, %149 : vector<8x128xf32>
    %cst_65 = arith.constant dense<0.000000e+00> : vector<8xf32>
    %151 = vector.multi_reduction <add>, %150, %cst_65 [1] : vector<8x128xf32> to vector<8xf32>
    %152 = vector.shape_cast %151 : vector<8xf32> to vector<8x1xf32>
    %cst_66 = arith.constant 1.280000e+02 : f32
    %153 = vector.broadcast %cst_66 : f32 to vector<8x1xf32>
    %154 = arith.divf %152, %153 : vector<8x1xf32>
    %155 = vector.broadcast %154 : vector<8x1xf32> to vector<8x128xf32>
    %156 = arith.subf %150, %155 : vector<8x128xf32>
    %157 = arith.mulf %156, %156 : vector<8x128xf32>
    %cst_67 = arith.constant dense<0.000000e+00> : vector<8xf32>
    %158 = vector.multi_reduction <add>, %157, %cst_67 [1] : vector<8x128xf32> to vector<8xf32>
    %159 = vector.shape_cast %158 : vector<8xf32> to vector<8x1xf32>
    %cst_68 = arith.constant 1.280000e+02 : f32
    %160 = vector.broadcast %cst_68 : f32 to vector<8x1xf32>
    %161 = arith.divf %159, %160 : vector<8x1xf32>
    %cst_69 = arith.constant 9.99999974E-6 : f32
    %162 = vector.broadcast %cst_69 : f32 to vector<8x1xf32>
    %163 = arith.addf %161, %162 : vector<8x1xf32>
    %164 = math.rsqrt %163 : vector<8x1xf32>
    %165 = vector.broadcast %164 : vector<8x1xf32> to vector<8x128xf32>
    %166 = arith.mulf %156, %165 : vector<8x128xf32>
    %167 = arith.truncf %166 : vector<8x128xf32> to vector<8x128xbf16>
    %c0_70 = arith.constant 0 : index
    %c0_71 = arith.constant 0 : index
    %168 = vector.load %arg16[%c0_70, %c0_71] : memref<128x32xbf16, #tpu.memory_space<vmem>>, vector<128x32xbf16>
    %cst_72 = arith.constant dense<0.000000e+00> : vector<8x32xf32>
    %169 = tpu.matmul %167, %168, %cst_72 {dimension_numbers = #tpu.dot_dimension_numbers<[1], [0], [0], [1], [0, 0, 1, 1], [], []>} : vector<8x128xbf16>, vector<128x32xbf16>, vector<8x32xf32> -> vector<8x32xf32>
    %c0_73 = arith.constant 0 : index
    %c0_74 = arith.constant 0 : index
    %170 = vector.load %arg17[%c0_73, %c0_74] : memref<1x32xf32, #tpu.memory_space<vmem>>, vector<1x32xf32>
    %171 = vector.broadcast %170 : vector<1x32xf32> to vector<8x32xf32>
    %172 = arith.addf %169, %171 : vector<8x32xf32>
    %c0_75 = arith.constant 0 : index
    %c0_76 = arith.constant 0 : index
    %173 = vector.load %arg18[%c0_75, %c0_76] : memref<8x32xf32, #tpu.memory_space<vmem>>, vector<8x32xf32>
    tpu.vector_store %arg18[%c0_75, %c0_76], %172 {strides = array<i32>} : memref<8x32xf32, #tpu.memory_space<vmem>>, vector<8x32xf32>,
    return
  }
  func.func @transform_0(%arg0: i32) -> (i32, i32) {
    %c0_i32 = arith.constant 0 : i32
    %c0_i32_0 = arith.constant 0 : i32
    return %arg0, %c0_i32 : i32, i32
  }
  func.func @transform_1(%arg0: i32) -> (i32, i32) {
    %c0_i32 = arith.constant 0 : i32
    %c0_i32_0 = arith.constant 0 : i32
    return %arg0, %c0_i32 : i32, i32
  }
  func.func @transform_2(%arg0: i32) -> (i32, i32) {
    %c0_i32 = arith.constant 0 : i32
    %c0_i32_0 = arith.constant 0 : i32
    return %arg0, %c0_i32 : i32, i32
  }
  func.func @transform_3(%arg0: i32) -> (i32, i32) {
    %c0_i32 = arith.constant 0 : i32
    %c0_i32_0 = arith.constant 0 : i32
    return %arg0, %c0_i32 : i32, i32
  }
  func.func @transform_4(%arg0: i32) -> (i32, i32) {
    %c0_i32 = arith.constant 0 : i32
    %c0_i32_0 = arith.constant 0 : i32
    %c0_i32_1 = arith.constant 0 : i32
    return %c0_i32, %c0_i32_0 : i32, i32
  }
  func.func @transform_5(%arg0: i32) -> (i32, i32) {
    %c0_i32 = arith.constant 0 : i32
    %c0_i32_0 = arith.constant 0 : i32
    %c0_i32_1 = arith.constant 0 : i32
    return %c0_i32, %c0_i32_0 : i32, i32
  }
  func.func @transform_6(%arg0: i32) -> (i32, i32) {
    %c0_i32 = arith.constant 0 : i32
    %c0_i32_0 = arith.constant 0 : i32
    %c0_i32_1 = arith.constant 0 : i32
    return %c0_i32, %c0_i32_0 : i32, i32
  }
  func.func @transform_7(%arg0: i32) -> (i32, i32) {
    %c0_i32 = arith.constant 0 : i32
    %c0_i32_0 = arith.constant 0 : i32
    %c0_i32_1 = arith.constant 0 : i32
    return %c0_i32, %c0_i32_0 : i32, i32
  }
  func.func @transform_8(%arg0: i32) -> (i32, i32) {
    %c0_i32 = arith.constant 0 : i32
    %c0_i32_0 = arith.constant 0 : i32
    %c0_i32_1 = arith.constant 0 : i32
    return %c0_i32, %c0_i32_0 : i32, i32
  }
  func.func @transform_9(%arg0: i32) -> (i32, i32) {
    %c0_i32 = arith.constant 0 : i32
    %c0_i32_0 = arith.constant 0 : i32
    %c0_i32_1 = arith.constant 0 : i32
    return %c0_i32, %c0_i32_0 : i32, i32
  }
  func.func @transform_10(%arg0: i32) -> (i32, i32) {
    %c0_i32 = arith.constant 0 : i32
    %c0_i32_0 = arith.constant 0 : i32
    %c0_i32_1 = arith.constant 0 : i32
    return %c0_i32, %c0_i32_0 : i32, i32
  }
  func.func @transform_11(%arg0: i32) -> (i32, i32) {
    %c0_i32 = arith.constant 0 : i32
    %c0_i32_0 = arith.constant 0 : i32
    %c0_i32_1 = arith.constant 0 : i32
    return %c0_i32, %c0_i32_0 : i32, i32
  }
  func.func @transform_12(%arg0: i32) -> (i32, i32) {
    %c0_i32 = arith.constant 0 : i32
    %c0_i32_0 = arith.constant 0 : i32
    %c0_i32_1 = arith.constant 0 : i32
    return %c0_i32, %c0_i32_0 : i32, i32
  }
  func.func @transform_13(%arg0: i32) -> (i32, i32) {
    %c0_i32 = arith.constant 0 : i32
    %c0_i32_0 = arith.constant 0 : i32
    %c0_i32_1 = arith.constant 0 : i32
    return %c0_i32, %c0_i32_0 : i32, i32
  }
  func.func @transform_14(%arg0: i32) -> (i32, i32) {
    %c0_i32 = arith.constant 0 : i32
    %c0_i32_0 = arith.constant 0 : i32
    %c0_i32_1 = arith.constant 0 : i32
    return %c0_i32, %c0_i32_0 : i32, i32
  }
  func.func @transform_15(%arg0: i32) -> (i32, i32) {
    %c0_i32 = arith.constant 0 : i32
    %c0_i32_0 = arith.constant 0 : i32
    %c0_i32_1 = arith.constant 0 : i32
    return %c0_i32, %c0_i32_0 : i32, i32
  }
  func.func @transform_16(%arg0: i32) -> (i32, i32) {
    %c0_i32 = arith.constant 0 : i32
    %c0_i32_0 = arith.constant 0 : i32
    %c0_i32_1 = arith.constant 0 : i32
    return %c0_i32, %c0_i32_0 : i32, i32
  }
  func.func @transform_17(%arg0: i32) -> (i32, i32) {
    %c0_i32 = arith.constant 0 : i32
    %c0_i32_0 = arith.constant 0 : i32
    return %arg0, %c0_i32 : i32, i32
  }
}

</mosaic_0001>

<llo_original>
// kernel: tpu_custom_call.1
$region0: #{tpu_custom_call.1}
  #allocation0 [shape = 'u32[]', space=smem, size = 0x4, offset = 0x4, fixed_abs, tag = 'smem constant byte address 0x4 - core index']
  #allocation1 [shape = 'u32[144,128]{1,0:T(1,128)}', space=vmem, size = 0x12000, scoped, tag = 'internal scratch']
  %s0 = inlined_call_operand.vmem [shape: f32[8,32], index: 0, kind: input, shape index: {}]
  %s1 = inlined_call_operand.vmem [shape: f32[8,1], index: 1, kind: input, shape index: {}]
  %s2 = inlined_call_operand.vmem [shape: f32[8,32], index: 2, kind: input, shape index: {}]
  %s3 = inlined_call_operand.vmem [shape: f32[8,16], index: 3, kind: input, shape index: {}]
  %s4 = inlined_call_operand.vmem [shape: f32[1,16], index: 4, kind: input, shape index: {}]
  %s5 = inlined_call_operand.vmem [shape: bf16[16,32], index: 5, kind: input, shape index: {}]
  %s6 = inlined_call_operand.vmem [shape: bf16[16,32], index: 6, kind: input, shape index: {}]
  %s7 = inlined_call_operand.vmem [shape: f32[1,32], index: 7, kind: input, shape index: {}]
  %s8 = inlined_call_operand.vmem [shape: bf16[32,32], index: 8, kind: input, shape index: {}]
  %s9 = inlined_call_operand.vmem [shape: f32[1,32], index: 9, kind: input, shape index: {}]
  %s10 = inlined_call_operand.vmem [shape: bf16[32,128], index: 10, kind: input, shape index: {}]
  %s11 = inlined_call_operand.vmem [shape: bf16[32,128], index: 11, kind: input, shape index: {}]
  %s12 = inlined_call_operand.vmem [shape: bf16[16,128], index: 12, kind: input, shape index: {}]
  %s13 = inlined_call_operand.vmem [shape: bf16[16,128], index: 13, kind: input, shape index: {}]
  %s14 = inlined_call_operand.vmem [shape: f32[1,128], index: 14, kind: input, shape index: {}]
  %s15 = inlined_call_operand.vmem [shape: bf16[128,32], index: 15, kind: input, shape index: {}]
  %s16 = inlined_call_operand.vmem [shape: f32[1,32], index: 16, kind: input, shape index: {}]
  %s17 = inlined_call_operand.hbm [shape: f32[8,32], index: 17, kind: output, shape index: {}]
  %s18 = sld [smem:[#allocation0]]
  $region78: #{tpu_custom_call.1} parent=0
    _
  %s20 = ssub.s32 1, %s18
  %s21 = scalar_select 0, %s20, %s18
  $region1: #{tpu_custom_call.1} parent=0
    #allocation2 [shape = 'u8[4096]{0}', space=vmem, size = 0x1000, scoped, tag = 'output window, operand 0, single buffered']
    #allocation3 [shape = 's32[1]{0}', space=sflag, size = 0x4, scoped, tag = 'scoped memory for tpu_custom_call.1']
    %22 = vsyncpa [#allocation3], 0
    // Predicated region
    $region2: #{tpu_custom_call.1} parent=1 // pred_check
      _
    $region3: #{tpu_custom_call.1} parent=1 // pred_check_branch
      %24 = sbr.rel (0) target = $region5
    $region4: #{tpu_custom_call.1} parent=1 // pred_region
      _
    $region5: #{tpu_custom_call.1} parent=1 // pred_fallthru
      _
    // Predicated region
    $region6: #{tpu_custom_call.1} parent=1 // pred_check
      _
    $region7: #{tpu_custom_call.1} parent=1 // pred_check_branch
      %26 = sbr.rel (0) target = $region9
    $region8: #{tpu_custom_call.1} parent=1 // pred_region
      _
    $region9: #{tpu_custom_call.1} parent=1 // pred_fallthru
      _
    // Predicated region
    $region10: #{tpu_custom_call.1} parent=1 // pred_check
      _
    $region11: #{tpu_custom_call.1} parent=1 // pred_check_branch
      %28 = sbr.rel (0) target = $region13
    $region12: #{tpu_custom_call.1} parent=1 // pred_region
      _
    $region13: #{tpu_custom_call.1} parent=1 // pred_fallthru
      _
    // Predicated region
    $region14: #{tpu_custom_call.1} parent=1 // pred_check
      _
    $region15: #{tpu_custom_call.1} parent=1 // pred_check_branch
      %30 = sbr.rel (0) target = $region17
    $region16: #{tpu_custom_call.1} parent=1 // pred_region
      _
    $region17: #{tpu_custom_call.1} parent=1 // pred_fallthru
      _
    // Predicated region
    $region18: #{tpu_custom_call.1} parent=1 // pred_check
      _
    $region19: #{tpu_custom_call.1} parent=1 // pred_check_branch
      %32 = sbr.rel (0) target = $region21
    $region20: #{tpu_custom_call.1} parent=1 // pred_region
      _
    $region21: #{tpu_custom_call.1} parent=1 // pred_fallthru
      _
    // Predicated region
    $region22: #{tpu_custom_call.1} parent=1 // pred_check
      _
    $region23: #{tpu_custom_call.1} parent=1 // pred_check_branch
      %34 = sbr.rel (0) target = $region25
    $region24: #{tpu_custom_call.1} parent=1 // pred_region
      _
    $region25: #{tpu_custom_call.1} parent=1 // pred_fallthru
      _
    // Predicated region
    $region26: #{tpu_custom_call.1} parent=1 // pred_check
      _
    $region27: #{tpu_custom_call.1} parent=1 // pred_check_branch
      %36 = sbr.rel (0) target = $region29
    $region28: #{tpu_custom_call.1} parent=1 // pred_region
      _
    $region29: #{tpu_custom_call.1} parent=1 // pred_fallthru
      _
    // Predicated region
    $region30: #{tpu_custom_call.1} parent=1 // pred_check
      _
    $region31: #{tpu_custom_call.1} parent=1 // pred_check_branch
      %38 = sbr.rel (0) target = $region33
    $region32: #{tpu_custom_call.1} parent=1 // pred_region
      _
    $region33: #{tpu_custom_call.1} parent=1 // pred_fallthru
      _
    // Predicated region
    $region34: #{tpu_custom_call.1} parent=1 // pred_check
      _
    $region35: #{tpu_custom_call.1} parent=1 // pred_check_branch
      %40 = sbr.rel (0) target = $region37
    $region36: #{tpu_custom_call.1} parent=1 // pred_region
      _
    $region37: #{tpu_custom_call.1} parent=1 // pred_fallthru
      _
    // Predicated region
    $region38: #{tpu_custom_call.1} parent=1 // pred_check
      _
    $region39: #{tpu_custom_call.1} parent=1 // pred_check_branch
      %42 = sbr.rel (0) target = $region41
    $region40: #{tpu_custom_call.1} parent=1 // pred_region
      _
    $region41: #{tpu_custom_call.1} parent=1 // pred_fallthru
      _
    // Predicated region
    $region42: #{tpu_custom_call.1} parent=1 // pred_check
      _
    $region43: #{tpu_custom_call.1} parent=1 // pred_check_branch
      %44 = sbr.rel (0) target = $region45
    $region44: #{tpu_custom_call.1} parent=1 // pred_region
      _
    $region45: #{tpu_custom_call.1} parent=1 // pred_fallthru
      _
    // Predicated region
    $region46: #{tpu_custom_call.1} parent=1 // pred_check
      _
    $region47: #{tpu_custom_call.1} parent=1 // pred_check_branch
      %46 = sbr.rel (0) target = $region49
    $region48: #{tpu_custom_call.1} parent=1 // pred_region
      _
    $region49: #{tpu_custom_call.1} parent=1 // pred_fallthru
      _
    // Predicated region
    $region50: #{tpu_custom_call.1} parent=1 // pred_check
      _
    $region51: #{tpu_custom_call.1} parent=1 // pred_check_branch
      %48 = sbr.rel (0) target = $region53
    $region52: #{tpu_custom_call.1} parent=1 // pred_region
      _
    $region53: #{tpu_custom_call.1} parent=1 // pred_fallthru
      _
    // Predicated region
    $region54: #{tpu_custom_call.1} parent=1 // pred_check
      _
    $region55: #{tpu_custom_call.1} parent=1 // pred_check_branch
      %50 = sbr.rel (0) target = $region57
    $region56: #{tpu_custom_call.1} parent=1 // pred_region
      _
    $region57: #{tpu_custom_call.1} parent=1 // pred_fallthru
      _
    // Predicated region
    $region58: #{tpu_custom_call.1} parent=1 // pred_check
      _
    $region59: #{tpu_custom_call.1} parent=1 // pred_check_branch
      %52 = sbr.rel (0) target = $region61
    $region60: #{tpu_custom_call.1} parent=1 // pred_region
      _
    $region61: #{tpu_custom_call.1} parent=1 // pred_fallthru
      _
    // Predicated region
    $region62: #{tpu_custom_call.1} parent=1 // pred_check
      _
    $region63: #{tpu_custom_call.1} parent=1 // pred_check_branch
      %54 = sbr.rel (0) target = $region65
    $region64: #{tpu_custom_call.1} parent=1 // pred_region
      _
    $region65: #{tpu_custom_call.1} parent=1 // pred_fallthru
      _
    // Predicated region
    $region66: #{tpu_custom_call.1} parent=1 // pred_check
      _
    $region67: #{tpu_custom_call.1} parent=1 // pred_check_branch
      %56 = sbr.rel (0) target = $region69
    $region68: #{tpu_custom_call.1} parent=1 // pred_region
      _
    $region69: #{tpu_custom_call.1} parent=1 // pred_fallthru
      _
    %v58 = vld [vmem:[%s2] sm:$0xff]
    %v59 = vld [vmem:[%s3] sm:$0xff]
    %v60 = vmul.f32 %v59, 4.569589
    %v61 = vand.u32 2147483647, %v60
    %vm62 = vcmp.le.f32.partialorder %v61, 0.7853982
    %vm63 = vcmp.lt.s32.totalorder %v60, 0
    %v64 = vand.u32 %v60, 2139095040
    %v65 = vshrl.u32 %v64, 23
    %v66 = vsub.s32 %v65, 127
    %v67 = vand.u32 2147483647, %v60
    %v68 = vand.u32 %v67, 8388607
    %v69 = vor.u32 %v68, 8388608
    %v70 = vsub.s32 0, %v69
    %v71 = vadd.s32 %v66, 1
    %vm72 = vcmp.gt.s32.totalorder %v71, 0
    %v73 = vsel %vm72, %v71, 0
    %v74 = vshrl.u32 %v73, 5
    %v75 = vand.u32 %v73, 31
    %v76 = vsub.s32 32, %v75
    %v77 = vshrl.u32 683565275, %v76
    %v78 = vshll.u32 683565275, %v75
    %v79 = vshrl.u32 2475754826, %v76
    %v80 = vor.u32 %v78, %v79
    %v81 = vshll.u32 2475754826, %v75
    %v82 = vshrl.u32 2131351028, %v76
    %v83 = vor.u32 %v81, %v82
    %v84 = vshll.u32 2131351028, %v75
    %v85 = vshrl.u32 2102212464, %v76
    %v86 = vor.u32 %v84, %v85
    %v87 = vshll.u32 2102212464, %v75
    %v88 = vshrl.u32 920167782, %v76
    %v89 = vor.u32 %v87, %v88
    %v90 = vshll.u32 920167782, %v75
    %v91 = vshrl.u32 1326507024, %v76
    %v92 = vor.u32 %v90, %v91
    %vm93 = vcmp.lt.s32.totalorder %v74, 1
    %vm94 = vcmp.lt.s32.totalorder %v74, 2
    %vm95 = vcmp.lt.s32.totalorder %v74, 3
    %vm96 = vcmp.lt.s32.totalorder %v74, 4
    %v97 = vsel %vm93, %v77, %v80
    %v98 = vsel %vm96, %v86, 2102212464
    %v99 = vsel %vm95, %v83, %v98
    %v100 = vsel %vm94, %v97, %v99
    %v101 = vsel %vm93, %v80, %v83
    %v102 = vsel %vm96, %v89, 920167782
    %v103 = vsel %vm95, %v86, %v102
    %v104 = vsel %vm94, %v101, %v103
    %v105 = vsel %vm93, %v83, %v86
    %v106 = vsel %vm96, %v92, 1326507024
    %v107 = vsel %vm95, %v89, %v106
    %v108 = vsel %vm94, %v105, %v107
    %v109 = vshll.u32 %v69, 8
    %v110 = vmul.u32.u64.compose %v109, %v108
    %v111 = vextract.low.u32 %v110
    %v112 = vextract.high.u32 %v110
    %v113 = vmul.u32.u64.compose %v109, %v104
    %v114 = vextract.low.u32 %v113
    %v115 = vextract.high.u32 %v113
    %v116 = vmul.u32 %v109, %v100
    %v117 = vadd.s32 %v112, %v114
    %vm118 = vc.u32 %v112, %v114
    %v119 = vadd.s32 %v115, 1
    %v120 = vsel %vm118, %v119, %v115
    %v121 = vadd.s32 %v116, %v120
    %v122 = vadd.s32 %v121, 536870912
    %v123 = vshrl.u32 %v122, 30
    %v124 = vshll.u32 %v123, 30
    %v125 = vsub.s32 %v121, %v124
    %vm126 = vcmp.lt.s32.totalorder %v125, 0
    %v127 = vsub.s32 0, %v125
    %v128 = vsel %vm126, %v127, %v125
    %v129 = vclz %v128
    %v130 = vsub.s32 %v129, 2
    %vm131 = vcmp.gt.s32.totalorder 0, %v130
    %v132 = vsel %vm131, 0, %v130
    %v133 = vsub.s32 32, %v132
    %v134 = vshll.u32 %v125, %v132
    %v135 = vshrl.u32 %v117, %v133
    %v136 = vor.u32 %v134, %v135
    %v137 = vsub.s32 4294967266, %v132
    %v138 = vadd.s32 %v137, 127
    %v139 = vshll.u32 %v138, 23
    %v140 = vor.u32 4788187, %v139
    %v141 = vand.u32 2147483647, %v140
    %v143 = vcvt.s32.f32 %v136
    %v144 = vmul.f32 %v143, %v141
    %v145 = vxor.u32 %v144, 2147483648
    %v146 = vsel %vm63, %v145, %v144
    %v147 = vsub.s32 4, %v123
    %v148 = vsel %vm63, %v147, %v123
    %v149 = vsel %vm62, %v60, %v146
    %v150 = vsel %vm62, 0, %v148
    %v151 = vcosq.f32.pop %v149
    %v152 = vsinq.f32.pop %v149
    %vm153 = vweird.f32 %v60
    %v154 = vand.u32 %v150, 3
    %vm155 = vcmp.lt.s32.totalorder %v154, 2
    %vm156 = vcmp.eq.s32.totalorder %v154, 0
    %v157 = vxor.u32 %v152, 2147483648
    %v158 = vsel %vm156, %v151, %v157
    %vm159 = vcmp.eq.s32.totalorder %v154, 2
    %v160 = vxor.u32 %v151, 2147483648
    %v161 = vsel %vm159, %v160, %v152
    %v162 = vsel %vm155, %v158, %v161
    %v163 = vsel %vm153, nan, %v162
    %v164 = vand.u32 2147483647, %v60
    %vm165 = vcmp.le.f32.partialorder %v164, 0.7853982
    %vm166 = vcmp.lt.s32.totalorder %v60, 0
    %v167 = vand.u32 %v60, 2139095040
    %v168 = vshrl.u32 %v167, 23
    %v169 = vsub.s32 %v168, 127
    %v170 = vand.u32 2147483647, %v60
    %v171 = vand.u32 %v170, 8388607
    %v172 = vor.u32 %v171, 8388608
    %v173 = vsub.s32 0, %v172
    %v174 = vadd.s32 %v169, 1
    %vm175 = vcmp.gt.s32.totalorder %v174, 0
    %v176 = vsel %vm175, %v174, 0
    %v177 = vshrl.u32 %v176, 5
    %v178 = vand.u32 %v176, 31
    %v179 = vsub.s32 32, %v178
    %v180 = vshrl.u32 683565275, %v179
    %v181 = vshll.u32 683565275, %v178
    %v182 = vshrl.u32 2475754826, %v179
    %v183 = vor.u32 %v181, %v182
    %v184 = vshll.u32 2475754826, %v178
    %v185 = vshrl.u32 2131351028, %v179
    %v186 = vor.u32 %v184, %v185
    %v187 = vshll.u32 2131351028, %v178
    %v188 = vshrl.u32 2102212464, %v179
    %v189 = vor.u32 %v187, %v188
    %v190 = vshll.u32 2102212464, %v178
    %v191 = vshrl.u32 920167782, %v179
    %v192 = vor.u32 %v190, %v191
    %v193 = vshll.u32 920167782, %v178
    %v194 = vshrl.u32 1326507024, %v179
    %v195 = vor.u32 %v193, %v194
    %vm196 = vcmp.lt.s32.totalorder %v177, 1
    %vm197 = vcmp.lt.s32.totalorder %v177, 2
    %vm198 = vcmp.lt.s32.totalorder %v177, 3
    %vm199 = vcmp.lt.s32.totalorder %v177, 4
    %v200 = vsel %vm196, %v180, %v183
    %v201 = vsel %vm199, %v189, 2102212464
    %v202 = vsel %vm198, %v186, %v201
    %v203 = vsel %vm197, %v200, %v202
    %v204 = vsel %vm196, %v183, %v186
    %v205 = vsel %vm199, %v192, 920167782
    %v206 = vsel %vm198, %v189, %v205
    %v207 = vsel %vm197, %v204, %v206
    %v208 = vsel %vm196, %v186, %v189
    %v209 = vsel %vm199, %v195, 1326507024
    %v210 = vsel %vm198, %v192, %v209
    %v211 = vsel %vm197, %v208, %v210
    %v212 = vshll.u32 %v172, 8
    %v213 = vmul.u32.u64.compose %v212, %v211
    %v214 = vextract.low.u32 %v213
    %v215 = vextract.high.u32 %v213
    %v216 = vmul.u32.u64.compose %v212, %v207
    %v217 = vextract.low.u32 %v216
    %v218 = vextract.high.u32 %v216
    %v219 = vmul.u32 %v212, %v203
    %v220 = vadd.s32 %v215, %v217
    %vm221 = vc.u32 %v215, %v217
    %v222 = vadd.s32 %v218, 1
    %v223 = vsel %vm221, %v222, %v218
    %v224 = vadd.s32 %v219, %v223
    %v225 = vadd.s32 %v224, 536870912
    %v226 = vshrl.u32 %v225, 30
    %v227 = vshll.u32 %v226, 30
    %v228 = vsub.s32 %v224, %v227
    %vm229 = vcmp.lt.s32.totalorder %v228, 0
    %v230 = vsub.s32 0, %v228
    %v231 = vsel %vm229, %v230, %v228
    %v232 = vclz %v231
    %v233 = vsub.s32 %v232, 2
    %vm234 = vcmp.gt.s32.totalorder 0, %v233
    %v235 = vsel %vm234, 0, %v233
    %v236 = vsub.s32 32, %v235
    %v237 = vshll.u32 %v228, %v235
    %v238 = vshrl.u32 %v220, %v236
    %v239 = vor.u32 %v237, %v238
    %v240 = vsub.s32 4294967266, %v235
    %v241 = vadd.s32 %v240, 127
    %v242 = vshll.u32 %v241, 23
    %v243 = vor.u32 4788187, %v242
    %v244 = vand.u32 2147483647, %v243
    %v246 = vcvt.s32.f32 %v239
    %v247 = vmul.f32 %v246, %v244
    %v248 = vxor.u32 %v247, 2147483648
    %v249 = vsel %vm166, %v248, %v247
    %v250 = vsub.s32 4, %v226
    %v251 = vsel %vm166, %v250, %v226
    %v252 = vsel %vm165, %v60, %v249
    %v253 = vsel %vm165, 0, %v251
    %v254 = vcosq.f32.pop %v252
    %v255 = vsinq.f32.pop %v252
    %vm256 = vweird.f32 %v60
    %v257 = vadd.s32 %v253, 3
    %v258 = vand.u32 %v257, 3
    %vm259 = vcmp.lt.s32.totalorder %v258, 2
    %vm260 = vcmp.eq.s32.totalorder %v258, 0
    %v261 = vxor.u32 %v255, 2147483648
    %v262 = vsel %vm260, %v254, %v261
    %vm263 = vcmp.eq.s32.totalorder %v258, 2
    %v264 = vxor.u32 %v254, 2147483648
    %v265 = vsel %vm263, %v264, %v255
    %v266 = vsel %vm259, %v262, %v265
    %v267 = vsel %vm256, nan, %v266
    %v268 = vmul.f32 %v58, %v163
    %270 = vrot.lane.b32.xlu0 %v267, 16
    %v271 = vpop.permute.xlu0 %270
    %v273 = vmul.f32 %v58, %v271
    %275 = vrot.lane.b32.xlu0 %v273, 112
    %v276 = vpop.permute.xlu0 %275
    %v278 = vsub.f32 %v268, %v276
    %v279 = vmul.f32 %v58, %v267
    %281 = vrot.lane.b32.xlu0 %v163, 16
    %v282 = vpop.permute.xlu0 %281
    %v284 = vmul.f32 %v58, %v282
    %286 = vrot.lane.b32.xlu0 %v284, 112
    %v287 = vpop.permute.xlu0 %286
    %v289 = vadd.f32 %v279, %v287
    %v290 = vld [vmem:[%s1] sm:$0xff]
    %v291 = vld [vmem:[%s4] sm:$0x1]
    %293 = vset.pattern.permute.xlu0 0
    %294 = vperm.xlu0 %293, %v290
    %v295 = vpop.permute.xlu0 %294
    %v298 = vlaneseq
    %v299 = vshrl.u32 %v298, 7
    %v300 = vsub.s32 0, %v299
    %v301 = vrot.slane %v291, %v300
    %v303 = vmul.f32 %v295, %v301
    %v304 = vand.u32 2147483647, %v303
    %vm305 = vcmp.le.f32.partialorder %v304, 0.7853982
    %vm306 = vcmp.lt.s32.totalorder %v303, 0
    %v307 = vand.u32 %v303, 2139095040
    %v308 = vshrl.u32 %v307, 23
    %v309 = vsub.s32 %v308, 127
    %v310 = vand.u32 2147483647, %v303
    %v311 = vand.u32 %v310, 8388607
    %v312 = vor.u32 %v311, 8388608
    %v313 = vsub.s32 0, %v312
    %v314 = vadd.s32 %v309, 1
    %vm315 = vcmp.gt.s32.totalorder %v314, 0
    %v316 = vsel %vm315, %v314, 0
    %v317 = vshrl.u32 %v316, 5
    %v318 = vand.u32 %v316, 31
    %v319 = vsub.s32 32, %v318
    %v320 = vshrl.u32 683565275, %v319
    %v321 = vshll.u32 683565275, %v318
    %v322 = vshrl.u32 2475754826, %v319
    %v323 = vor.u32 %v321, %v322
    %v324 = vshll.u32 2475754826, %v318
    %v325 = vshrl.u32 2131351028, %v319
    %v326 = vor.u32 %v324, %v325
    %v327 = vshll.u32 2131351028, %v318
    %v328 = vshrl.u32 2102212464, %v319
    %v329 = vor.u32 %v327, %v328
    %v330 = vshll.u32 2102212464, %v318
    %v331 = vshrl.u32 920167782, %v319
    %v332 = vor.u32 %v330, %v331
    %v333 = vshll.u32 920167782, %v318
    %v334 = vshrl.u32 1326507024, %v319
    %v335 = vor.u32 %v333, %v334
    %vm336 = vcmp.lt.s32.totalorder %v317, 1
    %vm337 = vcmp.lt.s32.totalorder %v317, 2
    %vm338 = vcmp.lt.s32.totalorder %v317, 3
    %vm339 = vcmp.lt.s32.totalorder %v317, 4
    %v340 = vsel %vm336, %v320, %v323
    %v341 = vsel %vm339, %v329, 2102212464
    %v342 = vsel %vm338, %v326, %v341
    %v343 = vsel %vm337, %v340, %v342
    %v344 = vsel %vm336, %v323, %v326
    %v345 = vsel %vm339, %v332, 920167782
    %v346 = vsel %vm338, %v329, %v345
    %v347 = vsel %vm337, %v344, %v346
    %v348 = vsel %vm336, %v326, %v329
    %v349 = vsel %vm339, %v335, 1326507024
    %v350 = vsel %vm338, %v332, %v349
    %v351 = vsel %vm337, %v348, %v350
    %v352 = vshll.u32 %v312, 8
    %v353 = vmul.u32.u64.compose %v352, %v351
    %v354 = vextract.low.u32 %v353
    %v355 = vextract.high.u32 %v353
    %v356 = vmul.u32.u64.compose %v352, %v347
    %v357 = vextract.low.u32 %v356
    %v358 = vextract.high.u32 %v356
    %v359 = vmul.u32 %v352, %v343
    %v360 = vadd.s32 %v355, %v357
    %vm361 = vc.u32 %v355, %v357
    %v362 = vadd.s32 %v358, 1
    %v363 = vsel %vm361, %v362, %v358
    %v364 = vadd.s32 %v359, %v363
    %v365 = vadd.s32 %v364, 536870912
    %v366 = vshrl.u32 %v365, 30
    %v367 = vshll.u32 %v366, 30
    %v368 = vsub.s32 %v364, %v367
    %vm369 = vcmp.lt.s32.totalorder %v368, 0
    %v370 = vsub.s32 0, %v368
    %v371 = vsel %vm369, %v370, %v368
    %v372 = vclz %v371
    %v373 = vsub.s32 %v372, 2
    %vm374 = vcmp.gt.s32.totalorder 0, %v373
    %v375 = vsel %vm374, 0, %v373
    %v376 = vsub.s32 32, %v375
    %v377 = vshll.u32 %v368, %v375
    %v378 = vshrl.u32 %v360, %v376
    %v379 = vor.u32 %v377, %v378
    %v380 = vsub.s32 4294967266, %v375
    %v381 = vadd.s32 %v380, 127
    %v382 = vshll.u32 %v381, 23
    %v383 = vor.u32 4788187, %v382
    %v384 = vand.u32 2147483647, %v383
    %v386 = vcvt.s32.f32 %v379
    %v387 = vmul.f32 %v386, %v384
    %v388 = vxor.u32 %v387, 2147483648
    %v389 = vsel %vm306, %v388, %v387
    %v390 = vsub.s32 4, %v366
    %v391 = vsel %vm306, %v390, %v366
    %v392 = vsel %vm305, %v303, %v389
    %v393 = vsel %vm305, 0, %v391
    %v394 = vcosq.f32.pop %v392
    %v395 = vsinq.f32.pop %v392
    %vm396 = vweird.f32 %v303
    %v397 = vadd.s32 %v393, 3
    %v398 = vand.u32 %v397, 3
    %vm399 = vcmp.lt.s32.totalorder %v398, 2
    %vm400 = vcmp.eq.s32.totalorder %v398, 0
    %v401 = vxor.u32 %v395, 2147483648
    %v402 = vsel %vm400, %v394, %v401
    %vm403 = vcmp.eq.s32.totalorder %v398, 2
    %v404 = vxor.u32 %v394, 2147483648
    %v405 = vsel %vm403, %v404, %v395
    %v406 = vsel %vm399, %v402, %v405
    %v407 = vsel %vm396, nan, %v406
    %v408 = vand.u32 2147483647, %v303
    %vm409 = vcmp.le.f32.partialorder %v408, 0.7853982
    %vm410 = vcmp.lt.s32.totalorder %v303, 0
    %v411 = vand.u32 %v303, 2139095040
    %v412 = vshrl.u32 %v411, 23
    %v413 = vsub.s32 %v412, 127
    %v414 = vand.u32 2147483647, %v303
    %v415 = vand.u32 %v414, 8388607
    %v416 = vor.u32 %v415, 8388608
    %v417 = vsub.s32 0, %v416
    %v418 = vadd.s32 %v413, 1
    %vm419 = vcmp.gt.s32.totalorder %v418, 0
    %v420 = vsel %vm419, %v418, 0
    %v421 = vshrl.u32 %v420, 5
    %v422 = vand.u32 %v420, 31
    %v423 = vsub.s32 32, %v422
    %v424 = vshrl.u32 683565275, %v423
    %v425 = vshll.u32 683565275, %v422
    %v426 = vshrl.u32 2475754826, %v423
    %v427 = vor.u32 %v425, %v426
    %v428 = vshll.u32 2475754826, %v422
    %v429 = vshrl.u32 2131351028, %v423
    %v430 = vor.u32 %v428, %v429
    %v431 = vshll.u32 2131351028, %v422
    %v432 = vshrl.u32 2102212464, %v423
    %v433 = vor.u32 %v431, %v432
    %v434 = vshll.u32 2102212464, %v422
    %v435 = vshrl.u32 920167782, %v423
    %v436 = vor.u32 %v434, %v435
    %v437 = vshll.u32 920167782, %v422
    %v438 = vshrl.u32 1326507024, %v423
    %v439 = vor.u32 %v437, %v438
    %vm440 = vcmp.lt.s32.totalorder %v421, 1
    %vm441 = vcmp.lt.s32.totalorder %v421, 2
    %vm442 = vcmp.lt.s32.totalorder %v421, 3
    %vm443 = vcmp.lt.s32.totalorder %v421, 4
    %v444 = vsel %vm440, %v424, %v427
    %v445 = vsel %vm443, %v433, 2102212464
    %v446 = vsel %vm442, %v430, %v445
    %v447 = vsel %vm441, %v444, %v446
    %v448 = vsel %vm440, %v427, %v430
    %v449 = vsel %vm443, %v436, 920167782
    %v450 = vsel %vm442, %v433, %v449
    %v451 = vsel %vm441, %v448, %v450
    %v452 = vsel %vm440, %v430, %v433
    %v453 = vsel %vm443, %v439, 1326507024
    %v454 = vsel %vm442, %v436, %v453
    %v455 = vsel %vm441, %v452, %v454
    %v456 = vshll.u32 %v416, 8
    %v457 = vmul.u32.u64.compose %v456, %v455
    %v458 = vextract.low.u32 %v457
    %v459 = vextract.high.u32 %v457
    %v460 = vmul.u32.u64.compose %v456, %v451
    %v461 = vextract.low.u32 %v460
    %v462 = vextract.high.u32 %v460
    %v463 = vmul.u32 %v456, %v447
    %v464 = vadd.s32 %v459, %v461
    %vm465 = vc.u32 %v459, %v461
    %v466 = vadd.s32 %v462, 1
    %v467 = vsel %vm465, %v466, %v462
    %v468 = vadd.s32 %v463, %v467
    %v469 = vadd.s32 %v468, 536870912
    %v470 = vshrl.u32 %v469, 30
    %v471 = vshll.u32 %v470, 30
    %v472 = vsub.s32 %v468, %v471
    %vm473 = vcmp.lt.s32.totalorder %v472, 0
    %v474 = vsub.s32 0, %v472
    %v475 = vsel %vm473, %v474, %v472
    %v476 = vclz %v475
    %v477 = vsub.s32 %v476, 2
    %vm478 = vcmp.gt.s32.totalorder 0, %v477
    %v479 = vsel %vm478, 0, %v477
    %v480 = vsub.s32 32, %v479
    %v481 = vshll.u32 %v472, %v479
    %v482 = vshrl.u32 %v464, %v480
    %v483 = vor.u32 %v481, %v482
    %v484 = vsub.s32 4294967266, %v479
    %v485 = vadd.s32 %v484, 127
    %v486 = vshll.u32 %v485, 23
    %v487 = vor.u32 4788187, %v486
    %v488 = vand.u32 2147483647, %v487
    %v490 = vcvt.s32.f32 %v483
    %v491 = vmul.f32 %v490, %v488
    %v492 = vxor.u32 %v491, 2147483648
    %v493 = vsel %vm410, %v492, %v491
    %v494 = vsub.s32 4, %v470
    %v495 = vsel %vm410, %v494, %v470
    %v496 = vsel %vm409, %v303, %v493
    %v497 = vsel %vm409, 0, %v495
    %v498 = vcosq.f32.pop %v496
    %v499 = vsinq.f32.pop %v496
    %vm500 = vweird.f32 %v303
    %v501 = vand.u32 %v497, 3
    %vm502 = vcmp.lt.s32.totalorder %v501, 2
    %vm503 = vcmp.eq.s32.totalorder %v501, 0
    %v504 = vxor.u32 %v499, 2147483648
    %v505 = vsel %vm503, %v498, %v504
    %vm506 = vcmp.eq.s32.totalorder %v501, 2
    %v507 = vxor.u32 %v498, 2147483648
    %v508 = vsel %vm506, %v507, %v499
    %v509 = vsel %vm502, %v505, %v508
    %v510 = vsel %vm500, nan, %v509
    %v511 = vpack.c.bf16 %v407, %v407
    %v512 = vld [vmem:[%s5] sm:$0xf]
    %v513 = vld [vmem:[%s5 + $0x4] sm:$0xf]
    %v514 = vpack.c.bf16 %v510, %v510
    %v515 = vld [vmem:[%s6] sm:$0xf]
    %v516 = vld [vmem:[%s6 + $0x4] sm:$0xf]
    %v519 = vunpack.c.l.b16 %v515
    %v520 = vunpack.c.l.b16 %v516
    %v521 = vpack.c.b16 %v520, %v519
    %vm523 = vcmask 130048
    %v525 = vsel %vm523, %v514, 0
    %527 = vmatprep.subr.bf16.mxu0 0
    %528 = vmatpush1.bf16.msra.mxu0 %v521
    %529 = vmatprep.subr.bf16.mxu0 0
    %530 = vmatpush1.bf16.msra.mxu0 0
    %531 = vmatprep.subr.bf16.mxu0 0
    %532 = vmatpush1.bf16.msra.mxu0 0
    %533 = vmatprep.subr.bf16.mxu0 0
    %534 = vmatpush1.bf16.msra.mxu0 0
    %535 = vmatprep.subr.bf16.mxu0 0
    %536 = vmatpush1.bf16.msra.mxu0 0
    %537 = vmatprep.subr.bf16.mxu0 0
    %538 = vmatpush1.bf16.msra.mxu0 0
    %539 = vmatprep.subr.bf16.mxu0 0
    %540 = vmatpush1.bf16.msra.mxu0 0
    %541 = vmatprep.subr.bf16.mxu0 0
    %542 = vmatpush1.bf16.msra.mxu0 0
    %543 = vmatprep.subr.bf16.mxu0 0
    %544 = vmatpush1.bf16.msra.mxu0 0
    %545 = vmatprep.subr.bf16.mxu0 0
    %546 = vmatpush1.bf16.msra.mxu0 0
    %547 = vmatprep.subr.bf16.mxu0 0
    %548 = vmatpush1.bf16.msra.mxu0 0
    %549 = vmatprep.subr.bf16.mxu0 0
    %550 = vmatpush1.bf16.msra.mxu0 0
    %551 = vmatprep.subr.bf16.mxu0 0
    %552 = vmatpush1.bf16.msra.mxu0 0
    %553 = vmatprep.subr.bf16.mxu0 0
    %554 = vmatpush1.bf16.msra.mxu0 0
    %555 = vmatprep.subr.bf16.mxu0 0
    %556 = vmatpush1.bf16.msra.mxu0 0
    %557 = vmatprep.subr.bf16.mxu0 0
    %558 = vmatpush1.bf16.msra.mxu0 0
    %559 = vmatprep.mubr.bf16.mxu0 0
    %560 = vmatmul.mubr.bf16.gmra.mrb[0].mxu0 %v525
    %v561 = vpop.f32.mrb[0].mxu0
    %v562 = vadd.f32 0.0, %v561
    %v563 = vpop.f32.mrb[0].mxu0
    %v564 = vpop.f32.mrb[0].mxu0
    %v565 = vpop.f32.mrb[0].mxu0
    %566 = vdwg.mxu0
    %v569 = vunpack.c.l.b16 %v512
    %v570 = vunpack.c.l.b16 %v513
    %v571 = vpack.c.b16 %v570, %v569
    %v574 = vsel %vm523, %v511, 0
    %576 = vmatprep.subr.bf16.mxu0 0
    %577 = vmatpush1.bf16.msra.mxu0 %v571
    %578 = vmatprep.subr.bf16.mxu0 0
    %579 = vmatpush1.bf16.msra.mxu0 0
    %580 = vmatprep.subr.bf16.mxu0 0
    %581 = vmatpush1.bf16.msra.mxu0 0
    %582 = vmatprep.subr.bf16.mxu0 0
    %583 = vmatpush1.bf16.msra.mxu0 0
    %584 = vmatprep.subr.bf16.mxu0 0
    %585 = vmatpush1.bf16.msra.mxu0 0
    %586 = vmatprep.subr.bf16.mxu0 0
    %587 = vmatpush1.bf16.msra.mxu0 0
    %588 = vmatprep.subr.bf16.mxu0 0
    %589 = vmatpush1.bf16.msra.mxu0 0
    %590 = vmatprep.subr.bf16.mxu0 0
    %591 = vmatpush1.bf16.msra.mxu0 0
    %592 = vmatprep.subr.bf16.mxu0 0
    %593 = vmatpush1.bf16.msra.mxu0 0
    %594 = vmatprep.subr.bf16.mxu0 0
    %595 = vmatpush1.bf16.msra.mxu0 0
    %596 = vmatprep.subr.bf16.mxu0 0
    %597 = vmatpush1.bf16.msra.mxu0 0
    %598 = vmatprep.subr.bf16.mxu0 0
    %599 = vmatpush1.bf16.msra.mxu0 0
    %600 = vmatprep.subr.bf16.mxu0 0
    %601 = vmatpush1.bf16.msra.mxu0 0
    %602 = vmatprep.subr.bf16.mxu0 0
    %603 = vmatpush1.bf16.msra.mxu0 0
    %604 = vmatprep.subr.bf16.mxu0 0
    %605 = vmatpush1.bf16.msra.mxu0 0
    %606 = vmatprep.subr.bf16.mxu0 0
    %607 = vmatpush1.bf16.msra.mxu0 0
    %608 = vmatprep.mubr.bf16.mxu0 0
    %609 = vmatmul.mubr.bf16.gmra.mrb[0].mxu0 %v574
    %v610 = vpop.f32.mrb[0].mxu0
    %v611 = vadd.f32 %v562, %v610
    %v612 = vpop.f32.mrb[0].mxu0
    %v613 = vpop.f32.mrb[0].mxu0
    %v614 = vpop.f32.mrb[0].mxu0
    %615 = vdwg.mxu0
    %v616 = vld [vmem:[%s7] sm:$0x1]
    %v618 = vlaneseq
    %v619 = vshrl.u32 %v618, 7
    %v620 = vsub.s32 0, %v619
    %v621 = vrot.slane %v616, %v620
    %v623 = vadd.f32 %v611, %v621
    %v624 = vmul.f32 %v623, 0.5
    %v625 = vmul.f32 %v623, 0.70710677
    %v626 = vand.u32 2147483647, %v625
    %v627 = vmul.f32 %v626, 0.3275911
    %v628 = vadd.f32 %v627, 1.0
    %v629 = vrcp.pop %v628
    %v630 = vmul.f32 1.0, %v629
    %v631 = vmul.f32 %v630, 1.0614054
    %v632 = vadd.f32 %v631, -1.4531521
    %v633 = vmul.f32 %v632, %v630
    %v634 = vadd.f32 %v633, 1.4214138
    %v635 = vmul.f32 %v634, %v630
    %v636 = vadd.f32 %v635, -0.28449672
    %v637 = vmul.f32 %v636, %v630
    %v638 = vadd.f32 %v637, 0.2548296
    %v639 = vmul.f32 %v638, %v630
    %v640 = vsub.f32 0.0, %v626
    %v641 = vmul.f32 %v640, %v626
    %v642 = vmul.f32 %v641, 1.442695
    %v643 = vpow.pop %v642
    %v644 = vmul.f32 %v639, %v643
    %v645 = vsub.f32 1.0, %v644
    %vm646 = vcmp.lt.f32.partialorder %v625, 0.0
    %v647 = vsub.f32 0.0, %v645
    %v648 = vsel %vm646, %v647, %v645
    %v649 = vadd.f32 %v648, 1.0
    %v650 = vmul.f32 %v624, %v649
    %v651 = vpack.c.bf16 %v650, %v650
    %v652 = vld [vmem:[%s8] sm:$0xf]
    %v653 = vld [vmem:[%s8 + $0x4] sm:$0xf]
    %v654 = vld [vmem:[%s8 + $0x8] sm:$0xf]
    %v655 = vld [vmem:[%s8 + $0xc] sm:$0xf]
    %v656 = vld [vmem:[%s9] sm:$0x1]
    %v658 = vlaneseq
    %v659 = vshrl.u32 %v658, 7
    %v660 = vsub.s32 0, %v659
    %v661 = vrot.slane %v656, %v660
    %v667 = vunpack.c.l.b16 %v652
    %v668 = vunpack.c.l.b16 %v653
    %v669 = vunpack.c.l.b16 %v654
    %v670 = vunpack.c.l.b16 %v655
    %v671 = vpack.c.b16 %v668, %v667
    %v672 = vpack.c.b16 %v670, %v669
    %vm675 = vcmask 261120
    %v677 = vsel %vm675, %v651, 0
    %679 = vmatprep.subr.bf16.mxu0 0
    %680 = vmatpush1.bf16.msra.mxu0 %v671
    %681 = vmatprep.subr.bf16.mxu0 0
    %682 = vmatpush1.bf16.msra.mxu0 %v672
    %683 = vmatprep.subr.bf16.mxu0 0
    %684 = vmatpush1.bf16.msra.mxu0 0
    %685 = vmatprep.subr.bf16.mxu0 0
    %686 = vmatpush1.bf16.msra.mxu0 0
    %687 = vmatprep.subr.bf16.mxu0 0
    %688 = vmatpush1.bf16.msra.mxu0 0
    %689 = vmatprep.subr.bf16.mxu0 0
    %690 = vmatpush1.bf16.msra.mxu0 0
    %691 = vmatprep.subr.bf16.mxu0 0
    %692 = vmatpush1.bf16.msra.mxu0 0
    %693 = vmatprep.subr.bf16.mxu0 0
    %694 = vmatpush1.bf16.msra.mxu0 0
    %695 = vmatprep.subr.bf16.mxu0 0
    %696 = vmatpush1.bf16.msra.mxu0 0
    %697 = vmatprep.subr.bf16.mxu0 0
    %698 = vmatpush1.bf16.msra.mxu0 0
    %699 = vmatprep.subr.bf16.mxu0 0
    %700 = vmatpush1.bf16.msra.mxu0 0
    %701 = vmatprep.subr.bf16.mxu0 0
    %702 = vmatpush1.bf16.msra.mxu0 0
    %703 = vmatprep.subr.bf16.mxu0 0
    %704 = vmatpush1.bf16.msra.mxu0 0
    %705 = vmatprep.subr.bf16.mxu0 0
    %706 = vmatpush1.bf16.msra.mxu0 0
    %707 = vmatprep.subr.bf16.mxu0 0
    %708 = vmatpush1.bf16.msra.mxu0 0
    %709 = vmatprep.subr.bf16.mxu0 0
    %710 = vmatpush1.bf16.msra.mxu0 0
    %711 = vmatprep.mubr.bf16.mxu0 0
    %712 = vmatmul.mubr.bf16.gmra.mrb[0].mxu0 %v677
    %v713 = vpop.f32.mrb[0].mxu0
    %v714 = vadd.f32 %v661, %v713
    %v715 = vpop.f32.mrb[0].mxu0
    %v716 = vpop.f32.mrb[0].mxu0
    %v717 = vpop.f32.mrb[0].mxu0
    %718 = vdwg.mxu0
    %v719 = vld [vmem:[%s0] sm:$0xff]
    %v720 = vsel %vm675, %v719, 0.0
    %721 = vadd.xlane.f32.xlu0 %v720
    %v722 = vpop.xlane.xlu0 %721
    %v723 = vadd.f32 %v722, 0.0
    %v724 = vsel %vm675, %v714, 0.0
    %725 = vadd.xlane.f32.xlu0 %v724
    %v726 = vpop.xlane.xlu0 %725
    %v727 = vadd.f32 %v723, %v726
    %v728 = vsel %vm523, %v278, 0.0
    %729 = vadd.xlane.f32.xlu0 %v728
    %v730 = vpop.xlane.xlu0 %729
    %v731 = vadd.f32 %v727, %v730
    %v732 = vsel %vm523, %v289, 0.0
    %733 = vadd.xlane.f32.xlu0 %v732
    %v734 = vpop.xlane.xlu0 %733
    %v735 = vadd.f32 %v731, %v734
    %v736 = vmul.f32 %v735, 0.010416667
    %v737 = vsub.f32 %v719, %v736
    %v738 = vsub.f32 %v714, %v736
    %v739 = vsub.f32 %v278, %v736
    %v740 = vsub.f32 %v289, %v736
    %v741 = vmul.f32 %v737, %v737
    %v742 = vsel %vm675, %v741, 0.0
    %743 = vadd.xlane.f32.xlu0 %v742
    %v744 = vpop.xlane.xlu0 %743
    %v745 = vadd.f32 %v744, 0.0
    %v746 = vmul.f32 %v738, %v738
    %v747 = vsel %vm675, %v746, 0.0
    %748 = vadd.xlane.f32.xlu0 %v747
    %v749 = vpop.xlane.xlu0 %748
    %v750 = vadd.f32 %v745, %v749
    %v751 = vmul.f32 %v739, %v739
    %v752 = vsel %vm523, %v751, 0.0
    %753 = vadd.xlane.f32.xlu0 %v752
    %v754 = vpop.xlane.xlu0 %753
    %v755 = vadd.f32 %v750, %v754
    %v756 = vmul.f32 %v740, %v740
    %v757 = vsel %vm523, %v756, 0.0
    %758 = vadd.xlane.f32.xlu0 %v757
    %v759 = vpop.xlane.xlu0 %758
    %v760 = vadd.f32 %v755, %v759
    %v761 = vmul.f32 %v760, 0.010416667
    %v762 = vadd.f32 %v761, 1e-05
    %v763 = vrsqrt.pop %v762
    %v764 = vld [vmem:[%s14] sm:$0x1]
    %v765 = vmul.f32 %v737, %v763
    %v766 = vpack.c.bf16 %v765, %v765
    %v767 = vld [vmem:[%s10] sm:$0xf]
    %v768 = vld [vmem:[%s10 + $0x4] sm:$0xf]
    %v769 = vld [vmem:[%s10 + $0x8] sm:$0xf]
    %v770 = vld [vmem:[%s10 + $0xc] sm:$0xf]
    %v775 = vunpack.c.l.b16 %v767
    %v776 = vunpack.c.l.b16 %v768
    %v777 = vunpack.c.l.b16 %v769
    %v778 = vunpack.c.l.b16 %v770
    %v779 = vpack.c.b16 %v776, %v775
    %v780 = vpack.c.b16 %v778, %v777
    %v784 = vsel %vm675, %v766, 0
    %786 = vmatprep.subr.bf16.mxu0 0
    %787 = vmatpush1.bf16.msra.mxu0 %v779
    %788 = vmatprep.subr.bf16.mxu0 0
    %789 = vmatpush1.bf16.msra.mxu0 %v780
    %790 = vmatprep.subr.bf16.mxu0 0
    %791 = vmatpush1.bf16.msra.mxu0 0
    %792 = vmatprep.subr.bf16.mxu0 0
    %793 = vmatpush1.bf16.msra.mxu0 0
    %794 = vmatprep.subr.bf16.mxu0 0
    %795 = vmatpush1.bf16.msra.mxu0 0
    %796 = vmatprep.subr.bf16.mxu0 0
    %797 = vmatpush1.bf16.msra.mxu0 0
    %798 = vmatprep.subr.bf16.mxu0 0
    %799 = vmatpush1.bf16.msra.mxu0 0
    %800 = vmatprep.subr.bf16.mxu0 0
    %801 = vmatpush1.bf16.msra.mxu0 0
    %802 = vmatprep.subr.bf16.mxu0 0
    %803 = vmatpush1.bf16.msra.mxu0 0
    %804 = vmatprep.subr.bf16.mxu0 0
    %805 = vmatpush1.bf16.msra.mxu0 0
    %806 = vmatprep.subr.bf16.mxu0 0
    %807 = vmatpush1.bf16.msra.mxu0 0
    %808 = vmatprep.subr.bf16.mxu0 0
    %809 = vmatpush1.bf16.msra.mxu0 0
    %810 = vmatprep.subr.bf16.mxu0 0
    %811 = vmatpush1.bf16.msra.mxu0 0
    %812 = vmatprep.subr.bf16.mxu0 0
    %813 = vmatpush1.bf16.msra.mxu0 0
    %814 = vmatprep.subr.bf16.mxu0 0
    %815 = vmatpush1.bf16.msra.mxu0 0
    %816 = vmatprep.subr.bf16.mxu0 0
    %817 = vmatpush1.bf16.msra.mxu0 0
    %818 = vmatprep.mubr.bf16.mxu0 0
    %819 = vmatmul.mubr.bf16.gmra.mrb[0].mxu0 %v784
    %v820 = vpop.f32.mrb[0].mxu0
    %v821 = vadd.f32 0.0, %v820
    %v822 = vpop.f32.mrb[0].mxu0
    %v823 = vpop.f32.mrb[0].mxu0
    %v824 = vpop.f32.mrb[0].mxu0
    %825 = vdwg.mxu0
    %v827 = vlaneseq
    %v828 = vshrl.u32 %v827, 7
    %v829 = vsub.s32 0, %v828
    %v830 = vrot.slane %v764, %v829
    %v832 = vadd.f32 %v830, %v821
    %v833 = vmul.f32 %v738, %v763
    %v834 = vpack.c.bf16 %v833, %v833
    %v835 = vld [vmem:[%s11] sm:$0xf]
    %v836 = vld [vmem:[%s11 + $0x4] sm:$0xf]
    %v837 = vld [vmem:[%s11 + $0x8] sm:$0xf]
    %v838 = vld [vmem:[%s11 + $0xc] sm:$0xf]
    %v843 = vunpack.c.l.b16 %v835
    %v844 = vunpack.c.l.b16 %v836
    %v845 = vunpack.c.l.b16 %v837
    %v846 = vunpack.c.l.b16 %v838
    %v847 = vpack.c.b16 %v844, %v843
    %v848 = vpack.c.b16 %v846, %v845
    %v852 = vsel %vm675, %v834, 0
    %854 = vmatprep.subr.bf16.mxu0 0
    %855 = vmatpush1.bf16.msra.mxu0 %v847
    %856 = vmatprep.subr.bf16.mxu0 0
    %857 = vmatpush1.bf16.msra.mxu0 %v848
    %858 = vmatprep.subr.bf16.mxu0 0
    %859 = vmatpush1.bf16.msra.mxu0 0
    %860 = vmatprep.subr.bf16.mxu0 0
    %861 = vmatpush1.bf16.msra.mxu0 0
    %862 = vmatprep.subr.bf16.mxu0 0
    %863 = vmatpush1.bf16.msra.mxu0 0
    %864 = vmatprep.subr.bf16.mxu0 0
    %865 = vmatpush1.bf16.msra.mxu0 0
    %866 = vmatprep.subr.bf16.mxu0 0
    %867 = vmatpush1.bf16.msra.mxu0 0
    %868 = vmatprep.subr.bf16.mxu0 0
    %869 = vmatpush1.bf16.msra.mxu0 0
    %870 = vmatprep.subr.bf16.mxu0 0
    %871 = vmatpush1.bf16.msra.mxu0 0
    %872 = vmatprep.subr.bf16.mxu0 0
    %873 = vmatpush1.bf16.msra.mxu0 0
    %874 = vmatprep.subr.bf16.mxu0 0
    %875 = vmatpush1.bf16.msra.mxu0 0
    %876 = vmatprep.subr.bf16.mxu0 0
    %877 = vmatpush1.bf16.msra.mxu0 0
    %878 = vmatprep.subr.bf16.mxu0 0
    %879 = vmatpush1.bf16.msra.mxu0 0
    %880 = vmatprep.subr.bf16.mxu0 0
    %881 = vmatpush1.bf16.msra.mxu0 0
    %882 = vmatprep.subr.bf16.mxu0 0
    %883 = vmatpush1.bf16.msra.mxu0 0
    %884 = vmatprep.subr.bf16.mxu0 0
    %885 = vmatpush1.bf16.msra.mxu0 0
    %886 = vmatprep.mubr.bf16.mxu0 0
    %887 = vmatmul.mubr.bf16.gmra.mrb[0].mxu0 %v852
    %v888 = vpop.f32.mrb[0].mxu0
    %v889 = vadd.f32 0.0, %v888
    %v890 = vpop.f32.mrb[0].mxu0
    %v891 = vpop.f32.mrb[0].mxu0
    %v892 = vpop.f32.mrb[0].mxu0
    %893 = vdwg.mxu0
    %v894 = vadd.f32 %v832, %v889
    %v895 = vmul.f32 %v739, %v763
    %v896 = vpack.c.bf16 %v895, %v895
    %v897 = vld [vmem:[%s12] sm:$0xf]
    %v898 = vld [vmem:[%s12 + $0x4] sm:$0xf]
    %v901 = vunpack.c.l.b16 %v897
    %v902 = vunpack.c.l.b16 %v898
    %v903 = vpack.c.b16 %v902, %v901
    %v906 = vsel %vm523, %v896, 0
    %908 = vmatprep.subr.bf16.mxu0 0
    %909 = vmatpush1.bf16.msra.mxu0 %v903
    %910 = vmatprep.subr.bf16.mxu0 0
    %911 = vmatpush1.bf16.msra.mxu0 0
    %912 = vmatprep.subr.bf16.mxu0 0
    %913 = vmatpush1.bf16.msra.mxu0 0
    %914 = vmatprep.subr.bf16.mxu0 0
    %915 = vmatpush1.bf16.msra.mxu0 0
    %916 = vmatprep.subr.bf16.mxu0 0
    %917 = vmatpush1.bf16.msra.mxu0 0
    %918 = vmatprep.subr.bf16.mxu0 0
    %919 = vmatpush1.bf16.msra.mxu0 0
    %920 = vmatprep.subr.bf16.mxu0 0
    %921 = vmatpush1.bf16.msra.mxu0 0
    %922 = vmatprep.subr.bf16.mxu0 0
    %923 = vmatpush1.bf16.msra.mxu0 0
    %924 = vmatprep.subr.bf16.mxu0 0
    %925 = vmatpush1.bf16.msra.mxu0 0
    %926 = vmatprep.subr.bf16.mxu0 0
    %927 = vmatpush1.bf16.msra.mxu0 0
    %928 = vmatprep.subr.bf16.mxu0 0
    %929 = vmatpush1.bf16.msra.mxu0 0
    %930 = vmatprep.subr.bf16.mxu0 0
    %931 = vmatpush1.bf16.msra.mxu0 0
    %932 = vmatprep.subr.bf16.mxu0 0
    %933 = vmatpush1.bf16.msra.mxu0 0
    %934 = vmatprep.subr.bf16.mxu0 0
    %935 = vmatpush1.bf16.msra.mxu0 0
    %936 = vmatprep.subr.bf16.mxu0 0
    %937 = vmatpush1.bf16.msra.mxu0 0
    %938 = vmatprep.subr.bf16.mxu0 0
    %939 = vmatpush1.bf16.msra.mxu0 0
    %940 = vmatprep.mubr.bf16.mxu0 0
    %941 = vmatmul.mubr.bf16.gmra.mrb[0].mxu0 %v906
    %v942 = vpop.f32.mrb[0].mxu0
    %v943 = vadd.f32 0.0, %v942
    %v944 = vpop.f32.mrb[0].mxu0
    %v945 = vpop.f32.mrb[0].mxu0
    %v946 = vpop.f32.mrb[0].mxu0
    %947 = vdwg.mxu0
    %v948 = vadd.f32 %v894, %v943
    %v949 = vmul.f32 %v740, %v763
    %v950 = vpack.c.bf16 %v949, %v949
    %v951 = vld [vmem:[%s13] sm:$0xf]
    %v952 = vld [vmem:[%s13 + $0x4] sm:$0xf]
    %v955 = vunpack.c.l.b16 %v951
    %v956 = vunpack.c.l.b16 %v952
    %v957 = vpack.c.b16 %v956, %v955
    %v960 = vsel %vm523, %v950, 0
    %962 = vmatprep.subr.bf16.mxu0 0
    %963 = vmatpush1.bf16.msra.mxu0 %v957
    %964 = vmatprep.subr.bf16.mxu0 0
    %965 = vmatpush1.bf16.msra.mxu0 0
    %966 = vmatprep.subr.bf16.mxu0 0
    %967 = vmatpush1.bf16.msra.mxu0 0
    %968 = vmatprep.subr.bf16.mxu0 0
    %969 = vmatpush1.bf16.msra.mxu0 0
    %970 = vmatprep.subr.bf16.mxu0 0
    %971 = vmatpush1.bf16.msra.mxu0 0
    %972 = vmatprep.subr.bf16.mxu0 0
    %973 = vmatpush1.bf16.msra.mxu0 0
    %974 = vmatprep.subr.bf16.mxu0 0
    %975 = vmatpush1.bf16.msra.mxu0 0
    %976 = vmatprep.subr.bf16.mxu0 0
    %977 = vmatpush1.bf16.msra.mxu0 0
    %978 = vmatprep.subr.bf16.mxu0 0
    %979 = vmatpush1.bf16.msra.mxu0 0
    %980 = vmatprep.subr.bf16.mxu0 0
    %981 = vmatpush1.bf16.msra.mxu0 0
    %982 = vmatprep.subr.bf16.mxu0 0
    %983 = vmatpush1.bf16.msra.mxu0 0
    %984 = vmatprep.subr.bf16.mxu0 0
    %985 = vmatpush1.bf16.msra.mxu0 0
    %986 = vmatprep.subr.bf16.mxu0 0
    %987 = vmatpush1.bf16.msra.mxu0 0
    %988 = vmatprep.subr.bf16.mxu0 0
    %989 = vmatpush1.bf16.msra.mxu0 0
    %990 = vmatprep.subr.bf16.mxu0 0
    %991 = vmatpush1.bf16.msra.mxu0 0
    %992 = vmatprep.subr.bf16.mxu0 0
    %993 = vmatpush1.bf16.msra.mxu0 0
    %994 = vmatprep.mubr.bf16.mxu0 0
    %995 = vmatmul.mubr.bf16.gmra.mrb[0].mxu0 %v960
    %v996 = vpop.f32.mrb[0].mxu0
    %v997 = vadd.f32 0.0, %v996
    %v998 = vpop.f32.mrb[0].mxu0
    %v999 = vpop.f32.mrb[0].mxu0
    %v1000 = vpop.f32.mrb[0].mxu0
    %1001 = vdwg.mxu0
    %v1002 = vadd.f32 %v948, %v997
    %v1003 = vmax.f32 %v1002, 0.0
    %1004 = vadd.xlane.f32.xlu0 %v1003
    %v1005 = vpop.xlane.xlu0 %1004
    %v1006 = vrcp.pop 128.0
    %v1007 = vmul.f32 %v1005, %v1006
    %v1008 = vsub.f32 %v1003, %v1007
    %v1009 = vmul.f32 %v1008, %v1008
    %1010 = vadd.xlane.f32.xlu0 %v1009
    %v1011 = vpop.xlane.xlu0 %1010
    %v1012 = vmul.f32 %v1011, %v1006
    %v1013 = vadd.f32 %v1012, 1e-05
    %v1014 = vrsqrt.pop %v1013
    %v1015 = vmul.f32 %v1008, %v1014
    %v1016 = vpack.c.bf16 %v1015, %v1015
    %v1017 = vld [vmem:[%s15] sm:$0xf]
    %v1018 = vld [vmem:[%s15 + $0x4] sm:$0xf]
    %v1019 = vld [vmem:[%s15 + $0x8] sm:$0xf]
    %v1020 = vld [vmem:[%s15 + $0xc] sm:$0xf]
    %v1021 = vld [vmem:[%s15 + $0x10] sm:$0xf]
    %v1022 = vld [vmem:[%s15 + $0x14] sm:$0xf]
    %v1023 = vld [vmem:[%s15 + $0x18] sm:$0xf]
    %v1024 = vld [vmem:[%s15 + $0x1c] sm:$0xf]
    %v1025 = vld [vmem:[%s15 + $0x20] sm:$0xf]
    %v1026 = vld [vmem:[%s15 + $0x24] sm:$0xf]
    %v1027 = vld [vmem:[%s15 + $0x28] sm:$0xf]
    %v1028 = vld [vmem:[%s15 + $0x2c] sm:$0xf]
    %v1029 = vld [vmem:[%s15 + $0x30] sm:$0xf]
    %v1030 = vld [vmem:[%s15 + $0x34] sm:$0xf]
    %v1031 = vld [vmem:[%s15 + $0x38] sm:$0xf]
    %v1032 = vld [vmem:[%s15 + $0x3c] sm:$0xf]
    %v1033 = vld [vmem:[%s16] sm:$0x1]
    %v1035 = vlaneseq
    %v1036 = vshrl.u32 %v1035, 7
    %v1037 = vsub.s32 0, %v1036
    %v1038 = vrot.slane %v1033, %v1037
    %v1056 = vunpack.c.l.b16 %v1017
    %v1057 = vunpack.c.l.b16 %v1018
    %v1058 = vunpack.c.l.b16 %v1019
    %v1059 = vunpack.c.l.b16 %v1020
    %v1060 = vunpack.c.l.b16 %v1021
    %v1061 = vunpack.c.l.b16 %v1022
    %v1062 = vunpack.c.l.b16 %v1023
    %v1063 = vunpack.c.l.b16 %v1024
    %v1064 = vunpack.c.l.b16 %v1025
    %v1065 = vunpack.c.l.b16 %v1026
    %v1066 = vunpack.c.l.b16 %v1027
    %v1067 = vunpack.c.l.b16 %v1028
    %v1068 = vunpack.c.l.b16 %v1029
    %v1069 = vunpack.c.l.b16 %v1030
    %v1070 = vunpack.c.l.b16 %v1031
    %v1071 = vunpack.c.l.b16 %v1032
    %v1072 = vpack.c.b16 %v1057, %v1056
    %v1073 = vpack.c.b16 %v1059, %v1058
    %v1074 = vpack.c.b16 %v1061, %v1060
    %v1075 = vpack.c.b16 %v1063, %v1062
    %v1076 = vpack.c.b16 %v1065, %v1064
    %v1077 = vpack.c.b16 %v1067, %v1066
    %v1078 = vpack.c.b16 %v1069, %v1068
    %v1079 = vpack.c.b16 %v1071, %v1070
    %1088 = vmatprep.subr.bf16.mxu0 0
    %1089 = vmatpush1.bf16.msra.mxu0 %v1072
    %1090 = vmatprep.subr.bf16.mxu0 0
    %1091 = vmatpush1.bf16.msra.mxu0 %v1073
    %1092 = vmatprep.subr.bf16.mxu0 0
    %1093 = vmatpush1.bf16.msra.mxu0 %v1074
    %1094 = vmatprep.subr.bf16.mxu0 0
    %1095 = vmatpush1.bf16.msra.mxu0 %v1075
    %1096 = vmatprep.subr.bf16.mxu0 0
    %1097 = vmatpush1.bf16.msra.mxu0 %v1076
    %1098 = vmatprep.subr.bf16.mxu0 0
    %1099 = vmatpush1.bf16.msra.mxu0 %v1077
    %1100 = vmatprep.subr.bf16.mxu0 0
    %1101 = vmatpush1.bf16.msra.mxu0 %v1078
    %1102 = vmatprep.subr.bf16.mxu0 0
    %1103 = vmatpush1.bf16.msra.mxu0 %v1079
    %1104 = vmatprep.subr.bf16.mxu0 0
    %1105 = vmatpush1.bf16.msra.mxu0 0
    %1106 = vmatprep.subr.bf16.mxu0 0
    %1107 = vmatpush1.bf16.msra.mxu0 0
    %1108 = vmatprep.subr.bf16.mxu0 0
    %1109 = vmatpush1.bf16.msra.mxu0 0
    %1110 = vmatprep.subr.bf16.mxu0 0
    %1111 = vmatpush1.bf16.msra.mxu0 0
    %1112 = vmatprep.subr.bf16.mxu0 0
    %1113 = vmatpush1.bf16.msra.mxu0 0
    %1114 = vmatprep.subr.bf16.mxu0 0
    %1115 = vmatpush1.bf16.msra.mxu0 0
    %1116 = vmatprep.subr.bf16.mxu0 0
    %1117 = vmatpush1.bf16.msra.mxu0 0
    %1118 = vmatprep.subr.bf16.mxu0 0
    %1119 = vmatpush1.bf16.msra.mxu0 0
    %1120 = vmatprep.mubr.bf16.mxu0 0
    %1121 = vmatmul.mubr.bf16.gmra.mrb[0].mxu0 %v1016
    %v1122 = vpop.f32.mrb[0].mxu0
    %v1123 = vadd.f32 %v1038, %v1122
    %v1124 = vpop.f32.mrb[0].mxu0
    %v1125 = vpop.f32.mrb[0].mxu0
    %v1126 = vpop.f32.mrb[0].mxu0
    %1127 = vdwg.mxu0
    %1128 = vst.msk [vmem:[#allocation2] sm:$0xff] %vm675, %v1123
    // Predicated region
    $region70: #{tpu_custom_call.1} parent=1 // pred_check
      _
    $region71: #{tpu_custom_call.1} parent=1 // pred_check_branch
      %1130 = sbr.rel (0) target = $region73
    $region72: #{tpu_custom_call.1} parent=1 // pred_region
      %s1132 = ssub.s32 128, 128
      %1133 = vsyncadd [#allocation3], %s1132
      %s1135 = sshll.u32 [#allocation2], 4
      %s1136 = int_to_ptr.vmem [resolvable:$true] %s1135
      %1138 = dma.vmem_to_hbm [thread:$0]  %s1136, 128, %s17, [#allocation3]
    $region73: #{tpu_custom_call.1} parent=1 // pred_fallthru
      _
    // Predicated region
    $region74: #{tpu_custom_call.1} parent=1 // pred_check
      _
    $region75: #{tpu_custom_call.1} parent=1 // pred_check_branch
      %1140 = sbr.rel (0) target = $region77
    $region76: #{tpu_custom_call.1} parent=1 // pred_region
      %1141 = dma.done [#allocation3], 128
    $region77: #{tpu_custom_call.1} parent=1 // pred_fallthru
      _
    %1142 = vsyncpa [#allocation3], 1

// kernel: tpu_custom_call.1
$region0: #{tpu_custom_call.1}
  #allocation0 [shape = 'u32[]', space=smem, size = 0x4, offset = 0x4, fixed_abs, tag = 'smem constant byte address 0x4 - core index']
  #allocation1 [shape = 'u32[144,128]{1,0:T(1,128)}', space=vmem, size = 0x12000, scoped, tag = 'internal scratch']
  %s0 = inlined_call_operand.vmem [shape: f32[8,32], index: 0, kind: input, shape index: {}]
  %s1 = inlined_call_operand.vmem [shape: f32[8,1], index: 1, kind: input, shape index: {}]
  %s2 = inlined_call_operand.vmem [shape: f32[8,32], index: 2, kind: input, shape index: {}]
  %s3 = inlined_call_operand.vmem [shape: f32[8,16], index: 3, kind: input, shape index: {}]
  %s4 = inlined_call_operand.vmem [shape: f32[1,16], index: 4, kind: input, shape index: {}]
  %s5 = inlined_call_operand.vmem [shape: bf16[16,32], index: 5, kind: input, shape index: {}]
  %s6 = inlined_call_operand.vmem [shape: bf16[16,32], index: 6, kind: input, shape index: {}]
  %s7 = inlined_call_operand.vmem [shape: f32[1,32], index: 7, kind: input, shape index: {}]
  %s8 = inlined_call_operand.vmem [shape: bf16[32,32], index: 8, kind: input, shape index: {}]
  %s9 = inlined_call_operand.vmem [shape: f32[1,32], index: 9, kind: input, shape index: {}]
  %s10 = inlined_call_operand.vmem [shape: bf16[32,128], index: 10, kind: input, shape index: {}]
  %s11 = inlined_call_operand.vmem [shape: bf16[32,128], index: 11, kind: input, shape index: {}]
  %s12 = inlined_call_operand.vmem [shape: bf16[16,128], index: 12, kind: input, shape index: {}]
  %s13 = inlined_call_operand.vmem [shape: bf16[16,128], index: 13, kind: input, shape index: {}]
  %s14 = inlined_call_operand.vmem [shape: f32[1,128], index: 14, kind: input, shape index: {}]
  %s15 = inlined_call_operand.vmem [shape: bf16[128,32], index: 15, kind: input, shape index: {}]
  %s16 = inlined_call_operand.vmem [shape: f32[1,32], index: 16, kind: input, shape index: {}]
  %s17 = inlined_call_operand.hbm [shape: f32[8,32], index: 17, kind: output, shape index: {}]
  %s18 = sld [smem:[#allocation0]]
  $region78: #{tpu_custom_call.1} parent=0
    _
  %s20 = ssub.s32 1, %s18
  %s21 = scalar_select 0, %s20, %s18
  $region1: #{tpu_custom_call.1} parent=0
    #allocation2 [shape = 'u8[4096]{0}', space=vmem, size = 0x1000, scoped, tag = 'output window, operand 0, single buffered']
    #allocation3 [shape = 's32[1]{0}', space=sflag, size = 0x4, scoped, tag = 'scoped memory for tpu_custom_call.1']
    %22 = vsyncpa [#allocation3], 0
    // Predicated region
    $region2: #{tpu_custom_call.1} parent=1 // pred_check
      _
    $region3: #{tpu_custom_call.1} parent=1 // pred_check_branch
      %24 = sbr.rel (0) target = $region5
    $region4: #{tpu_custom_call.1} parent=1 // pred_region
      _
    $region5: #{tpu_custom_call.1} parent=1 // pred_fallthru
      _
    // Predicated region
    $region6: #{tpu_custom_call.1} parent=1 // pred_check
      _
    $region7: #{tpu_custom_call.1} parent=1 // pred_check_branch
      %26 = sbr.rel (0) target = $region9
    $region8: #{tpu_custom_call.1} parent=1 // pred_region
      _
    $region9: #{tpu_custom_call.1} parent=1 // pred_fallthru
      _
    // Predicated region
    $region10: #{tpu_custom_call.1} parent=1 // pred_check
      _
    $region11: #{tpu_custom_call.1} parent=1 // pred_check_branch
      %28 = sbr.rel (0) target = $region13
    $region12: #{tpu_custom_call.1} parent=1 // pred_region
      _
    $region13: #{tpu_custom_call.1} parent=1 // pred_fallthru
      _
    // Predicated region
    $region14: #{tpu_custom_call.1} parent=1 // pred_check
      _
    $region15: #{tpu_custom_call.1} parent=1 // pred_check_branch
      %30 = sbr.rel (0) target = $region17
    $region16: #{tpu_custom_call.1} parent=1 // pred_region
      _
    $region17: #{tpu_custom_call.1} parent=1 // pred_fallthru
      _
    // Predicated region
    $region18: #{tpu_custom_call.1} parent=1 // pred_check
      _
    $region19: #{tpu_custom_call.1} parent=1 // pred_check_branch
      %32 = sbr.rel (0) target = $region21
    $region20: #{tpu_custom_call.1} parent=1 // pred_region
      _
    $region21: #{tpu_custom_call.1} parent=1 // pred_fallthru
      _
    // Predicated region
    $region22: #{tpu_custom_call.1} parent=1 // pred_check
      _
    $region23: #{tpu_custom_call.1} parent=1 // pred_check_branch
      %34 = sbr.rel (0) target = $region25
    $region24: #{tpu_custom_call.1} parent=1 // pred_region
      _
    $region25: #{tpu_custom_call.1} parent=1 // pred_fallthru
      _
    // Predicated region
    $region26: #{tpu_custom_call.1} parent=1 // pred_check
      _
    $region27: #{tpu_custom_call.1} parent=1 // pred_check_branch
      %36 = sbr.rel (0) target = $region29
    $region28: #{tpu_custom_call.1} parent=1 // pred_region
      _
    $region29: #{tpu_custom_call.1} parent=1 // pred_fallthru
      _
    // Predicated region
    $region30: #{tpu_custom_call.1} parent=1 // pred_check
      _
    $region31: #{tpu_custom_call.1} parent=1 // pred_check_branch
      %38 = sbr.rel (0) target = $region33
    $region32: #{tpu_custom_call.1} parent=1 // pred_region
      _
    $region33: #{tpu_custom_call.1} parent=1 // pred_fallthru
      _
    // Predicated region
    $region34: #{tpu_custom_call.1} parent=1 // pred_check
      _
    $region35: #{tpu_custom_call.1} parent=1 // pred_check_branch
      %40 = sbr.rel (0) target = $region37
    $region36: #{tpu_custom_call.1} parent=1 // pred_region
      _
    $region37: #{tpu_custom_call.1} parent=1 // pred_fallthru
      _
    // Predicated region
    $region38: #{tpu_custom_call.1} parent=1 // pred_check
      _
    $region39: #{tpu_custom_call.1} parent=1 // pred_check_branch
      %42 = sbr.rel (0) target = $region41
    $region40: #{tpu_custom_call.1} parent=1 // pred_region
      _
    $region41: #{tpu_custom_call.1} parent=1 // pred_fallthru
      _
    // Predicated region
    $region42: #{tpu_custom_call.1} parent=1 // pred_check
      _
    $region43: #{tpu_custom_call.1} parent=1 // pred_check_branch
      %44 = sbr.rel (0) target = $region45
    $region44: #{tpu_custom_call.1} parent=1 // pred_region
      _
    $region45: #{tpu_custom_call.1} parent=1 // pred_fallthru
      _
    // Predicated region
    $region46: #{tpu_custom_call.1} parent=1 // pred_check
      _
    $region47: #{tpu_custom_call.1} parent=1 // pred_check_branch
      %46 = sbr.rel (0) target = $region49
    $region48: #{tpu_custom_call.1} parent=1 // pred_region
      _
    $region49: #{tpu_custom_call.1} parent=1 // pred_fallthru
      _
    // Predicated region
    $region50: #{tpu_custom_call.1} parent=1 // pred_check
      _
    $region51: #{tpu_custom_call.1} parent=1 // pred_check_branch
      %48 = sbr.rel (0) target = $region53
    $region52: #{tpu_custom_call.1} parent=1 // pred_region
      _
    $region53: #{tpu_custom_call.1} parent=1 // pred_fallthru
      _
    // Predicated region
    $region54: #{tpu_custom_call.1} parent=1 // pred_check
      _
    $region55: #{tpu_custom_call.1} parent=1 // pred_check_branch
      %50 = sbr.rel (0) target = $region57
    $region56: #{tpu_custom_call.1} parent=1 // pred_region
      _
    $region57: #{tpu_custom_call.1} parent=1 // pred_fallthru
      _
    // Predicated region
    $region58: #{tpu_custom_call.1} parent=1 // pred_check
      _
    $region59: #{tpu_custom_call.1} parent=1 // pred_check_branch
      %52 = sbr.rel (0) target = $region61
    $region60: #{tpu_custom_call.1} parent=1 // pred_region
      _
    $region61: #{tpu_custom_call.1} parent=1 // pred_fallthru
      _
    // Predicated region
    $region62: #{tpu_custom_call.1} parent=1 // pred_check
      _
    $region63: #{tpu_custom_call.1} parent=1 // pred_check_branch
      %54 = sbr.rel (0) target = $region65
    $region64: #{tpu_custom_call.1} parent=1 // pred_region
      _
    $region65: #{tpu_custom_call.1} parent=1 // pred_fallthru
      _
    // Predicated region
    $region66: #{tpu_custom_call.1} parent=1 // pred_check
      _
    $region67: #{tpu_custom_call.1} parent=1 // pred_check_branch
      %56 = sbr.rel (0) target = $region69
    $region68: #{tpu_custom_call.1} parent=1 // pred_region
      _
    $region69: #{tpu_custom_call.1} parent=1 // pred_fallthru
      _
    %v58 = vld [vmem:[%s2] sm:$0xff]
    %v59 = vld [vmem:[%s3] sm:$0xff]
    %v60 = vmul.f32 %v59, 4.569589
    %v61 = vand.u32 2147483647, %v60
    %vm62 = vcmp.le.f32.partialorder %v61, 0.7853982
    %vm63 = vcmp.lt.s32.totalorder %v60, 0
    %v64 = vand.u32 %v60, 2139095040
    %v65 = vshrl.u32 %v64, 23
    %v66 = vsub.s32 %v65, 127
    %v67 = vand.u32 2147483647, %v60
    %v68 = vand.u32 %v67, 8388607
    %v69 = vor.u32 %v68, 8388608
    %v70 = vsub.s32 0, %v69
    %v71 = vadd.s32 %v66, 1
    %vm72 = vcmp.gt.s32.totalorder %v71, 0
    %v73 = vsel %vm72, %v71, 0
    %v74 = vshrl.u32 %v73, 5
    %v75 = vand.u32 %v73, 31
    %v76 = vsub.s32 32, %v75
    %v77 = vshrl.u32 683565275, %v76
    %v78 = vshll.u32 683565275, %v75
    %v79 = vshrl.u32 2475754826, %v76
    %v80 = vor.u32 %v78, %v79
    %v81 = vshll.u32 2475754826, %v75
    %v82 = vshrl.u32 2131351028, %v76
    %v83 = vor.u32 %v81, %v82
    %v84 = vshll.u32 2131351028, %v75
    %v85 = vshrl.u32 2102212464, %v76
    %v86 = vor.u32 %v84, %v85
    %v87 = vshll.u32 2102212464, %v75
    %v88 = vshrl.u32 920167782, %v76
    %v89 = vor.u32 %v87, %v88
    %v90 = vshll.u32 920167782, %v75
    %v91 = vshrl.u32 1326507024, %v76
    %v92 = vor.u32 %v90, %v91
    %vm93 = vcmp.lt.s32.totalorder %v74, 1
    %vm94 = vcmp.lt.s32.totalorder %v74, 2
    %vm95 = vcmp.lt.s32.totalorder %v74, 3
    %vm96 = vcmp.lt.s32.totalorder %v74, 4
    %v97 = vsel %vm93, %v77, %v80
    %v98 = vsel %vm96, %v86, 2102212464
    %v99 = vsel %vm95, %v83, %v98
    %v100 = vsel %vm94, %v97, %v99
    %v101 = vsel %vm93, %v80, %v83
    %v102 = vsel %vm96, %v89, 920167782
    %v103 = vsel %vm95, %v86, %v102
    %v104 = vsel %vm94, %v101, %v103
    %v105 = vsel %vm93, %v83, %v86
    %v106 = vsel %vm96, %v92, 1326507024
    %v107 = vsel %vm95, %v89, %v106
    %v108 = vsel %vm94, %v105, %v107
    %v109 = vshll.u32 %v69, 8
    %v110 = vmul.u32.u64.compose %v109, %v108
    %v111 = vextract.low.u32 %v110
    %v112 = vextract.high.u32 %v110
    %v113 = vmul.u32.u64.compose %v109, %v104
    %v114 = vextract.low.u32 %v113
    %v115 = vextract.high.u32 %v113
    %v116 = vmul.u32 %v109, %v100
    %v117 = vadd.s32 %v112, %v114
    %vm118 = vc.u32 %v112, %v114
    %v119 = vadd.s32 %v115, 1
    %v120 = vsel %vm118, %v119, %v115
    %v121 = vadd.s32 %v116, %v120
    %v122 = vadd.s32 %v121, 536870912
    %v123 = vshrl.u32 %v122, 30
    %v124 = vshll.u32 %v123, 30
    %v125 = vsub.s32 %v121, %v124
    %vm126 = vcmp.lt.s32.totalorder %v125, 0
    %v127 = vsub.s32 0, %v125
    %v128 = vsel %vm126, %v127, %v125
    %v129 = vclz %v128
    %v130 = vsub.s32 %v129, 2
    %vm131 = vcmp.gt.s32.totalorder 0, %v130
    %v132 = vsel %vm131, 0, %v130
    %v133 = vsub.s32 32, %v132
    %v134 = vshll.u32 %v125, %v132
    %v135 = vshrl.u32 %v117, %v133
    %v136 = vor.u32 %v134, %v135
    %v137 = vsub.s32 4294967266, %v132
    %v138 = vadd.s32 %v137, 127
    %v139 = vshll.u32 %v138, 23
    %v140 = vor.u32 4788187, %v139
    %v141 = vand.u32 2147483647, %v140
    %v143 = vcvt.s32.f32 %v136
    %v144 = vmul.f32 %v143, %v141
    %v145 = vxor.u32 %v144, 2147483648
    %v146 = vsel %vm63, %v145, %v144
    %v147 = vsub.s32 4, %v123
    %v148 = vsel %vm63, %v147, %v123
    %v149 = vsel %vm62, %v60, %v146
    %v150 = vsel %vm62, 0, %v148
    %v151 = vcosq.f32.pop %v149
    %v152 = vsinq.f32.pop %v149
    %vm153 = vweird.f32 %v60
    %v154 = vand.u32 %v150, 3
    %vm155 = vcmp.lt.s32.totalorder %v154, 2
    %vm156 = vcmp.eq.s32.totalorder %v154, 0
    %v157 = vxor.u32 %v152, 2147483648
    %v158 = vsel %vm156, %v151, %v157
    %vm159 = vcmp.eq.s32.totalorder %v154, 2
    %v160 = vxor.u32 %v151, 2147483648
    %v161 = vsel %vm159, %v160, %v152
    %v162 = vsel %vm155, %v158, %v161
    %v163 = vsel %vm153, nan, %v162
    %v164 = vand.u32 2147483647, %v60
    %vm165 = vcmp.le.f32.partialorder %v164, 0.7853982
    %vm166 = vcmp.lt.s32.totalorder %v60, 0
    %v167 = vand.u32 %v60, 2139095040
    %v168 = vshrl.u32 %v167, 23
    %v169 = vsub.s32 %v168, 127
    %v170 = vand.u32 2147483647, %v60
    %v171 = vand.u32 %v170, 8388607
    %v172 = vor.u32 %v171, 8388608
    %v173 = vsub.s32 0, %v172
    %v174 = vadd.s32 %v169, 1
    %vm175 = vcmp.gt.s32.totalorder %v174, 0
    %v176 = vsel %vm175, %v174, 0
    %v177 = vshrl.u32 %v176, 5
    %v178 = vand.u32 %v176, 31
    %v179 = vsub.s32 32, %v178
    %v180 = vshrl.u32 683565275, %v179
    %v181 = vshll.u32 683565275, %v178
    %v182 = vshrl.u32 2475754826, %v179
    %v183 = vor.u32 %v181, %v182
    %v184 = vshll.u32 2475754826, %v178
    %v185 = vshrl.u32 2131351028, %v179
    %v186 = vor.u32 %v184, %v185
    %v187 = vshll.u32 2131351028, %v178
    %v188 = vshrl.u32 2102212464, %v179
    %v189 = vor.u32 %v187, %v188
    %v190 = vshll.u32 2102212464, %v178
    %v191 = vshrl.u32 920167782, %v179
    %v192 = vor.u32 %v190, %v191
    %v193 = vshll.u32 920167782, %v178
    %v194 = vshrl.u32 1326507024, %v179
    %v195 = vor.u32 %v193, %v194
    %vm196 = vcmp.lt.s32.totalorder %v177, 1
    %vm197 = vcmp.lt.s32.totalorder %v177, 2
    %vm198 = vcmp.lt.s32.totalorder %v177, 3
    %vm199 = vcmp.lt.s32.totalorder %v177, 4
    %v200 = vsel %vm196, %v180, %v183
    %v201 = vsel %vm199, %v189, 2102212464
    %v202 = vsel %vm198, %v186, %v201
    %v203 = vsel %vm197, %v200, %v202
    %v204 = vsel %vm196, %v183, %v186
    %v205 = vsel %vm199, %v192, 920167782
    %v206 = vsel %vm198, %v189, %v205
    %v207 = vsel %vm197, %v204, %v206
    %v208 = vsel %vm196, %v186, %v189
    %v209 = vsel %vm199, %v195, 1326507024
    %v210 = vsel %vm198, %v192, %v209
    %v211 = vsel %vm197, %v208, %v210
    %v212 = vshll.u32 %v172, 8
    %v213 = vmul.u32.u64.compose %v212, %v211
    %v214 = vextract.low.u32 %v213
    %v215 = vextract.high.u32 %v213
    %v216 = vmul.u32.u64.compose %v212, %v207
    %v217 = vextract.low.u32 %v216
    %v218 = vextract.high.u32 %v216
    %v219 = vmul.u32 %v212, %v203
    %v220 = vadd.s32 %v215, %v217
    %vm221 = vc.u32 %v215, %v217
    %v222 = vadd.s32 %v218, 1
    %v223 = vsel %vm221, %v222, %v218
    %v224 = vadd.s32 %v219, %v223
    %v225 = vadd.s32 %v224, 536870912
    %v226 = vshrl.u32 %v225, 30
    %v227 = vshll.u32 %v226, 30
    %v228 = vsub.s32 %v224, %v227
    %vm229 = vcmp.lt.s32.totalorder %v228, 0
    %v230 = vsub.s32 0, %v228
    %v231 = vsel %vm229, %v230, %v228
    %v232 = vclz %v231
    %v233 = vsub.s32 %v232, 2
    %vm234 = vcmp.gt.s32.totalorder 0, %v233
    %v235 = vsel %vm234, 0, %v233
    %v236 = vsub.s32 32, %v235
    %v237 = vshll.u32 %v228, %v235
    %v238 = vshrl.u32 %v220, %v236
    %v239 = vor.u32 %v237, %v238
    %v240 = vsub.s32 4294967266, %v235
    %v241 = vadd.s32 %v240, 127
    %v242 = vshll.u32 %v241, 23
    %v243 = vor.u32 4788187, %v242
    %v244 = vand.u32 2147483647, %v243
    %v246 = vcvt.s32.f32 %v239
    %v247 = vmul.f32 %v246, %v244
    %v248 = vxor.u32 %v247, 2147483648
    %v249 = vsel %vm166, %v248, %v247
    %v250 = vsub.s32 4, %v226
    %v251 = vsel %vm166, %v250, %v226
    %v252 = vsel %vm165, %v60, %v249
    %v253 = vsel %vm165, 0, %v251
    %v254 = vcosq.f32.pop %v252
    %v255 = vsinq.f32.pop %v252
    %vm256 = vweird.f32 %v60
    %v257 = vadd.s32 %v253, 3
    %v258 = vand.u32 %v257, 3
    %vm259 = vcmp.lt.s32.totalorder %v258, 2
    %vm260 = vcmp.eq.s32.totalorder %v258, 0
    %v261 = vxor.u32 %v255, 2147483648
    %v262 = vsel %vm260, %v254, %v261
    %vm263 = vcmp.eq.s32.totalorder %v258, 2
    %v264 = vxor.u32 %v254, 2147483648
    %v265 = vsel %vm263, %v264, %v255
    %v266 = vsel %vm259, %v262, %v265
    %v267 = vsel %vm256, nan, %v266
    %v268 = vmul.f32 %v58, %v163
    %270 = vrot.lane.b32.xlu0 %v267, 16
    %v271 = vpop.permute.xlu0 %270
    %v273 = vmul.f32 %v58, %v271
    %275 = vrot.lane.b32.xlu0 %v273, 112
    %v276 = vpop.permute.xlu0 %275
    %v278 = vsub.f32 %v268, %v276
    %v279 = vmul.f32 %v58, %v267
    %281 = vrot.lane.b32.xlu0 %v163, 16
    %v282 = vpop.permute.xlu0 %281
    %v284 = vmul.f32 %v58, %v282
    %286 = vrot.lane.b32.xlu0 %v284, 112
    %v287 = vpop.permute.xlu0 %286
    %v289 = vadd.f32 %v279, %v287
    %v290 = vld [vmem:[%s1] sm:$0xff]
    %v291 = vld [vmem:[%s4] sm:$0x1]
    %293 = vset.pattern.permute.xlu0 0
    %294 = vperm.xlu0 %293, %v290
    %v295 = vpop.permute.xlu0 %294
    %v298 = vlaneseq
    %v299 = vshrl.u32 %v298, 7
    %v300 = vsub.s32 0, %v299
    %v301 = vrot.slane %v291, %v300
    %v303 = vmul.f32 %v295, %v301
    %v304 = vand.u32 2147483647, %v303
    %vm305 = vcmp.le.f32.partialorder %v304, 0.7853982
    %vm306 = vcmp.lt.s32.totalorder %v303, 0
    %v307 = vand.u32 %v303, 2139095040
    %v308 = vshrl.u32 %v307, 23
    %v309 = vsub.s32 %v308, 127
    %v310 = vand.u32 2147483647, %v303
    %v311 = vand.u32 %v310, 8388607
    %v312 = vor.u32 %v311, 8388608
    %v313 = vsub.s32 0, %v312
    %v314 = vadd.s32 %v309, 1
    %vm315 = vcmp.gt.s32.totalorder %v314, 0
    %v316 = vsel %vm315, %v314, 0
    %v317 = vshrl.u32 %v316, 5
    %v318 = vand.u32 %v316, 31
    %v319 = vsub.s32 32, %v318
    %v320 = vshrl.u32 683565275, %v319
    %v321 = vshll.u32 683565275, %v318
    %v322 = vshrl.u32 2475754826, %v319
    %v323 = vor.u32 %v321, %v322
    %v324 = vshll.u32 2475754826, %v318
    %v325 = vshrl.u32 2131351028, %v319
    %v326 = vor.u32 %v324, %v325
    %v327 = vshll.u32 2131351028, %v318
    %v328 = vshrl.u32 2102212464, %v319
    %v329 = vor.u32 %v327, %v328
    %v330 = vshll.u32 2102212464, %v318
    %v331 = vshrl.u32 920167782, %v319
    %v332 = vor.u32 %v330, %v331
    %v333 = vshll.u32 920167782, %v318
    %v334 = vshrl.u32 1326507024, %v319
    %v335 = vor.u32 %v333, %v334
    %vm336 = vcmp.lt.s32.totalorder %v317, 1
    %vm337 = vcmp.lt.s32.totalorder %v317, 2
    %vm338 = vcmp.lt.s32.totalorder %v317, 3
    %vm339 = vcmp.lt.s32.totalorder %v317, 4
    %v340 = vsel %vm336, %v320, %v323
    %v341 = vsel %vm339, %v329, 2102212464
    %v342 = vsel %vm338, %v326, %v341
    %v343 = vsel %vm337, %v340, %v342
    %v344 = vsel %vm336, %v323, %v326
    %v345 = vsel %vm339, %v332, 920167782
    %v346 = vsel %vm338, %v329, %v345
    %v347 = vsel %vm337, %v344, %v346
    %v348 = vsel %vm336, %v326, %v329
    %v349 = vsel %vm339, %v335, 1326507024
    %v350 = vsel %vm338, %v332, %v349
    %v351 = vsel %vm337, %v348, %v350
    %v352 = vshll.u32 %v312, 8
    %v353 = vmul.u32.u64.compose %v352, %v351
    %v354 = vextract.low.u32 %v353
    %v355 = vextract.high.u32 %v353
    %v356 = vmul.u32.u64.compose %v352, %v347
    %v357 = vextract.low.u32 %v356
    %v358 = vextract.high.u32 %v356
    %v359 = vmul.u32 %v352, %v343
    %v360 = vadd.s32 %v355, %v357
    %vm361 = vc.u32 %v355, %v357
    %v362 = vadd.s32 %v358, 1
    %v363 = vsel %vm361, %v362, %v358
    %v364 = vadd.s32 %v359, %v363
    %v365 = vadd.s32 %v364, 536870912
    %v366 = vshrl.u32 %v365, 30
    %v367 = vshll.u32 %v366, 30
    %v368 = vsub.s32 %v364, %v367
    %vm369 = vcmp.lt.s32.totalorder %v368, 0
    %v370 = vsub.s32 0, %v368
    %v371 = vsel %vm369, %v370, %v368
    %v372 = vclz %v371
    %v373 = vsub.s32 %v372, 2
    %vm374 = vcmp.gt.s32.totalorder 0, %v373
    %v375 = vsel %vm374, 0, %v373
    %v376 = vsub.s32 32, %v375
    %v377 = vshll.u32 %v368, %v375
    %v378 = vshrl.u32 %v360, %v376
    %v379 = vor.u32 %v377, %v378
    %v380 = vsub.s32 4294967266, %v375
    %v381 = vadd.s32 %v380, 127
    %v382 = vshll.u32 %v381, 23
    %v383 = vor.u32 4788187, %v382
    %v384 = vand.u32 2147483647, %v383
    %v386 = vcvt.s32.f32 %v379
    %v387 = vmul.f32 %v386, %v384
    %v388 = vxor.u32 %v387, 2147483648
    %v389 = vsel %vm306, %v388, %v387
    %v390 = vsub.s32 4, %v366
    %v391 = vsel %vm306, %v390, %v366
    %v392 = vsel %vm305, %v303, %v389
    %v393 = vsel %vm305, 0, %v391
    %v394 = vcosq.f32.pop %v392
    %v395 = vsinq.f32.pop %v392
    %vm396 = vweird.f32 %v303
    %v397 = vadd.s32 %v393, 3
    %v398 = vand.u32 %v397, 3
    %vm399 = vcmp.lt.s32.totalorder %v398, 2
    %vm400 = vcmp.eq.s32.totalorder %v398, 0
    %v401 = vxor.u32 %v395, 2147483648
    %v402 = vsel %vm400, %v394, %v401
    %vm403 = vcmp.eq.s32.totalorder %v398, 2
    %v404 = vxor.u32 %v394, 2147483648
    %v405 = vsel %vm403, %v404, %v395
    %v406 = vsel %vm399, %v402, %v405
    %v407 = vsel %vm396, nan, %v406
    %v408 = vand.u32 2147483647, %v303
    %vm409 = vcmp.le.f32.partialorder %v408, 0.7853982
    %vm410 = vcmp.lt.s32.totalorder %v303, 0
    %v411 = vand.u32 %v303, 2139095040
    %v412 = vshrl.u32 %v411, 23
    %v413 = vsub.s32 %v412, 127
    %v414 = vand.u32 2147483647, %v303
    %v415 = vand.u32 %v414, 8388607
    %v416 = vor.u32 %v415, 8388608
    %v417 = vsub.s32 0, %v416
    %v418 = vadd.s32 %v413, 1
    %vm419 = vcmp.gt.s32.totalorder %v418, 0
    %v420 = vsel %vm419, %v418, 0
    %v421 = vshrl.u32 %v420, 5
    %v422 = vand.u32 %v420, 31
    %v423 = vsub.s32 32, %v422
    %v424 = vshrl.u32 683565275, %v423
    %v425 = vshll.u32 683565275, %v422
    %v426 = vshrl.u32 2475754826, %v423
    %v427 = vor.u32 %v425, %v426
    %v428 = vshll.u32 2475754826, %v422
    %v429 = vshrl.u32 2131351028, %v423
    %v430 = vor.u32 %v428, %v429
    %v431 = vshll.u32 2131351028, %v422
    %v432 = vshrl.u32 2102212464, %v423
    %v433 = vor.u32 %v431, %v432
    %v434 = vshll.u32 2102212464, %v422
    %v435 = vshrl.u32 920167782, %v423
    %v436 = vor.u32 %v434, %v435
    %v437 = vshll.u32 920167782, %v422
    %v438 = vshrl.u32 1326507024, %v423
    %v439 = vor.u32 %v437, %v438
    %vm440 = vcmp.lt.s32.totalorder %v421, 1
    %vm441 = vcmp.lt.s32.totalorder %v421, 2
    %vm442 = vcmp.lt.s32.totalorder %v421, 3
    %vm443 = vcmp.lt.s32.totalorder %v421, 4
    %v444 = vsel %vm440, %v424, %v427
    %v445 = vsel %vm443, %v433, 2102212464
    %v446 = vsel %vm442, %v430, %v445
    %v447 = vsel %vm441, %v444, %v446
    %v448 = vsel %vm440, %v427, %v430
    %v449 = vsel %vm443, %v436, 920167782
    %v450 = vsel %vm442, %v433, %v449
    %v451 = vsel %vm441, %v448, %v450
    %v452 = vsel %vm440, %v430, %v433
    %v453 = vsel %vm443, %v439, 1326507024
    %v454 = vsel %vm442, %v436, %v453
    %v455 = vsel %vm441, %v452, %v454
    %v456 = vshll.u32 %v416, 8
    %v457 = vmul.u32.u64.compose %v456, %v455
    %v458 = vextract.low.u32 %v457
    %v459 = vextract.high.u32 %v457
    %v460 = vmul.u32.u64.compose %v456, %v451
    %v461 = vextract.low.u32 %v460
    %v462 = vextract.high.u32 %v460
    %v463 = vmul.u32 %v456, %v447
    %v464 = vadd.s32 %v459, %v461
    %vm465 = vc.u32 %v459, %v461
    %v466 = vadd.s32 %v462, 1
    %v467 = vsel %vm465, %v466, %v462
    %v468 = vadd.s32 %v463, %v467
    %v469 = vadd.s32 %v468, 536870912
    %v470 = vshrl.u32 %v469, 30
    %v471 = vshll.u32 %v470, 30
    %v472 = vsub.s32 %v468, %v471
    %vm473 = vcmp.lt.s32.totalorder %v472, 0
    %v474 = vsub.s32 0, %v472
    %v475 = vsel %vm473, %v474, %v472
    %v476 = vclz %v475
    %v477 = vsub.s32 %v476, 2
    %vm478 = vcmp.gt.s32.totalorder 0, %v477
    %v479 = vsel %vm478, 0, %v477
    %v480 = vsub.s32 32, %v479
    %v481 = vshll.u32 %v472, %v479
    %v482 = vshrl.u32 %v464, %v480
    %v483 = vor.u32 %v481, %v482
    %v484 = vsub.s32 4294967266, %v479
    %v485 = vadd.s32 %v484, 127
    %v486 = vshll.u32 %v485, 23
    %v487 = vor.u32 4788187, %v486
    %v488 = vand.u32 2147483647, %v487
    %v490 = vcvt.s32.f32 %v483
    %v491 = vmul.f32 %v490, %v488
    %v492 = vxor.u32 %v491, 2147483648
    %v493 = vsel %vm410, %v492, %v491
    %v494 = vsub.s32 4, %v470
    %v495 = vsel %vm410, %v494, %v470
    %v496 = vsel %vm409, %v303, %v493
    %v497 = vsel %vm409, 0, %v495
    %v498 = vcosq.f32.pop %v496
    %v499 = vsinq.f32.pop %v496
    %vm500 = vweird.f32 %v303
    %v501 = vand.u32 %v497, 3
    %vm502 = vcmp.lt.s32.totalorder %v501, 2
    %vm503 = vcmp.eq.s32.totalorder %v501, 0
    %v504 = vxor.u32 %v499, 2147483648
    %v505 = vsel %vm503, %v498, %v504
    %vm506 = vcmp.eq.s32.totalorder %v501, 2
    %v507 = vxor.u32 %v498, 2147483648
    %v508 = vsel %vm506, %v507, %v499
    %v509 = vsel %vm502, %v505, %v508
    %v510 = vsel %vm500, nan, %v509
    %v511 = vpack.c.bf16 %v407, %v407
    %v512 = vld [vmem:[%s5] sm:$0xf]
    %v513 = vld [vmem:[%s5 + $0x4] sm:$0xf]
    %v514 = vpack.c.bf16 %v510, %v510
    %v515 = vld [vmem:[%s6] sm:$0xf]
    %v516 = vld [vmem:[%s6 + $0x4] sm:$0xf]
    %v519 = vunpack.c.l.b16 %v515
    %v520 = vunpack.c.l.b16 %v516
    %v521 = vpack.c.b16 %v520, %v519
    %vm523 = vcmask 130048
    %v525 = vsel %vm523, %v514, 0
    %527 = vmatprep.subr.bf16.mxu0 0
    %528 = vmatpush1.bf16.msra.mxu0 %v521
    %529 = vmatprep.subr.bf16.mxu0 0
    %530 = vmatpush1.bf16.msra.mxu0 0
    %531 = vmatprep.subr.bf16.mxu0 0
    %532 = vmatpush1.bf16.msra.mxu0 0
    %533 = vmatprep.subr.bf16.mxu0 0
    %534 = vmatpush1.bf16.msra.mxu0 0
    %535 = vmatprep.subr.bf16.mxu0 0
    %536 = vmatpush1.bf16.msra.mxu0 0
    %537 = vmatprep.subr.bf16.mxu0 0
    %538 = vmatpush1.bf16.msra.mxu0 0
    %539 = vmatprep.subr.bf16.mxu0 0
    %540 = vmatpush1.bf16.msra.mxu0 0
    %541 = vmatprep.subr.bf16.mxu0 0
    %542 = vmatpush1.bf16.msra.mxu0 0
    %543 = vmatprep.subr.bf16.mxu0 0
    %544 = vmatpush1.bf16.msra.mxu0 0
    %545 = vmatprep.subr.bf16.mxu0 0
    %546 = vmatpush1.bf16.msra.mxu0 0
    %547 = vmatprep.subr.bf16.mxu0 0
    %548 = vmatpush1.bf16.msra.mxu0 0
    %549 = vmatprep.subr.bf16.mxu0 0
    %550 = vmatpush1.bf16.msra.mxu0 0
    %551 = vmatprep.subr.bf16.mxu0 0
    %552 = vmatpush1.bf16.msra.mxu0 0
    %553 = vmatprep.subr.bf16.mxu0 0
    %554 = vmatpush1.bf16.msra.mxu0 0
    %555 = vmatprep.subr.bf16.mxu0 0
    %556 = vmatpush1.bf16.msra.mxu0 0
    %557 = vmatprep.subr.bf16.mxu0 0
    %558 = vmatpush1.bf16.msra.mxu0 0
    %559 = vmatprep.mubr.bf16.mxu0 0
    %560 = vmatmul.mubr.bf16.gmra.mrb[0].mxu0 %v525
    %v561 = vpop.f32.mrb[0].mxu0
    %v562 = vadd.f32 0.0, %v561
    %v563 = vpop.f32.mrb[0].mxu0
    %v564 = vpop.f32.mrb[0].mxu0
    %v565 = vpop.f32.mrb[0].mxu0
    %566 = vdwg.mxu0
    %v569 = vunpack.c.l.b16 %v512
    %v570 = vunpack.c.l.b16 %v513
    %v571 = vpack.c.b16 %v570, %v569
    %v574 = vsel %vm523, %v511, 0
    %576 = vmatprep.subr.bf16.mxu0 0
    %577 = vmatpush1.bf16.msra.mxu0 %v571
    %578 = vmatprep.subr.bf16.mxu0 0
    %579 = vmatpush1.bf16.msra.mxu0 0
    %580 = vmatprep.subr.bf16.mxu0 0
    %581 = vmatpush1.bf16.msra.mxu0 0
    %582 = vmatprep.subr.bf16.mxu0 0
    %583 = vmatpush1.bf16.msra.mxu0 0
    %584 = vmatprep.subr.bf16.mxu0 0
    %585 = vmatpush1.bf16.msra.mxu0 0
    %586 = vmatprep.subr.bf16.mxu0 0
    %587 = vmatpush1.bf16.msra.mxu0 0
    %588 = vmatprep.subr.bf16.mxu0 0
    %589 = vmatpush1.bf16.msra.mxu0 0
    %590 = vmatprep.subr.bf16.mxu0 0
    %591 = vmatpush1.bf16.msra.mxu0 0
    %592 = vmatprep.subr.bf16.mxu0 0
    %593 = vmatpush1.bf16.msra.mxu0 0
    %594 = vmatprep.subr.bf16.mxu0 0
    %595 = vmatpush1.bf16.msra.mxu0 0
    %596 = vmatprep.subr.bf16.mxu0 0
    %597 = vmatpush1.bf16.msra.mxu0 0
    %598 = vmatprep.subr.bf16.mxu0 0
    %599 = vmatpush1.bf16.msra.mxu0 0
    %600 = vmatprep.subr.bf16.mxu0 0
    %601 = vmatpush1.bf16.msra.mxu0 0
    %602 = vmatprep.subr.bf16.mxu0 0
    %603 = vmatpush1.bf16.msra.mxu0 0
    %604 = vmatprep.subr.bf16.mxu0 0
    %605 = vmatpush1.bf16.msra.mxu0 0
    %606 = vmatprep.subr.bf16.mxu0 0
    %607 = vmatpush1.bf16.msra.mxu0 0
    %608 = vmatprep.mubr.bf16.mxu0 0
    %609 = vmatmul.mubr.bf16.gmra.mrb[0].mxu0 %v574
    %v610 = vpop.f32.mrb[0].mxu0
    %v611 = vadd.f32 %v562, %v610
    %v612 = vpop.f32.mrb[0].mxu0
    %v613 = vpop.f32.mrb[0].mxu0
    %v614 = vpop.f32.mrb[0].mxu0
    %615 = vdwg.mxu0
    %v616 = vld [vmem:[%s7] sm:$0x1]
    %v618 = vlaneseq
    %v619 = vshrl.u32 %v618, 7
    %v620 = vsub.s32 0, %v619
    %v621 = vrot.slane %v616, %v620
    %v623 = vadd.f32 %v611, %v621
    %v624 = vmul.f32 %v623, 0.5
    %v625 = vmul.f32 %v623, 0.70710677
    %v626 = vand.u32 2147483647, %v625
    %v627 = vmul.f32 %v626, 0.3275911
    %v628 = vadd.f32 %v627, 1.0
    %v629 = vrcp.pop %v628
    %v630 = vmul.f32 1.0, %v629
    %v631 = vmul.f32 %v630, 1.0614054
    %v632 = vadd.f32 %v631, -1.4531521
    %v633 = vmul.f32 %v632, %v630
    %v634 = vadd.f32 %v633, 1.4214138
    %v635 = vmul.f32 %v634, %v630
    %v636 = vadd.f32 %v635, -0.28449672
    %v637 = vmul.f32 %v636, %v630
    %v638 = vadd.f32 %v637, 0.2548296
    %v639 = vmul.f32 %v638, %v630
    %v640 = vsub.f32 0.0, %v626
    %v641 = vmul.f32 %v640, %v626
    %v642 = vmul.f32 %v641, 1.442695
    %v643 = vpow.pop %v642
    %v644 = vmul.f32 %v639, %v643
    %v645 = vsub.f32 1.0, %v644
    %vm646 = vcmp.lt.f32.partialorder %v625, 0.0
    %v647 = vsub.f32 0.0, %v645
    %v648 = vsel %vm646, %v647, %v645
    %v649 = vadd.f32 %v648, 1.0
    %v650 = vmul.f32 %v624, %v649
    %v651 = vpack.c.bf16 %v650, %v650
    %v652 = vld [vmem:[%s8] sm:$0xf]
    %v653 = vld [vmem:[%s8 + $0x4] sm:$0xf]
    %v654 = vld [vmem:[%s8 + $0x8] sm:$0xf]
    %v655 = vld [vmem:[%s8 + $0xc] sm:$0xf]
    %v656 = vld [vmem:[%s9] sm:$0x1]
    %v658 = vlaneseq
    %v659 = vshrl.u32 %v658, 7
    %v660 = vsub.s32 0, %v659
    %v661 = vrot.slane %v656, %v660
    %v667 = vunpack.c.l.b16 %v652
    %v668 = vunpack.c.l.b16 %v653
    %v669 = vunpack.c.l.b16 %v654
    %v670 = vunpack.c.l.b16 %v655
    %v671 = vpack.c.b16 %v668, %v667
    %v672 = vpack.c.b16 %v670, %v669
    %vm675 = vcmask 261120
    %v677 = vsel %vm675, %v651, 0
    %679 = vmatprep.subr.bf16.mxu0 0
    %680 = vmatpush1.bf16.msra.mxu0 %v671
    %681 = vmatprep.subr.bf16.mxu0 0
    %682 = vmatpush1.bf16.msra.mxu0 %v672
    %683 = vmatprep.subr.bf16.mxu0 0
    %684 = vmatpush1.bf16.msra.mxu0 0
    %685 = vmatprep.subr.bf16.mxu0 0
    %686 = vmatpush1.bf16.msra.mxu0 0
    %687 = vmatprep.subr.bf16.mxu0 0
    %688 = vmatpush1.bf16.msra.mxu0 0
    %689 = vmatprep.subr.bf16.mxu0 0
    %690 = vmatpush1.bf16.msra.mxu0 0
    %691 = vmatprep.subr.bf16.mxu0 0
    %692 = vmatpush1.bf16.msra.mxu0 0
    %693 = vmatprep.subr.bf16.mxu0 0
    %694 = vmatpush1.bf16.msra.mxu0 0
    %695 = vmatprep.subr.bf16.mxu0 0
    %696 = vmatpush1.bf16.msra.mxu0 0
    %697 = vmatprep.subr.bf16.mxu0 0
    %698 = vmatpush1.bf16.msra.mxu0 0
    %699 = vmatprep.subr.bf16.mxu0 0
    %700 = vmatpush1.bf16.msra.mxu0 0
    %701 = vmatprep.subr.bf16.mxu0 0
    %702 = vmatpush1.bf16.msra.mxu0 0
    %703 = vmatprep.subr.bf16.mxu0 0
    %704 = vmatpush1.bf16.msra.mxu0 0
    %705 = vmatprep.subr.bf16.mxu0 0
    %706 = vmatpush1.bf16.msra.mxu0 0
    %707 = vmatprep.subr.bf16.mxu0 0
    %708 = vmatpush1.bf16.msra.mxu0 0
    %709 = vmatprep.subr.bf16.mxu0 0
    %710 = vmatpush1.bf16.msra.mxu0 0
    %711 = vmatprep.mubr.bf16.mxu0 0
    %712 = vmatmul.mubr.bf16.gmra.mrb[0].mxu0 %v677
    %v713 = vpop.f32.mrb[0].mxu0
    %v714 = vadd.f32 %v661, %v713
    %v715 = vpop.f32.mrb[0].mxu0
    %v716 = vpop.f32.mrb[0].mxu0
    %v717 = vpop.f32.mrb[0].mxu0
    %718 = vdwg.mxu0
    %v719 = vld [vmem:[%s0] sm:$0xff]
    %v720 = vsel %vm675, %v719, 0.0
    %721 = vadd.xlane.f32.xlu0 %v720
    %v722 = vpop.xlane.xlu0 %721
    %v723 = vadd.f32 %v722, 0.0
    %v724 = vsel %vm675, %v714, 0.0
    %725 = vadd.xlane.f32.xlu0 %v724
    %v726 = vpop.xlane.xlu0 %725
    %v727 = vadd.f32 %v723, %v726
    %v728 = vsel %vm523, %v278, 0.0
    %729 = vadd.xlane.f32.xlu0 %v728
    %v730 = vpop.xlane.xlu0 %729
    %v731 = vadd.f32 %v727, %v730
    %v732 = vsel %vm523, %v289, 0.0
    %733 = vadd.xlane.f32.xlu0 %v732
    %v734 = vpop.xlane.xlu0 %733
    %v735 = vadd.f32 %v731, %v734
    %v736 = vmul.f32 %v735, 0.010416667
    %v737 = vsub.f32 %v719, %v736
    %v738 = vsub.f32 %v714, %v736
    %v739 = vsub.f32 %v278, %v736
    %v740 = vsub.f32 %v289, %v736
    %v741 = vmul.f32 %v737, %v737
    %v742 = vsel %vm675, %v741, 0.0
    %743 = vadd.xlane.f32.xlu0 %v742
    %v744 = vpop.xlane.xlu0 %743
    %v745 = vadd.f32 %v744, 0.0
    %v746 = vmul.f32 %v738, %v738
    %v747 = vsel %vm675, %v746, 0.0
    %748 = vadd.xlane.f32.xlu0 %v747
    %v749 = vpop.xlane.xlu0 %748
    %v750 = vadd.f32 %v745, %v749
    %v751 = vmul.f32 %v739, %v739
    %v752 = vsel %vm523, %v751, 0.0
    %753 = vadd.xlane.f32.xlu0 %v752
    %v754 = vpop.xlane.xlu0 %753
    %v755 = vadd.f32 %v750, %v754
    %v756 = vmul.f32 %v740, %v740
    %v757 = vsel %vm523, %v756, 0.0
    %758 = vadd.xlane.f32.xlu0 %v757
    %v759 = vpop.xlane.xlu0 %758
    %v760 = vadd.f32 %v755, %v759
    %v761 = vmul.f32 %v760, 0.010416667
    %v762 = vadd.f32 %v761, 1e-05
    %v763 = vrsqrt.pop %v762
    %v764 = vld [vmem:[%s14] sm:$0x1]
    %v765 = vmul.f32 %v737, %v763
    %v766 = vpack.c.bf16 %v765, %v765
    %v767 = vld [vmem:[%s10] sm:$0xf]
    %v768 = vld [vmem:[%s10 + $0x4] sm:$0xf]
    %v769 = vld [vmem:[%s10 + $0x8] sm:$0xf]
    %v770 = vld [vmem:[%s10 + $0xc] sm:$0xf]
    %v775 = vunpack.c.l.b16 %v767
    %v776 = vunpack.c.l.b16 %v768
    %v777 = vunpack.c.l.b16 %v769
    %v778 = vunpack.c.l.b16 %v770
    %v779 = vpack.c.b16 %v776, %v775
    %v780 = vpack.c.b16 %v778, %v777
    %v784 = vsel %vm675, %v766, 0
    %786 = vmatprep.subr.bf16.mxu0 0
    %787 = vmatpush1.bf16.msra.mxu0 %v779
    %788 = vmatprep.subr.bf16.mxu0 0
    %789 = vmatpush1.bf16.msra.mxu0 %v780
    %790 = vmatprep.subr.bf16.mxu0 0
    %791 = vmatpush1.bf16.msra.mxu0 0
    %792 = vmatprep.subr.bf16.mxu0 0
    %793 = vmatpush1.bf16.msra.mxu0 0
    %794 = vmatprep.subr.bf16.mxu0 0
    %795 = vmatpush1.bf16.msra.mxu0 0
    %796 = vmatprep.subr.bf16.mxu0 0
    %797 = vmatpush1.bf16.msra.mxu0 0
    %798 = vmatprep.subr.bf16.mxu0 0
    %799 = vmatpush1.bf16.msra.mxu0 0
    %800 = vmatprep.subr.bf16.mxu0 0
    %801 = vmatpush1.bf16.msra.mxu0 0
    %802 = vmatprep.subr.bf16.mxu0 0
    %803 = vmatpush1.bf16.msra.mxu0 0
    %804 = vmatprep.subr.bf16.mxu0 0
    %805 = vmatpush1.bf16.msra.mxu0 0
    %806 = vmatprep.subr.bf16.mxu0 0
    %807 = vmatpush1.bf16.msra.mxu0 0
    %808 = vmatprep.subr.bf16.mxu0 0
    %809 = vmatpush1.bf16.msra.mxu0 0
    %810 = vmatprep.subr.bf16.mxu0 0
    %811 = vmatpush1.bf16.msra.mxu0 0
    %812 = vmatprep.subr.bf16.mxu0 0
    %813 = vmatpush1.bf16.msra.mxu0 0
    %814 = vmatprep.subr.bf16.mxu0 0
    %815 = vmatpush1.bf16.msra.mxu0 0
    %816 = vmatprep.subr.bf16.mxu0 0
    %817 = vmatpush1.bf16.msra.mxu0 0
    %818 = vmatprep.mubr.bf16.mxu0 0
    %819 = vmatmul.mubr.bf16.gmra.mrb[0].mxu0 %v784
    %v820 = vpop.f32.mrb[0].mxu0
    %v821 = vadd.f32 0.0, %v820
    %v822 = vpop.f32.mrb[0].mxu0
    %v823 = vpop.f32.mrb[0].mxu0
    %v824 = vpop.f32.mrb[0].mxu0
    %825 = vdwg.mxu0
    %v827 = vlaneseq
    %v828 = vshrl.u32 %v827, 7
    %v829 = vsub.s32 0, %v828
    %v830 = vrot.slane %v764, %v829
    %v832 = vadd.f32 %v830, %v821
    %v833 = vmul.f32 %v738, %v763
    %v834 = vpack.c.bf16 %v833, %v833
    %v835 = vld [vmem:[%s11] sm:$0xf]
    %v836 = vld [vmem:[%s11 + $0x4] sm:$0xf]
    %v837 = vld [vmem:[%s11 + $0x8] sm:$0xf]
    %v838 = vld [vmem:[%s11 + $0xc] sm:$0xf]
    %v843 = vunpack.c.l.b16 %v835
    %v844 = vunpack.c.l.b16 %v836
    %v845 = vunpack.c.l.b16 %v837
    %v846 = vunpack.c.l.b16 %v838
    %v847 = vpack.c.b16 %v844, %v843
    %v848 = vpack.c.b16 %v846, %v845
    %v852 = vsel %vm675, %v834, 0
    %854 = vmatprep.subr.bf16.mxu0 0
    %855 = vmatpush1.bf16.msra.mxu0 %v847
    %856 = vmatprep.subr.bf16.mxu0 0
    %857 = vmatpush1.bf16.msra.mxu0 %v848
    %858 = vmatprep.subr.bf16.mxu0 0
    %859 = vmatpush1.bf16.msra.mxu0 0
    %860 = vmatprep.subr.bf16.mxu0 0
    %861 = vmatpush1.bf16.msra.mxu0 0
    %862 = vmatprep.subr.bf16.mxu0 0
    %863 = vmatpush1.bf16.msra.mxu0 0
    %864 = vmatprep.subr.bf16.mxu0 0
    %865 = vmatpush1.bf16.msra.mxu0 0
    %866 = vmatprep.subr.bf16.mxu0 0
    %867 = vmatpush1.bf16.msra.mxu0 0
    %868 = vmatprep.subr.bf16.mxu0 0
    %869 = vmatpush1.bf16.msra.mxu0 0
    %870 = vmatprep.subr.bf16.mxu0 0
    %871 = vmatpush1.bf16.msra.mxu0 0
    %872 = vmatprep.subr.bf16.mxu0 0
    %873 = vmatpush1.bf16.msra.mxu0 0
    %874 = vmatprep.subr.bf16.mxu0 0
    %875 = vmatpush1.bf16.msra.mxu0 0
    %876 = vmatprep.subr.bf16.mxu0 0
    %877 = vmatpush1.bf16.msra.mxu0 0
    %878 = vmatprep.subr.bf16.mxu0 0
    %879 = vmatpush1.bf16.msra.mxu0 0
    %880 = vmatprep.subr.bf16.mxu0 0
    %881 = vmatpush1.bf16.msra.mxu0 0
    %882 = vmatprep.subr.bf16.mxu0 0
    %883 = vmatpush1.bf16.msra.mxu0 0
    %884 = vmatprep.subr.bf16.mxu0 0
    %885 = vmatpush1.bf16.msra.mxu0 0
    %886 = vmatprep.mubr.bf16.mxu0 0
    %887 = vmatmul.mubr.bf16.gmra.mrb[0].mxu0 %v852
    %v888 = vpop.f32.mrb[0].mxu0
    %v889 = vadd.f32 0.0, %v888
    %v890 = vpop.f32.mrb[0].mxu0
    %v891 = vpop.f32.mrb[0].mxu0
    %v892 = vpop.f32.mrb[0].mxu0
    %893 = vdwg.mxu0
    %v894 = vadd.f32 %v832, %v889
    %v895 = vmul.f32 %v739, %v763
    %v896 = vpack.c.bf16 %v895, %v895
    %v897 = vld [vmem:[%s12] sm:$0xf]
    %v898 = vld [vmem:[%s12 + $0x4] sm:$0xf]
    %v901 = vunpack.c.l.b16 %v897
    %v902 = vunpack.c.l.b16 %v898
    %v903 = vpack.c.b16 %v902, %v901
    %v906 = vsel %vm523, %v896, 0
    %908 = vmatprep.subr.bf16.mxu0 0
    %909 = vmatpush1.bf16.msra.mxu0 %v903
    %910 = vmatprep.subr.bf16.mxu0 0
    %911 = vmatpush1.bf16.msra.mxu0 0
    %912 = vmatprep.subr.bf16.mxu0 0
    %913 = vmatpush1.bf16.msra.mxu0 0
    %914 = vmatprep.subr.bf16.mxu0 0
    %915 = vmatpush1.bf16.msra.mxu0 0
    %916 = vmatprep.subr.bf16.mxu0 0
    %917 = vmatpush1.bf16.msra.mxu0 0
    %918 = vmatprep.subr.bf16.mxu0 0
    %919 = vmatpush1.bf16.msra.mxu0 0
    %920 = vmatprep.subr.bf16.mxu0 0
    %921 = vmatpush1.bf16.msra.mxu0 0
    %922 = vmatprep.subr.bf16.mxu0 0
    %923 = vmatpush1.bf16.msra.mxu0 0
    %924 = vmatprep.subr.bf16.mxu0 0
    %925 = vmatpush1.bf16.msra.mxu0 0
    %926 = vmatprep.subr.bf16.mxu0 0
    %927 = vmatpush1.bf16.msra.mxu0 0
    %928 = vmatprep.subr.bf16.mxu0 0
    %929 = vmatpush1.bf16.msra.mxu0 0
    %930 = vmatprep.subr.bf16.mxu0 0
    %931 = vmatpush1.bf16.msra.mxu0 0
    %932 = vmatprep.subr.bf16.mxu0 0
    %933 = vmatpush1.bf16.msra.mxu0 0
    %934 = vmatprep.subr.bf16.mxu0 0
    %935 = vmatpush1.bf16.msra.mxu0 0
    %936 = vmatprep.subr.bf16.mxu0 0
    %937 = vmatpush1.bf16.msra.mxu0 0
    %938 = vmatprep.subr.bf16.mxu0 0
    %939 = vmatpush1.bf16.msra.mxu0 0
    %940 = vmatprep.mubr.bf16.mxu0 0
    %941 = vmatmul.mubr.bf16.gmra.mrb[0].mxu0 %v906
    %v942 = vpop.f32.mrb[0].mxu0
    %v943 = vadd.f32 0.0, %v942
    %v944 = vpop.f32.mrb[0].mxu0
    %v945 = vpop.f32.mrb[0].mxu0
    %v946 = vpop.f32.mrb[0].mxu0
    %947 = vdwg.mxu0
    %v948 = vadd.f32 %v894, %v943
    %v949 = vmul.f32 %v740, %v763
    %v950 = vpack.c.bf16 %v949, %v949
    %v951 = vld [vmem:[%s13] sm:$0xf]
    %v952 = vld [vmem:[%s13 + $0x4] sm:$0xf]
    %v955 = vunpack.c.l.b16 %v951
    %v956 = vunpack.c.l.b16 %v952
    %v957 = vpack.c.b16 %v956, %v955
    %v960 = vsel %vm523, %v950, 0
    %962 = vmatprep.subr.bf16.mxu0 0
    %963 = vmatpush1.bf16.msra.mxu0 %v957
    %964 = vmatprep.subr.bf16.mxu0 0
    %965 = vmatpush1.bf16.msra.mxu0 0
    %966 = vmatprep.subr.bf16.mxu0 0
    %967 = vmatpush1.bf16.msra.mxu0 0
    %968 = vmatprep.subr.bf16.mxu0 0
    %969 = vmatpush1.bf16.msra.mxu0 0
    %970 = vmatprep.subr.bf16.mxu0 0
    %971 = vmatpush1.bf16.msra.mxu0 0
    %972 = vmatprep.subr.bf16.mxu0 0
    %973 = vmatpush1.bf16.msra.mxu0 0
    %974 = vmatprep.subr.bf16.mxu0 0
    %975 = vmatpush1.bf16.msra.mxu0 0
    %976 = vmatprep.subr.bf16.mxu0 0
    %977 = vmatpush1.bf16.msra.mxu0 0
    %978 = vmatprep.subr.bf16.mxu0 0
    %979 = vmatpush1.bf16.msra.mxu0 0
    %980 = vmatprep.subr.bf16.mxu0 0
    %981 = vmatpush1.bf16.msra.mxu0 0
    %982 = vmatprep.subr.bf16.mxu0 0
    %983 = vmatpush1.bf16.msra.mxu0 0
    %984 = vmatprep.subr.bf16.mxu0 0
    %985 = vmatpush1.bf16.msra.mxu0 0
    %986 = vmatprep.subr.bf16.mxu0 0
    %987 = vmatpush1.bf16.msra.mxu0 0
    %988 = vmatprep.subr.bf16.mxu0 0
    %989 = vmatpush1.bf16.msra.mxu0 0
    %990 = vmatprep.subr.bf16.mxu0 0
    %991 = vmatpush1.bf16.msra.mxu0 0
    %992 = vmatprep.subr.bf16.mxu0 0
    %993 = vmatpush1.bf16.msra.mxu0 0
    %994 = vmatprep.mubr.bf16.mxu0 0
    %995 = vmatmul.mubr.bf16.gmra.mrb[0].mxu0 %v960
    %v996 = vpop.f32.mrb[0].mxu0
    %v997 = vadd.f32 0.0, %v996
    %v998 = vpop.f32.mrb[0].mxu0
    %v999 = vpop.f32.mrb[0].mxu0
    %v1000 = vpop.f32.mrb[0].mxu0
    %1001 = vdwg.mxu0
    %v1002 = vadd.f32 %v948, %v997
    %v1003 = vmax.f32 %v1002, 0.0
    %1004 = vadd.xlane.f32.xlu0 %v1003
    %v1005 = vpop.xlane.xlu0 %1004
    %v1006 = vrcp.pop 128.0
    %v1007 = vmul.f32 %v1005, %v1006
    %v1008 = vsub.f32 %v1003, %v1007
    %v1009 = vmul.f32 %v1008, %v1008
    %1010 = vadd.xlane.f32.xlu0 %v1009
    %v1011 = vpop.xlane.xlu0 %1010
    %v1012 = vmul.f32 %v1011, %v1006
    %v1013 = vadd.f32 %v1012, 1e-05
    %v1014 = vrsqrt.pop %v1013
    %v1015 = vmul.f32 %v1008, %v1014
    %v1016 = vpack.c.bf16 %v1015, %v1015
    %v1017 = vld [vmem:[%s15] sm:$0xf]
    %v1018 = vld [vmem:[%s15 + $0x4] sm:$0xf]
    %v1019 = vld [vmem:[%s15 + $0x8] sm:$0xf]
    %v1020 = vld [vmem:[%s15 + $0xc] sm:$0xf]
    %v1021 = vld [vmem:[%s15 + $0x10] sm:$0xf]
    %v1022 = vld [vmem:[%s15 + $0x14] sm:$0xf]
    %v1023 = vld [vmem:[%s15 + $0x18] sm:$0xf]
    %v1024 = vld [vmem:[%s15 + $0x1c] sm:$0xf]
    %v1025 = vld [vmem:[%s15 + $0x20] sm:$0xf]
    %v1026 = vld [vmem:[%s15 + $0x24] sm:$0xf]
    %v1027 = vld [vmem:[%s15 + $0x28] sm:$0xf]
    %v1028 = vld [vmem:[%s15 + $0x2c] sm:$0xf]
    %v1029 = vld [vmem:[%s15 + $0x30] sm:$0xf]
    %v1030 = vld [vmem:[%s15 + $0x34] sm:$0xf]
    %v1031 = vld [vmem:[%s15 + $0x38] sm:$0xf]
    %v1032 = vld [vmem:[%s15 + $0x3c] sm:$0xf]
    %v1033 = vld [vmem:[%s16] sm:$0x1]
    %v1035 = vlaneseq
    %v1036 = vshrl.u32 %v1035, 7
    %v1037 = vsub.s32 0, %v1036
    %v1038 = vrot.slane %v1033, %v1037
    %v1056 = vunpack.c.l.b16 %v1017
    %v1057 = vunpack.c.l.b16 %v1018
    %v1058 = vunpack.c.l.b16 %v1019
    %v1059 = vunpack.c.l.b16 %v1020
    %v1060 = vunpack.c.l.b16 %v1021
    %v1061 = vunpack.c.l.b16 %v1022
    %v1062 = vunpack.c.l.b16 %v1023
    %v1063 = vunpack.c.l.b16 %v1024
    %v1064 = vunpack.c.l.b16 %v1025
    %v1065 = vunpack.c.l.b16 %v1026
    %v1066 = vunpack.c.l.b16 %v1027
    %v1067 = vunpack.c.l.b16 %v1028
    %v1068 = vunpack.c.l.b16 %v1029
    %v1069 = vunpack.c.l.b16 %v1030
    %v1070 = vunpack.c.l.b16 %v1031
    %v1071 = vunpack.c.l.b16 %v1032
    %v1072 = vpack.c.b16 %v1057, %v1056
    %v1073 = vpack.c.b16 %v1059, %v1058
    %v1074 = vpack.c.b16 %v1061, %v1060
    %v1075 = vpack.c.b16 %v1063, %v1062
    %v1076 = vpack.c.b16 %v1065, %v1064
    %v1077 = vpack.c.b16 %v1067, %v1066
    %v1078 = vpack.c.b16 %v1069, %v1068
    %v1079 = vpack.c.b16 %v1071, %v1070
    %1088 = vmatprep.subr.bf16.mxu0 0
    %1089 = vmatpush1.bf16.msra.mxu0 %v1072
    %1090 = vmatprep.subr.bf16.mxu0 0
    %1091 = vmatpush1.bf16.msra.mxu0 %v1073
    %1092 = vmatprep.subr.bf16.mxu0 0
    %1093 = vmatpush1.bf16.msra.mxu0 %v1074
    %1094 = vmatprep.subr.bf16.mxu0 0
    %1095 = vmatpush1.bf16.msra.mxu0 %v1075
    %1096 = vmatprep.subr.bf16.mxu0 0
    %1097 = vmatpush1.bf16.msra.mxu0 %v1076
    %1098 = vmatprep.subr.bf16.mxu0 0
    %1099 = vmatpush1.bf16.msra.mxu0 %v1077
    %1100 = vmatprep.subr.bf16.mxu0 0
    %1101 = vmatpush1.bf16.msra.mxu0 %v1078
    %1102 = vmatprep.subr.bf16.mxu0 0
    %1103 = vmatpush1.bf16.msra.mxu0 %v1079
    %1104 = vmatprep.subr.bf16.mxu0 0
    %1105 = vmatpush1.bf16.msra.mxu0 0
    %1106 = vmatprep.subr.bf16.mxu0 0
    %1107 = vmatpush1.bf16.msra.mxu0 0
    %1108 = vmatprep.subr.bf16.mxu0 0
    %1109 = vmatpush1.bf16.msra.mxu0 0
    %1110 = vmatprep.subr.bf16.mxu0 0
    %1111 = vmatpush1.bf16.msra.mxu0 0
    %1112 = vmatprep.subr.bf16.mxu0 0
    %1113 = vmatpush1.bf16.msra.mxu0 0
    %1114 = vmatprep.subr.bf16.mxu0 0
    %1115 = vmatpush1.bf16.msra.mxu0 0
    %1116 = vmatprep.subr.bf16.mxu0 0
    %1117 = vmatpush1.bf16.msra.mxu0 0
    %1118 = vmatprep.subr.bf16.mxu0 0
    %1119 = vmatpush1.bf16.msra.mxu0 0
    %1120 = vmatprep.mubr.bf16.mxu0 0
    %1121 = vmatmul.mubr.bf16.gmra.mrb[0].mxu0 %v1016
    %v1122 = vpop.f32.mrb[0].mxu0
    %v1123 = vadd.f32 %v1038, %v1122
    %v1124 = vpop.f32.mrb[0].mxu0
    %v1125 = vpop.f32.mrb[0].mxu0
    %v1126 = vpop.f32.mrb[0].mxu0
    %1127 = vdwg.mxu0
    %1128 = vst.msk [vmem:[#allocation2] sm:$0xff] %vm675, %v1123
    // Predicated region
    $region70: #{tpu_custom_call.1} parent=1 // pred_check
      _
    $region71: #{tpu_custom_call.1} parent=1 // pred_check_branch
      %1130 = sbr.rel (0) target = $region73
    $region72: #{tpu_custom_call.1} parent=1 // pred_region
      %s1132 = ssub.s32 128, 128
      %1133 = vsyncadd [#allocation3], %s1132
      %s1135 = sshll.u32 [#allocation2], 4
      %s1136 = int_to_ptr.vmem [resolvable:$true] %s1135
      %1138 = dma.vmem_to_hbm [thread:$0]  %s1136, 128, %s17, [#allocation3]
    $region73: #{tpu_custom_call.1} parent=1 // pred_fallthru
      _
    // Predicated region
    $region74: #{tpu_custom_call.1} parent=1 // pred_check
      _
    $region75: #{tpu_custom_call.1} parent=1 // pred_check_branch
      %1140 = sbr.rel (0) target = $region77
    $region76: #{tpu_custom_call.1} parent=1 // pred_region
      %1141 = dma.done [#allocation3], 128
    $region77: #{tpu_custom_call.1} parent=1 // pred_fallthru
      _
    %1142 = vsyncpa [#allocation3], 1

</llo_original>
